<compile_context>
chip_gen: v5e
topology: v5e:2x2
jax: 0.10.0
libtpu: 0.0.40
codegen_flags: <defaults>
</compile_context>

<pallas_src>
import functools
import math

import jax
import jax.numpy as jnp
from jax import lax
from jax.experimental import pallas as pl
from jax.experimental.pallas import tpu as pltpu


def _vmem_limit_bytes():
    """Scoped-VMEM limit adapted to the generation (v7x: 64 MiB, v5e/v6e: 128 MiB)."""
    try:
        cap = int(getattr(pltpu.get_tpu_info(), "vmem_capacity_bytes",
                          128 * 1024 * 1024))
        return max(32 * 1024 * 1024, min(cap * 3 // 4, 96 * 1024 * 1024))
    except Exception:
        return 64 * 1024 * 1024


def _gelu_tanh(x):
    # TODO(synk): PyTorch nn.GELU() is the exact erf form; Mosaic has no erf
    # lowering, so we use the tanh form (max |err| ~3e-4, single EUP tanh).
    c = 0.7978845608028654  # sqrt(2/pi)
    return 0.5 * x * (1.0 + jnp.tanh(c * (x + 0.044715 * x * x * x)))


def _chunks(total, size):
    out, o = [], 0
    while o < total:
        out.append((o, min(size, total - o)))
        o += size
    return out


def _pick_depth_tile(do, cap):
    best = 1
    for dt in range(1, min(do, cap) + 1):
        if do % dt == 0:
            best = dt
    return best


# ---------------------------------------------------------------------------
# Kernel A: depthwise stride-2 conv1 + per-(n,c) GroupNorm partial statistics.
# ---------------------------------------------------------------------------
def _conv1_kernel(xs_ref, w1_ref, vmask_ref, y_ref, s1_ref, s2_ref, *,
                  K, Wp2, dsub, lsub):
    """One grid step == one (batch, channel).  Lane dim = flattened H*W plane.

    xs_ref   : (8, Dp2, Lplane)  parity-split zero-padded input (one channel)
    w1_ref   : (C, K^3)  SMEM    depthwise taps
    vmask_ref: (1, Lp)           1.0 on valid (wo < Wo) lanes
    y_ref    : (Do, Lp)          conv1 output (padded-column row layout)
    s1_ref   : (1, 1)            per-(n,c) sum over valid lanes
    s2_ref   : (1, 1)            per-(n,c) sum of squares over valid lanes
    """
    c = pl.program_id(1)
    Do, Lp = y_ref.shape
    w = [w1_ref[c, t] for t in range(K * K * K)]          # hoisted scalar loads
    s1 = jnp.zeros((1, 1), jnp.float32)
    s2 = jnp.zeros((1, 1), jnp.float32)
    # TODO(synk): for very large D/H/W convert these static chunk loops to
    # lax.fori_loop to bound trace size; static unroll is fine at these shapes.
    for d0, dsz in _chunks(Do, dsub):
        for l0, lsz in _chunks(Lp, lsub):
            # vreg-resident accumulator; y is stored exactly once per chunk.
            acc = jnp.zeros((dsz, lsz), jnp.float32)
            for kd in range(K):
                qd = kd // 2
                for kh in range(K):
                    qh = kh // 2
                    for kw in range(K):
                        qw = kw // 2
                        par = (kd % 2) * 4 + (kh % 2) * 2 + (kw % 2)
                        tap = (kd * K + kh) * K + kw
                        off = qh * Wp2 + qw + l0
                        win = xs_ref[par, pl.ds(d0 + qd, dsz), pl.ds(off, lsz)]
                        acc = acc + win.astype(jnp.float32) * w[tap]
            y_ref[pl.ds(d0, dsz), pl.ds(l0, lsz)] = acc
            am = acc * vmask_ref[:, pl.ds(l0, lsz)]
            s1 = s1 + jnp.sum(jnp.sum(am, axis=1, keepdims=True),
                              axis=0, keepdims=True)
            s2 = s2 + jnp.sum(jnp.sum(am * acc, axis=1, keepdims=True),
                              axis=0, keepdims=True)
    s1_ref[...] = s1
    s2_ref[...] = s2


# ---------------------------------------------------------------------------
# Kernel B: GroupNorm affine + conv2 -> GELU -> conv3 (+ stride-2 residual).
# ---------------------------------------------------------------------------
def _mlp_kernel(y_ref, xr_ref, scale_ref, shift_ref, w2_ref, b2_ref,
                w3_ref, b3_ref, wr_ref, o_ref, *, s0, dsub, lsub, do_res):
    """One grid step == one (batch, tile of Db output-depth rows).

    y_ref    : (C, Db, Lp)       conv1 output rows
    xr_ref   : (C, Db, Lplane)   parity slab holding x[:, 2d, ::2, ::2] at lane off s0
    scale/shift : (N, C) SMEM    folded GroupNorm affine
    w2/b2/w3/b3/wr : SMEM        1x1-conv weights (b3 already holds residual bias)
    o_ref    : (Co, Db, Lp)
    """
    n = pl.program_id(0)
    C, Db, Lp = y_ref.shape
    E = w2_ref.shape[0]
    Co = o_ref.shape[0]
    sc = [scale_ref[n, c] for c in range(C)]
    sh = [shift_ref[n, c] for c in range(C)]
    w2 = [[w2_ref[e, c] for c in range(C)] for e in range(E)]
    b2 = [b2_ref[e] for e in range(E)]
    w3 = [[w3_ref[o, e] for e in range(E)] for o in range(Co)]
    b3 = [b3_ref[o] for o in range(Co)]
    wr = [[wr_ref[o, c] for c in range(C)] for o in range(Co)] if do_res else None
    for d0, dsz in _chunks(Db, dsub):
        for l0, lsz in _chunks(Lp, lsub):
            z = []
            for c in range(C):
                v = y_ref[c, pl.ds(d0, dsz), pl.ds(l0, lsz)].astype(jnp.float32)
                z.append(v * sc[c] + sh[c])
            outs = [jnp.zeros((dsz, lsz), jnp.float32) for _ in range(Co)]
            # Stream over the expanded dim: only one GELU'd plane is live at a
            # time.  Contraction dims (C=4, E=16) are too small to feed the MXU
            # usefully, so these 1x1 convs stay on scalar-broadcast VPU FMAs.
            for e in range(E):
                h = z[0] * w2[e][0]
                for c in range(1, C):
                    h = h + z[c] * w2[e][c]
                g = _gelu_tanh(h + b2[e])
                for o in range(Co):
                    outs[o] = outs[o] + g * w3[o][e]
            if do_res:
                for c in range(C):
                    xv = xr_ref[c, pl.ds(d0, dsz), pl.ds(s0 + l0, lsz)]
                    xv = xv.astype(jnp.float32)
                    for o in range(Co):
                        outs[o] = outs[o] + xv * wr[o][c]
            for o in range(Co):
                o_ref[o, pl.ds(d0, dsz), pl.ds(l0, lsz)] = (
                    outs[o] + b3[o]).astype(o_ref.dtype)


@functools.partial(jax.jit, static_argnames=("kernel_size", "do_res"))
def down_block_forward(x, params, *, kernel_size, do_res=True):
    """x: (N, C, D, H, W) float32 (PyTorch NCDHW convention)."""
    N, C, D, H, W = x.shape
    K = kernel_size
    assert K % 2 == 1, "cubic odd kernel assumed (DownBlock uses k=3/7)"
    assert D % 2 == 0 and H % 2 == 0 and W % 2 == 0
    pad = K // 2
    Do, Ho, Wo = D // 2, H // 2, W // 2
    Dp2, Wp2 = Do + pad, Wo + pad
    Hp2e = Ho + pad + 1      # one extra parity row folds the lane halo into the pad
    Lp = Ho * Wp2            # conv1-output lane width (padded columns)
    Lplane = Hp2e * Wp2      # parity-split input plane lane width

    (w1, b1, gnw, gnb, w2, b2, w3, b3, wr, br) = params
    del b1                   # per-channel conv1 bias exactly cancelled by GroupNorm
    E, Co = w2.shape[1], w3.shape[1]

    # ---- input prep: one pad + one parity-split transpose (no concat/gather) ----
    xp = jnp.pad(x, ((0, 0), (0, 0), (pad, pad), (pad, pad + 2), (pad, pad)))
    xs = xp.reshape(N, C, Dp2, 2, Hp2e, 2, Wp2, 2)
    xs = xs.transpose(0, 1, 3, 5, 7, 2, 4, 6).reshape(N, C, 8, Dp2, Lplane)

    w1s = w1.reshape(K * K * K, C).T.astype(jnp.float32)          # (C, K^3)
    vmask = ((jnp.arange(Lp) % Wp2) < Wo).astype(jnp.float32).reshape(1, Lp)

    vmem_lim = _vmem_limit_bytes()
    dsub, lsub_a, lsub_b = 8, 512, 256

    # -------- pass 1: depthwise stride-2 conv + GroupNorm partial stats --------
    kern_a = functools.partial(_conv1_kernel, K=K, Wp2=Wp2, dsub=dsub, lsub=lsub_a)
    y, s1, s2 = pl.pallas_call(
        kern_a,
        grid=(N, C),
        in_specs=[
            pl.BlockSpec((None, None, 8, Dp2, Lplane), lambda n, c: (n, c, 0, 0, 0)),
            pl.BlockSpec(memory_space=pltpu.MemorySpace.SMEM),
            pl.BlockSpec((1, Lp), lambda n, c: (0, 0)),
        ],
        out_specs=(
            pl.BlockSpec((None, None, Do, Lp), lambda n, c: (n, c, 0, 0)),
            pl.BlockSpec((None, None, 1, 1), lambda n, c: (n, c, 0, 0)),
            pl.BlockSpec((None, None, 1, 1), lambda n, c: (n, c, 0, 0)),
        ),
        out_shape=(
            jax.ShapeDtypeStruct((N, C, Do, Lp), jnp.float32),
            jax.ShapeDtypeStruct((N, C, 1, 1), jnp.float32),
            jax.ShapeDtypeStruct((N, C, 1, 1), jnp.float32),
        ),
        compiler_params=pltpu.CompilerParams(
            dimension_semantics=("parallel", "parallel"),
            vmem_limit_bytes=vmem_lim),
    )(xs, w1s, vmask)

    # -------- GroupNorm finalize (tiny, in XLA); fold into per-(n,c) affine ----
    cnt = float(Do * Ho * Wo)
    mean = s1.reshape(N, C) / cnt
    var = jnp.maximum(s2.reshape(N, C) / cnt - mean * mean, 0.0)
    inv = lax.rsqrt(var + 1e-5)
    scale = (gnw.reshape(1, C) * inv).astype(jnp.float32)
    shift = (gnb.reshape(1, C) - mean * scale).astype(jnp.float32)

    w2s = w2.T.astype(jnp.float32)                                # (E, C)
    b2s = b2.astype(jnp.float32)                                  # (E,)
    w3s = w3.T.astype(jnp.float32)                                # (Co, E)
    b3s = ((b3 + br) if do_res else b3).astype(jnp.float32)       # (Co,)
    wrs = wr.T.astype(jnp.float32)                                # (Co, C)

    # residual source: (pad%2,pad%2,pad%2) parity slab of xs, depth offset pad//2
    p_r, q0 = 7 * (pad % 2), pad // 2
    s0 = q0 * Wp2 + q0
    xres = xs[:, :, p_r, q0:q0 + Do, :]                           # (N, C, Do, Lplane)

    Db = _pick_depth_tile(Do, 16)
    if N * (Do // Db) < 2 and Do > 1:                 # keep both v7x cores busy
        Db = _pick_depth_tile(Do, max(1, Do // 2))
    nDb = Do // Db

    # -------- pass 2: GroupNorm affine + conv2 -> GELU -> conv3 (+ residual) ---
    kern_b = functools.partial(_mlp_kernel, s0=s0, dsub=dsub, lsub=lsub_b,
                               do_res=do_res)
    smem = pl.BlockSpec(memory_space=pltpu.MemorySpace.SMEM)
    outp = pl.pallas_call(
        kern_b,
        grid=(N, nDb),
        in_specs=[
            pl.BlockSpec((None, C, Db, Lp), lambda n, t: (n, 0, t, 0)),
            pl.BlockSpec((None, C, Db, Lplane), lambda n, t: (n, 0, t, 0)),
            smem, smem, smem, smem, smem, smem, smem,
        ],
        out_specs=pl.BlockSpec((None, Co, Db, Lp), lambda n, t: (n, 0, t, 0)),
        out_shape=jax.ShapeDtypeStruct((N, Co, Do, Lp), x.dtype),
        compiler_params=pltpu.CompilerParams(
            dimension_semantics=("parallel", "parallel"),
            vmem_limit_bytes=vmem_lim),
    )(y, xres, scale, shift, w2s, b2s, w3s, b3s, wrs)

    # Output is already channel-major (NCDHW up to padded columns); drop the pad
    # columns with a single slice (the reshape is free).
    # TODO(synk): writing (Co, Db, Ho, Wo) blocks directly from kernel B would
    # remove this slice pass too, at the cost of an in-kernel lane->sublane
    # relayout and sub-128-lane stores; lane-dense stores were kept instead.
    return outp.reshape(N, Co, Do, Ho, Wp2)[..., :Wo]


def init_params(key, C, E, Co, K):
    """Deterministic synthetic parameters (kernel-layout shapes)."""
    ks = jax.random.split(key, 10)

    def u(k, shape, fan_in):
        bound = 1.0 / math.sqrt(fan_in)
        return jax.random.uniform(k, shape, jnp.float32, -bound, bound)

    w1 = u(ks[0], (K, K, K, C), K * K * K)   # torch conv1.weight[c,0,kd,kh,kw]
    b1 = u(ks[1], (C,), K * K * K)
    gnw = 1.0 + 0.1 * jax.random.normal(ks[2], (C,), jnp.float32)
    gnb = 0.1 * jax.random.normal(ks[3], (C,), jnp.float32)
    w2 = u(ks[4], (C, E), C)                 # torch conv2.weight[e,c,0,0,0].T
    b2 = u(ks[5], (E,), C)
    w3 = u(ks[6], (E, Co), E)
    b3 = u(ks[7], (Co,), E)
    wr = u(ks[8], (C, Co), C)                # torch res_conv.weight[o,c,0,0,0].T
    br = u(ks[9], (Co,), C)
    return (w1, b1, gnw, gnb, w2, b2, w3, b3, wr, br)


def down_block_reference(x, params, *, kernel_size, do_res=True):
    """Pure-JAX reference mirroring the PyTorch forward (NCDHW, exact GELU)."""
    (w1, b1, gnw, gnb, w2, b2, w3, b3, wr, br) = params
    N, C, D, H, W = x.shape
    K = kernel_size
    pad = K // 2
    hp = lax.Precision.HIGHEST

    w1_oidhw = jnp.transpose(w1, (3, 0, 1, 2))[:, None]      # (C,1,K,K,K)
    y = lax.conv_general_dilated(
        x, w1_oidhw, window_strides=(2, 2, 2), padding=[(pad, pad)] * 3,
        dimension_numbers=("NCDHW", "OIDHW", "NCDHW"),
        feature_group_count=C, precision=hp)
    y = y + b1[None, :, None, None, None]

    mean = jnp.mean(y, axis=(2, 3, 4), keepdims=True)
    var = jnp.mean(jnp.square(y - mean), axis=(2, 3, 4), keepdims=True)
    y = (y - mean) * lax.rsqrt(var + 1e-5)
    y = y * gnw[None, :, None, None, None] + gnb[None, :, None, None, None]

    h = jnp.einsum("ncdhw,ce->nedhw", y, w2, precision=hp) \
        + b2[None, :, None, None, None]
    h = jax.nn.gelu(h, approximate=False)
    out = jnp.einsum("nedhw,eo->nodhw", h, w3, precision=hp) \
        + b3[None, :, None, None, None]

    if do_res:
        xr = x[:, :, ::2, ::2, ::2]
        out = out + jnp.einsum("ncdhw,co->nodhw", xr, wr, precision=hp) \
                  + br[None, :, None, None, None]
    return out


if __name__ == "__main__":
    key = jax.random.PRNGKey(0)
    N, C_in, C_out = 2, 4, 8
    D = H = W = 16
    exp_r = 4                 # module default
    K = 3                     # module arg (default 7 also works; 3 keeps compile fast)
    E = exp_r * C_in

    kx, kp = jax.random.split(key)
    x = jax.random.normal(kx, (N, C_in, D, H, W), jnp.float32)
    params = init_params(kp, C_in, E, C_out, K)

    out = down_block_forward(x, params, kernel_size=K, do_res=True)
    out = jax.block_until_ready(out)
    assert out.shape == (N, C_out, D // 2, H // 2, W // 2), out.shape

    out_ref = down_block_reference(x, params, kernel_size=K, do_res=True)
    err = float(jnp.max(jnp.abs(out - out_ref)))
    # tolerance covers the tanh-GELU vs exact-erf GELU difference (<~1e-3)
    assert err < 2e-3, f"max abs err {err}"

    print("KERNEL_OK")
</pallas_src>

<mosaic_0001>
module attributes {stable_mosaic.version = 11 : i64} {
  func.func @_conv1_kernel(%arg0: i32, %arg1: i32, %arg2: memref<1x1x8x9x90xf32, #tpu.memory_space<vmem>>, %arg3: memref<4x27xf32, #tpu.memory_space<smem>>, %arg4: memref<1x72xf32, #tpu.memory_space<vmem>>, %arg5: memref<1x1x8x72xf32, #tpu.memory_space<vmem>>, %arg6: memref<1x1x1x1xf32, #tpu.memory_space<vmem>>, %arg7: memref<1x1x1x1xf32, #tpu.memory_space<vmem>>) attributes {dimension_semantics = [#tpu.dimension_semantics<parallel>, #tpu.dimension_semantics<parallel>], iteration_bounds = array<i64: 2, 4>, scalar_prefetch = 0 : i64, scratch_operands = 0 : i64, tpu.core_type = #tpu.core_type<tc>, window_params = [{transform_indices = @transform_0, window_bounds = array<i64: 1, 1, 8, 9, 90>}, {transform_indices = @transform_1, window_bounds = array<i64: 4, 27>}, {pipeline_mode = #tpu.pipeline_mode<synchronous>, transform_indices = @transform_2, window_bounds = array<i64: 1, 72>}, {transform_indices = @transform_3, window_bounds = array<i64: 1, 1, 8, 72>}, {transform_indices = @transform_4, window_bounds = array<i64: 1, 1, 1, 1>}, {transform_indices = @transform_5, window_bounds = array<i64: 1, 1, 1, 1>}]} {
    %0 = arith.index_cast %arg1 : i32 to index
    %c0 = arith.constant 0 : index
    %1 = memref.load %arg3[%0, %c0] : memref<4x27xf32, #tpu.memory_space<smem>>
    %2 = arith.index_cast %arg1 : i32 to index
    %c1 = arith.constant 1 : index
    %3 = memref.load %arg3[%2, %c1] : memref<4x27xf32, #tpu.memory_space<smem>>
    %4 = arith.index_cast %arg1 : i32 to index
    %c2 = arith.constant 2 : index
    %5 = memref.load %arg3[%4, %c2] : memref<4x27xf32, #tpu.memory_space<smem>>
    %6 = arith.index_cast %arg1 : i32 to index
    %c3 = arith.constant 3 : index
    %7 = memref.load %arg3[%6, %c3] : memref<4x27xf32, #tpu.memory_space<smem>>
    %8 = arith.index_cast %arg1 : i32 to index
    %c4 = arith.constant 4 : index
    %9 = memref.load %arg3[%8, %c4] : memref<4x27xf32, #tpu.memory_space<smem>>
    %10 = arith.index_cast %arg1 : i32 to index
    %c5 = arith.constant 5 : index
    %11 = memref.load %arg3[%10, %c5] : memref<4x27xf32, #tpu.memory_space<smem>>
    %12 = arith.index_cast %arg1 : i32 to index
    %c6 = arith.constant 6 : index
    %13 = memref.load %arg3[%12, %c6] : memref<4x27xf32, #tpu.memory_space<smem>>
    %14 = arith.index_cast %arg1 : i32 to index
    %c7 = arith.constant 7 : index
    %15 = memref.load %arg3[%14, %c7] : memref<4x27xf32, #tpu.memory_space<smem>>
    %16 = arith.index_cast %arg1 : i32 to index
    %c8 = arith.constant 8 : index
    %17 = memref.load %arg3[%16, %c8] : memref<4x27xf32, #tpu.memory_space<smem>>
    %18 = arith.index_cast %arg1 : i32 to index
    %c9 = arith.constant 9 : index
    %19 = memref.load %arg3[%18, %c9] : memref<4x27xf32, #tpu.memory_space<smem>>
    %20 = arith.index_cast %arg1 : i32 to index
    %c10 = arith.constant 10 : index
    %21 = memref.load %arg3[%20, %c10] : memref<4x27xf32, #tpu.memory_space<smem>>
    %22 = arith.index_cast %arg1 : i32 to index
    %c11 = arith.constant 11 : index
    %23 = memref.load %arg3[%22, %c11] : memref<4x27xf32, #tpu.memory_space<smem>>
    %24 = arith.index_cast %arg1 : i32 to index
    %c12 = arith.constant 12 : index
    %25 = memref.load %arg3[%24, %c12] : memref<4x27xf32, #tpu.memory_space<smem>>
    %26 = arith.index_cast %arg1 : i32 to index
    %c13 = arith.constant 13 : index
    %27 = memref.load %arg3[%26, %c13] : memref<4x27xf32, #tpu.memory_space<smem>>
    %28 = arith.index_cast %arg1 : i32 to index
    %c14 = arith.constant 14 : index
    %29 = memref.load %arg3[%28, %c14] : memref<4x27xf32, #tpu.memory_space<smem>>
    %30 = arith.index_cast %arg1 : i32 to index
    %c15 = arith.constant 15 : index
    %31 = memref.load %arg3[%30, %c15] : memref<4x27xf32, #tpu.memory_space<smem>>
    %32 = arith.index_cast %arg1 : i32 to index
    %c16 = arith.constant 16 : index
    %33 = memref.load %arg3[%32, %c16] : memref<4x27xf32, #tpu.memory_space<smem>>
    %34 = arith.index_cast %arg1 : i32 to index
    %c17 = arith.constant 17 : index
    %35 = memref.load %arg3[%34, %c17] : memref<4x27xf32, #tpu.memory_space<smem>>
    %36 = arith.index_cast %arg1 : i32 to index
    %c18 = arith.constant 18 : index
    %37 = memref.load %arg3[%36, %c18] : memref<4x27xf32, #tpu.memory_space<smem>>
    %38 = arith.index_cast %arg1 : i32 to index
    %c19 = arith.constant 19 : index
    %39 = memref.load %arg3[%38, %c19] : memref<4x27xf32, #tpu.memory_space<smem>>
    %40 = arith.index_cast %arg1 : i32 to index
    %c20 = arith.constant 20 : index
    %41 = memref.load %arg3[%40, %c20] : memref<4x27xf32, #tpu.memory_space<smem>>
    %42 = arith.index_cast %arg1 : i32 to index
    %c21 = arith.constant 21 : index
    %43 = memref.load %arg3[%42, %c21] : memref<4x27xf32, #tpu.memory_space<smem>>
    %44 = arith.index_cast %arg1 : i32 to index
    %c22 = arith.constant 22 : index
    %45 = memref.load %arg3[%44, %c22] : memref<4x27xf32, #tpu.memory_space<smem>>
    %46 = arith.index_cast %arg1 : i32 to index
    %c23 = arith.constant 23 : index
    %47 = memref.load %arg3[%46, %c23] : memref<4x27xf32, #tpu.memory_space<smem>>
    %48 = arith.index_cast %arg1 : i32 to index
    %c24 = arith.constant 24 : index
    %49 = memref.load %arg3[%48, %c24] : memref<4x27xf32, #tpu.memory_space<smem>>
    %50 = arith.index_cast %arg1 : i32 to index
    %c25 = arith.constant 25 : index
    %51 = memref.load %arg3[%50, %c25] : memref<4x27xf32, #tpu.memory_space<smem>>
    %52 = arith.index_cast %arg1 : i32 to index
    %c26 = arith.constant 26 : index
    %53 = memref.load %arg3[%52, %c26] : memref<4x27xf32, #tpu.memory_space<smem>>
    %cst = arith.constant 0.000000e+00 : f32
    %54 = vector.broadcast %cst : f32 to vector<1x1xf32>
    %cst_0 = arith.constant 0.000000e+00 : f32
    %55 = vector.broadcast %cst_0 : f32 to vector<1x1xf32>
    %cst_1 = arith.constant 0.000000e+00 : f32
    %56 = vector.broadcast %cst_1 : f32 to vector<8x72xf32>
    %c0_2 = arith.constant 0 : index
    %c0_3 = arith.constant 0 : index
    %c0_4 = arith.constant 0 : index
    %c0_5 = arith.constant 0 : index
    %c0_6 = arith.constant 0 : index
    %57 = vector.load %arg2[%c0_2, %c0_3, %c0_4, %c0_5, %c0_6] : memref<1x1x8x9x90xf32, #tpu.memory_space<vmem>>, vector<1x1x1x8x72xf32>
    %58 = vector.shape_cast %57 : vector<1x1x1x8x72xf32> to vector<8x72xf32>
    %59 = vector.broadcast %1 : f32 to vector<8x72xf32>
    %60 = arith.mulf %58, %59 : vector<8x72xf32>
    %61 = arith.addf %56, %60 : vector<8x72xf32>
    %c0_7 = arith.constant 0 : index
    %c0_8 = arith.constant 0 : index
    %c1_9 = arith.constant 1 : index
    %c0_10 = arith.constant 0 : index
    %c0_11 = arith.constant 0 : index
    %62 = vector.load %arg2[%c0_7, %c0_8, %c1_9, %c0_10, %c0_11] : memref<1x1x8x9x90xf32, #tpu.memory_space<vmem>>, vector<1x1x1x8x72xf32>
    %63 = vector.shape_cast %62 : vector<1x1x1x8x72xf32> to vector<8x72xf32>
    %64 = vector.broadcast %3 : f32 to vector<8x72xf32>
    %65 = arith.mulf %63, %64 : vector<8x72xf32>
    %66 = arith.addf %61, %65 : vector<8x72xf32>
    %c0_12 = arith.constant 0 : index
    %c0_13 = arith.constant 0 : index
    %c0_14 = arith.constant 0 : index
    %c0_15 = arith.constant 0 : index
    %c1_16 = arith.constant 1 : index
    %67 = vector.load %arg2[%c0_12, %c0_13, %c0_14, %c0_15, %c1_16] : memref<1x1x8x9x90xf32, #tpu.memory_space<vmem>>, vector<1x1x1x8x72xf32>
    %68 = vector.shape_cast %67 : vector<1x1x1x8x72xf32> to vector<8x72xf32>
    %69 = vector.broadcast %5 : f32 to vector<8x72xf32>
    %70 = arith.mulf %68, %69 : vector<8x72xf32>
    %71 = arith.addf %66, %70 : vector<8x72xf32>
    %c0_17 = arith.constant 0 : index
    %c0_18 = arith.constant 0 : index
    %c2_19 = arith.constant 2 : index
    %c0_20 = arith.constant 0 : index
    %c0_21 = arith.constant 0 : index
    %72 = vector.load %arg2[%c0_17, %c0_18, %c2_19, %c0_20, %c0_21] : memref<1x1x8x9x90xf32, #tpu.memory_space<vmem>>, vector<1x1x1x8x72xf32>
    %73 = vector.shape_cast %72 : vector<1x1x1x8x72xf32> to vector<8x72xf32>
    %74 = vector.broadcast %7 : f32 to vector<8x72xf32>
    %75 = arith.mulf %73, %74 : vector<8x72xf32>
    %76 = arith.addf %71, %75 : vector<8x72xf32>
    %c0_22 = arith.constant 0 : index
    %c0_23 = arith.constant 0 : index
    %c3_24 = arith.constant 3 : index
    %c0_25 = arith.constant 0 : index
    %c0_26 = arith.constant 0 : index
    %77 = vector.load %arg2[%c0_22, %c0_23, %c3_24, %c0_25, %c0_26] : memref<1x1x8x9x90xf32, #tpu.memory_space<vmem>>, vector<1x1x1x8x72xf32>
    %78 = vector.shape_cast %77 : vector<1x1x1x8x72xf32> to vector<8x72xf32>
    %79 = vector.broadcast %9 : f32 to vector<8x72xf32>
    %80 = arith.mulf %78, %79 : vector<8x72xf32>
    %81 = arith.addf %76, %80 : vector<8x72xf32>
    %c0_27 = arith.constant 0 : index
    %c0_28 = arith.constant 0 : index
    %c2_29 = arith.constant 2 : index
    %c0_30 = arith.constant 0 : index
    %c1_31 = arith.constant 1 : index
    %82 = vector.load %arg2[%c0_27, %c0_28, %c2_29, %c0_30, %c1_31] : memref<1x1x8x9x90xf32, #tpu.memory_space<vmem>>, vector<1x1x1x8x72xf32>
    %83 = vector.shape_cast %82 : vector<1x1x1x8x72xf32> to vector<8x72xf32>
    %84 = vector.broadcast %11 : f32 to vector<8x72xf32>
    %85 = arith.mulf %83, %84 : vector<8x72xf32>
    %86 = arith.addf %81, %85 : vector<8x72xf32>
    %c0_32 = arith.constant 0 : index
    %c0_33 = arith.constant 0 : index
    %c0_34 = arith.constant 0 : index
    %c0_35 = arith.constant 0 : index
    %c9_36 = arith.constant 9 : index
    %87 = vector.load %arg2[%c0_32, %c0_33, %c0_34, %c0_35, %c9_36] : memref<1x1x8x9x90xf32, #tpu.memory_space<vmem>>, vector<1x1x1x8x72xf32>
    %88 = vector.shape_cast %87 : vector<1x1x1x8x72xf32> to vector<8x72xf32>
    %89 = vector.broadcast %13 : f32 to vector<8x72xf32>
    %90 = arith.mulf %88, %89 : vector<8x72xf32>
    %91 = arith.addf %86, %90 : vector<8x72xf32>
    %c0_37 = arith.constant 0 : index
    %c0_38 = arith.constant 0 : index
    %c1_39 = arith.constant 1 : index
    %c0_40 = arith.constant 0 : index
    %c9_41 = arith.constant 9 : index
    %92 = vector.load %arg2[%c0_37, %c0_38, %c1_39, %c0_40, %c9_41] : memref<1x1x8x9x90xf32, #tpu.memory_space<vmem>>, vector<1x1x1x8x72xf32>
    %93 = vector.shape_cast %92 : vector<1x1x1x8x72xf32> to vector<8x72xf32>
    %94 = vector.broadcast %15 : f32 to vector<8x72xf32>
    %95 = arith.mulf %93, %94 : vector<8x72xf32>
    %96 = arith.addf %91, %95 : vector<8x72xf32>
    %c0_42 = arith.constant 0 : index
    %c0_43 = arith.constant 0 : index
    %c0_44 = arith.constant 0 : index
    %c0_45 = arith.constant 0 : index
    %c10_46 = arith.constant 10 : index
    %97 = vector.load %arg2[%c0_42, %c0_43, %c0_44, %c0_45, %c10_46] : memref<1x1x8x9x90xf32, #tpu.memory_space<vmem>>, vector<1x1x1x8x72xf32>
    %98 = vector.shape_cast %97 : vector<1x1x1x8x72xf32> to vector<8x72xf32>
    %99 = vector.broadcast %17 : f32 to vector<8x72xf32>
    %100 = arith.mulf %98, %99 : vector<8x72xf32>
    %101 = arith.addf %96, %100 : vector<8x72xf32>
    %c0_47 = arith.constant 0 : index
    %c0_48 = arith.constant 0 : index
    %c4_49 = arith.constant 4 : index
    %c0_50 = arith.constant 0 : index
    %c0_51 = arith.constant 0 : index
    %102 = vector.load %arg2[%c0_47, %c0_48, %c4_49, %c0_50, %c0_51] : memref<1x1x8x9x90xf32, #tpu.memory_space<vmem>>, vector<1x1x1x8x72xf32>
    %103 = vector.shape_cast %102 : vector<1x1x1x8x72xf32> to vector<8x72xf32>
    %104 = vector.broadcast %19 : f32 to vector<8x72xf32>
    %105 = arith.mulf %103, %104 : vector<8x72xf32>
    %106 = arith.addf %101, %105 : vector<8x72xf32>
    %c0_52 = arith.constant 0 : index
    %c0_53 = arith.constant 0 : index
    %c5_54 = arith.constant 5 : index
    %c0_55 = arith.constant 0 : index
    %c0_56 = arith.constant 0 : index
    %107 = vector.load %arg2[%c0_52, %c0_53, %c5_54, %c0_55, %c0_56] : memref<1x1x8x9x90xf32, #tpu.memory_space<vmem>>, vector<1x1x1x8x72xf32>
    %108 = vector.shape_cast %107 : vector<1x1x1x8x72xf32> to vector<8x72xf32>
    %109 = vector.broadcast %21 : f32 to vector<8x72xf32>
    %110 = arith.mulf %108, %109 : vector<8x72xf32>
    %111 = arith.addf %106, %110 : vector<8x72xf32>
    %c0_57 = arith.constant 0 : index
    %c0_58 = arith.constant 0 : index
    %c4_59 = arith.constant 4 : index
    %c0_60 = arith.constant 0 : index
    %c1_61 = arith.constant 1 : index
    %112 = vector.load %arg2[%c0_57, %c0_58, %c4_59, %c0_60, %c1_61] : memref<1x1x8x9x90xf32, #tpu.memory_space<vmem>>, vector<1x1x1x8x72xf32>
    %113 = vector.shape_cast %112 : vector<1x1x1x8x72xf32> to vector<8x72xf32>
    %114 = vector.broadcast %23 : f32 to vector<8x72xf32>
    %115 = arith.mulf %113, %114 : vector<8x72xf32>
    %116 = arith.addf %111, %115 : vector<8x72xf32>
    %c0_62 = arith.constant 0 : index
    %c0_63 = arith.constant 0 : index
    %c6_64 = arith.constant 6 : index
    %c0_65 = arith.constant 0 : index
    %c0_66 = arith.constant 0 : index
    %117 = vector.load %arg2[%c0_62, %c0_63, %c6_64, %c0_65, %c0_66] : memref<1x1x8x9x90xf32, #tpu.memory_space<vmem>>, vector<1x1x1x8x72xf32>
    %118 = vector.shape_cast %117 : vector<1x1x1x8x72xf32> to vector<8x72xf32>
    %119 = vector.broadcast %25 : f32 to vector<8x72xf32>
    %120 = arith.mulf %118, %119 : vector<8x72xf32>
    %121 = arith.addf %116, %120 : vector<8x72xf32>
    %c0_67 = arith.constant 0 : index
    %c0_68 = arith.constant 0 : index
    %c7_69 = arith.constant 7 : index
    %c0_70 = arith.constant 0 : index
    %c0_71 = arith.constant 0 : index
    %122 = vector.load %arg2[%c0_67, %c0_68, %c7_69, %c0_70, %c0_71] : memref<1x1x8x9x90xf32, #tpu.memory_space<vmem>>, vector<1x1x1x8x72xf32>
    %123 = vector.shape_cast %122 : vector<1x1x1x8x72xf32> to vector<8x72xf32>
    %124 = vector.broadcast %27 : f32 to vector<8x72xf32>
    %125 = arith.mulf %123, %124 : vector<8x72xf32>
    %126 = arith.addf %121, %125 : vector<8x72xf32>
    %c0_72 = arith.constant 0 : index
    %c0_73 = arith.constant 0 : index
    %c6_74 = arith.constant 6 : index
    %c0_75 = arith.constant 0 : index
    %c1_76 = arith.constant 1 : index
    %127 = vector.load %arg2[%c0_72, %c0_73, %c6_74, %c0_75, %c1_76] : memref<1x1x8x9x90xf32, #tpu.memory_space<vmem>>, vector<1x1x1x8x72xf32>
    %128 = vector.shape_cast %127 : vector<1x1x1x8x72xf32> to vector<8x72xf32>
    %129 = vector.broadcast %29 : f32 to vector<8x72xf32>
    %130 = arith.mulf %128, %129 : vector<8x72xf32>
    %131 = arith.addf %126, %130 : vector<8x72xf32>
    %c0_77 = arith.constant 0 : index
    %c0_78 = arith.constant 0 : index
    %c4_79 = arith.constant 4 : index
    %c0_80 = arith.constant 0 : index
    %c9_81 = arith.constant 9 : index
    %132 = vector.load %arg2[%c0_77, %c0_78, %c4_79, %c0_80, %c9_81] : memref<1x1x8x9x90xf32, #tpu.memory_space<vmem>>, vector<1x1x1x8x72xf32>
    %133 = vector.shape_cast %132 : vector<1x1x1x8x72xf32> to vector<8x72xf32>
    %134 = vector.broadcast %31 : f32 to vector<8x72xf32>
    %135 = arith.mulf %133, %134 : vector<8x72xf32>
    %136 = arith.addf %131, %135 : vector<8x72xf32>
    %c0_82 = arith.constant 0 : index
    %c0_83 = arith.constant 0 : index
    %c5_84 = arith.constant 5 : index
    %c0_85 = arith.constant 0 : index
    %c9_86 = arith.constant 9 : index
    %137 = vector.load %arg2[%c0_82, %c0_83, %c5_84, %c0_85, %c9_86] : memref<1x1x8x9x90xf32, #tpu.memory_space<vmem>>, vector<1x1x1x8x72xf32>
    %138 = vector.shape_cast %137 : vector<1x1x1x8x72xf32> to vector<8x72xf32>
    %139 = vector.broadcast %33 : f32 to vector<8x72xf32>
    %140 = arith.mulf %138, %139 : vector<8x72xf32>
    %141 = arith.addf %136, %140 : vector<8x72xf32>
    %c0_87 = arith.constant 0 : index
    %c0_88 = arith.constant 0 : index
    %c4_89 = arith.constant 4 : index
    %c0_90 = arith.constant 0 : index
    %c10_91 = arith.constant 10 : index
    %142 = vector.load %arg2[%c0_87, %c0_88, %c4_89, %c0_90, %c10_91] : memref<1x1x8x9x90xf32, #tpu.memory_space<vmem>>, vector<1x1x1x8x72xf32>
    %143 = vector.shape_cast %142 : vector<1x1x1x8x72xf32> to vector<8x72xf32>
    %144 = vector.broadcast %35 : f32 to vector<8x72xf32>
    %145 = arith.mulf %143, %144 : vector<8x72xf32>
    %146 = arith.addf %141, %145 : vector<8x72xf32>
    %c0_92 = arith.constant 0 : index
    %c0_93 = arith.constant 0 : index
    %c0_94 = arith.constant 0 : index
    %c1_95 = arith.constant 1 : index
    %c0_96 = arith.constant 0 : index
    %147 = vector.load %arg2[%c0_92, %c0_93, %c0_94, %c1_95, %c0_96] : memref<1x1x8x9x90xf32, #tpu.memory_space<vmem>>, vector<1x1x1x8x72xf32>
    %148 = vector.shape_cast %147 : vector<1x1x1x8x72xf32> to vector<8x72xf32>
    %149 = vector.broadcast %37 : f32 to vector<8x72xf32>
    %150 = arith.mulf %148, %149 : vector<8x72xf32>
    %151 = arith.addf %146, %150 : vector<8x72xf32>
    %c0_97 = arith.constant 0 : index
    %c0_98 = arith.constant 0 : index
    %c1_99 = arith.constant 1 : index
    %c1_100 = arith.constant 1 : index
    %c0_101 = arith.constant 0 : index
    %152 = vector.load %arg2[%c0_97, %c0_98, %c1_99, %c1_100, %c0_101] : memref<1x1x8x9x90xf32, #tpu.memory_space<vmem>>, vector<1x1x1x8x72xf32>
    %153 = vector.shape_cast %152 : vector<1x1x1x8x72xf32> to vector<8x72xf32>
    %154 = vector.broadcast %39 : f32 to vector<8x72xf32>
    %155 = arith.mulf %153, %154 : vector<8x72xf32>
    %156 = arith.addf %151, %155 : vector<8x72xf32>
    %c0_102 = arith.constant 0 : index
    %c0_103 = arith.constant 0 : index
    %c0_104 = arith.constant 0 : index
    %c1_105 = arith.constant 1 : index
    %c1_106 = arith.constant 1 : index
    %157 = vector.load %arg2[%c0_102, %c0_103, %c0_104, %c1_105, %c1_106] : memref<1x1x8x9x90xf32, #tpu.memory_space<vmem>>, vector<1x1x1x8x72xf32>
    %158 = vector.shape_cast %157 : vector<1x1x1x8x72xf32> to vector<8x72xf32>
    %159 = vector.broadcast %41 : f32 to vector<8x72xf32>
    %160 = arith.mulf %158, %159 : vector<8x72xf32>
    %161 = arith.addf %156, %160 : vector<8x72xf32>
    %c0_107 = arith.constant 0 : index
    %c0_108 = arith.constant 0 : index
    %c2_109 = arith.constant 2 : index
    %c1_110 = arith.constant 1 : index
    %c0_111 = arith.constant 0 : index
    %162 = vector.load %arg2[%c0_107, %c0_108, %c2_109, %c1_110, %c0_111] : memref<1x1x8x9x90xf32, #tpu.memory_space<vmem>>, vector<1x1x1x8x72xf32>
    %163 = vector.shape_cast %162 : vector<1x1x1x8x72xf32> to vector<8x72xf32>
    %164 = vector.broadcast %43 : f32 to vector<8x72xf32>
    %165 = arith.mulf %163, %164 : vector<8x72xf32>
    %166 = arith.addf %161, %165 : vector<8x72xf32>
    %c0_112 = arith.constant 0 : index
    %c0_113 = arith.constant 0 : index
    %c3_114 = arith.constant 3 : index
    %c1_115 = arith.constant 1 : index
    %c0_116 = arith.constant 0 : index
    %167 = vector.load %arg2[%c0_112, %c0_113, %c3_114, %c1_115, %c0_116] : memref<1x1x8x9x90xf32, #tpu.memory_space<vmem>>, vector<1x1x1x8x72xf32>
    %168 = vector.shape_cast %167 : vector<1x1x1x8x72xf32> to vector<8x72xf32>
    %169 = vector.broadcast %45 : f32 to vector<8x72xf32>
    %170 = arith.mulf %168, %169 : vector<8x72xf32>
    %171 = arith.addf %166, %170 : vector<8x72xf32>
    %c0_117 = arith.constant 0 : index
    %c0_118 = arith.constant 0 : index
    %c2_119 = arith.constant 2 : index
    %c1_120 = arith.constant 1 : index
    %c1_121 = arith.constant 1 : index
    %172 = vector.load %arg2[%c0_117, %c0_118, %c2_119, %c1_120, %c1_121] : memref<1x1x8x9x90xf32, #tpu.memory_space<vmem>>, vector<1x1x1x8x72xf32>
    %173 = vector.shape_cast %172 : vector<1x1x1x8x72xf32> to vector<8x72xf32>
    %174 = vector.broadcast %47 : f32 to vector<8x72xf32>
    %175 = arith.mulf %173, %174 : vector<8x72xf32>
    %176 = arith.addf %171, %175 : vector<8x72xf32>
    %c0_122 = arith.constant 0 : index
    %c0_123 = arith.constant 0 : index
    %c0_124 = arith.constant 0 : index
    %c1_125 = arith.constant 1 : index
    %c9_126 = arith.constant 9 : index
    %177 = vector.load %arg2[%c0_122, %c0_123, %c0_124, %c1_125, %c9_126] : memref<1x1x8x9x90xf32, #tpu.memory_space<vmem>>, vector<1x1x1x8x72xf32>
    %178 = vector.shape_cast %177 : vector<1x1x1x8x72xf32> to vector<8x72xf32>
    %179 = vector.broadcast %49 : f32 to vector<8x72xf32>
    %180 = arith.mulf %178, %179 : vector<8x72xf32>
    %181 = arith.addf %176, %180 : vector<8x72xf32>
    %c0_127 = arith.constant 0 : index
    %c0_128 = arith.constant 0 : index
    %c1_129 = arith.constant 1 : index
    %c1_130 = arith.constant 1 : index
    %c9_131 = arith.constant 9 : index
    %182 = vector.load %arg2[%c0_127, %c0_128, %c1_129, %c1_130, %c9_131] : memref<1x1x8x9x90xf32, #tpu.memory_space<vmem>>, vector<1x1x1x8x72xf32>
    %183 = vector.shape_cast %182 : vector<1x1x1x8x72xf32> to vector<8x72xf32>
    %184 = vector.broadcast %51 : f32 to vector<8x72xf32>
    %185 = arith.mulf %183, %184 : vector<8x72xf32>
    %186 = arith.addf %181, %185 : vector<8x72xf32>
    %c0_132 = arith.constant 0 : index
    %c0_133 = arith.constant 0 : index
    %c0_134 = arith.constant 0 : index
    %c1_135 = arith.constant 1 : index
    %c10_136 = arith.constant 10 : index
    %187 = vector.load %arg2[%c0_132, %c0_133, %c0_134, %c1_135, %c10_136] : memref<1x1x8x9x90xf32, #tpu.memory_space<vmem>>, vector<1x1x1x8x72xf32>
    %188 = vector.shape_cast %187 : vector<1x1x1x8x72xf32> to vector<8x72xf32>
    %189 = vector.broadcast %53 : f32 to vector<8x72xf32>
    %190 = arith.mulf %188, %189 : vector<8x72xf32>
    %191 = arith.addf %186, %190 : vector<8x72xf32>
    %c0_137 = arith.constant 0 : index
    %c0_138 = arith.constant 0 : index
    %c0_139 = arith.constant 0 : index
    %c0_140 = arith.constant 0 : index
    %192 = vector.load %arg5[%c0_137, %c0_138, %c0_139, %c0_140] : memref<1x1x8x72xf32, #tpu.memory_space<vmem>>, vector<1x1x8x72xf32>
    %193 = vector.shape_cast %192 : vector<1x1x8x72xf32> to vector<8x72xf32>
    %194 = vector.shape_cast %191 : vector<8x72xf32> to vector<1x1x8x72xf32>
    tpu.vector_store %arg5[%c0_137, %c0_138, %c0_139, %c0_140], %194 {strides = array<i32>} : memref<1x1x8x72xf32, #tpu.memory_space<vmem>>, vector<1x1x8x72xf32>,
    %c0_141 = arith.constant 0 : index
    %c0_142 = arith.constant 0 : index
    %195 = vector.load %arg4[%c0_141, %c0_142] : memref<1x72xf32, #tpu.memory_space<vmem>>, vector<1x72xf32>
    %196 = vector.broadcast %195 : vector<1x72xf32> to vector<8x72xf32>
    %197 = arith.mulf %191, %196 : vector<8x72xf32>
    %cst_143 = arith.constant dense<0.000000e+00> : vector<8xf32>
    %198 = vector.multi_reduction <add>, %197, %cst_143 [1] : vector<8x72xf32> to vector<8xf32>
    %199 = vector.shape_cast %198 : vector<8xf32> to vector<8x1xf32>
    %cst_144 = arith.constant dense<0.000000e+00> : vector<1xf32>
    %200 = vector.multi_reduction <add>, %199, %cst_144 [0] : vector<8x1xf32> to vector<1xf32>
    %201 = vector.shape_cast %200 : vector<1xf32> to vector<1x1xf32>
    %202 = arith.addf %54, %201 : vector<1x1xf32>
    %203 = arith.mulf %197, %191 : vector<8x72xf32>
    %cst_145 = arith.constant dense<0.000000e+00> : vector<8xf32>
    %204 = vector.multi_reduction <add>, %203, %cst_145 [1] : vector<8x72xf32> to vector<8xf32>
    %205 = vector.shape_cast %204 : vector<8xf32> to vector<8x1xf32>
    %cst_146 = arith.constant dense<0.000000e+00> : vector<1xf32>
    %206 = vector.multi_reduction <add>, %205, %cst_146 [0] : vector<8x1xf32> to vector<1xf32>
    %207 = vector.shape_cast %206 : vector<1xf32> to vector<1x1xf32>
    %208 = arith.addf %55, %207 : vector<1x1xf32>
    %c0_147 = arith.constant 0 : index
    %c0_148 = arith.constant 0 : index
    %c0_149 = arith.constant 0 : index
    %c0_150 = arith.constant 0 : index
    %209 = vector.load %arg6[%c0_147, %c0_148, %c0_149, %c0_150] : memref<1x1x1x1xf32, #tpu.memory_space<vmem>>, vector<1x1x1x1xf32>
    %210 = vector.shape_cast %209 : vector<1x1x1x1xf32> to vector<1x1xf32>
    %211 = vector.shape_cast %202 : vector<1x1xf32> to vector<1x1x1x1xf32>
    tpu.vector_store %arg6[%c0_147, %c0_148, %c0_149, %c0_150], %211 {strides = array<i32>} : memref<1x1x1x1xf32, #tpu.memory_space<vmem>>, vector<1x1x1x1xf32>,
    %c0_151 = arith.constant 0 : index
    %c0_152 = arith.constant 0 : index
    %c0_153 = arith.constant 0 : index
    %c0_154 = arith.constant 0 : index
    %212 = vector.load %arg7[%c0_151, %c0_152, %c0_153, %c0_154] : memref<1x1x1x1xf32, #tpu.memory_space<vmem>>, vector<1x1x1x1xf32>
    %213 = vector.shape_cast %212 : vector<1x1x1x1xf32> to vector<1x1xf32>
    %214 = vector.shape_cast %208 : vector<1x1xf32> to vector<1x1x1x1xf32>
    tpu.vector_store %arg7[%c0_151, %c0_152, %c0_153, %c0_154], %214 {strides = array<i32>} : memref<1x1x1x1xf32, #tpu.memory_space<vmem>>, vector<1x1x1x1xf32>,
    return
  }
  func.func @transform_0(%arg0: i32, %arg1: i32) -> (i32, i32, i32, i32, i32) {
    %c0_i32 = arith.constant 0 : i32
    %c0_i32_0 = arith.constant 0 : i32
    %c0_i32_1 = arith.constant 0 : i32
    %c0_i32_2 = arith.constant 0 : i32
    return %arg0, %arg1, %c0_i32, %c0_i32_0, %c0_i32_1 : i32, i32, i32, i32, i32
  }
  func.func @transform_1(%arg0: i32, %arg1: i32) -> (i32, i32) {
    %c0_i32 = arith.constant 0 : i32
    %c0_i32_0 = arith.constant 0 : i32
    %c0_i32_1 = arith.constant 0 : i32
    return %c0_i32, %c0_i32_0 : i32, i32
  }
  func.func @transform_2(%arg0: i32, %arg1: i32) -> (i32, i32) {
    %c0_i32 = arith.constant 0 : i32
    %c0_i32_0 = arith.constant 0 : i32
    %c0_i32_1 = arith.constant 0 : i32
    return %c0_i32, %c0_i32_0 : i32, i32
  }
  func.func @transform_3(%arg0: i32, %arg1: i32) -> (i32, i32, i32, i32) {
    %c0_i32 = arith.constant 0 : i32
    %c0_i32_0 = arith.constant 0 : i32
    %c0_i32_1 = arith.constant 0 : i32
    return %arg0, %arg1, %c0_i32, %c0_i32_0 : i32, i32, i32, i32
  }
  func.func @transform_4(%arg0: i32, %arg1: i32) -> (i32, i32, i32, i32) {
    %c0_i32 = arith.constant 0 : i32
    %c0_i32_0 = arith.constant 0 : i32
    %c0_i32_1 = arith.constant 0 : i32
    return %arg0, %arg1, %c0_i32, %c0_i32_0 : i32, i32, i32, i32
  }
  func.func @transform_5(%arg0: i32, %arg1: i32) -> (i32, i32, i32, i32) {
    %c0_i32 = arith.constant 0 : i32
    %c0_i32_0 = arith.constant 0 : i32
    %c0_i32_1 = arith.constant 0 : i32
    return %arg0, %arg1, %c0_i32, %c0_i32_0 : i32, i32, i32, i32
  }
}

module attributes {stable_mosaic.version = 11 : i64} {
  func.func @_mlp_kernel(%arg0: i32, %arg1: i32, %arg2: memref<1x4x8x72xf32, #tpu.memory_space<vmem>>, %arg3: memref<1x4x8x90xf32, #tpu.memory_space<vmem>>, %arg4: memref<2x4xf32, #tpu.memory_space<smem>>, %arg5: memref<2x4xf32, #tpu.memory_space<smem>>, %arg6: memref<16x4xf32, #tpu.memory_space<smem>>, %arg7: memref<16xf32, #tpu.memory_space<smem>>, %arg8: memref<8x16xf32, #tpu.memory_space<smem>>, %arg9: memref<8xf32, #tpu.memory_space<smem>>, %arg10: memref<8x4xf32, #tpu.memory_space<smem>>, %arg11: memref<1x8x8x72xf32, #tpu.memory_space<vmem>>) attributes {dimension_semantics = [#tpu.dimension_semantics<parallel>, #tpu.dimension_semantics<parallel>], iteration_bounds = array<i64: 2, 1>, scalar_prefetch = 0 : i64, scratch_operands = 0 : i64, tpu.core_type = #tpu.core_type<tc>, window_params = [{transform_indices = @transform_0, window_bounds = array<i64: 1, 4, 8, 72>}, {transform_indices = @transform_1, window_bounds = array<i64: 1, 4, 8, 90>}, {transform_indices = @transform_2, window_bounds = array<i64: 2, 4>}, {transform_indices = @transform_3, window_bounds = array<i64: 2, 4>}, {transform_indices = @transform_4, window_bounds = array<i64: 16, 4>}, {transform_indices = @transform_5, window_bounds = array<i64: 16>}, {transform_indices = @transform_6, window_bounds = array<i64: 8, 16>}, {transform_indices = @transform_7, window_bounds = array<i64: 8>}, {transform_indices = @transform_8, window_bounds = array<i64: 8, 4>}, {transform_indices = @transform_9, window_bounds = array<i64: 1, 8, 8, 72>}]} {
    %0 = arith.index_cast %arg0 : i32 to index
    %c0 = arith.constant 0 : index
    %1 = memref.load %arg4[%0, %c0] : memref<2x4xf32, #tpu.memory_space<smem>>
    %2 = arith.index_cast %arg0 : i32 to index
    %c1 = arith.constant 1 : index
    %3 = memref.load %arg4[%2, %c1] : memref<2x4xf32, #tpu.memory_space<smem>>
    %4 = arith.index_cast %arg0 : i32 to index
    %c2 = arith.constant 2 : index
    %5 = memref.load %arg4[%4, %c2] : memref<2x4xf32, #tpu.memory_space<smem>>
    %6 = arith.index_cast %arg0 : i32 to index
    %c3 = arith.constant 3 : index
    %7 = memref.load %arg4[%6, %c3] : memref<2x4xf32, #tpu.memory_space<smem>>
    %8 = arith.index_cast %arg0 : i32 to index
    %c0_0 = arith.constant 0 : index
    %9 = memref.load %arg5[%8, %c0_0] : memref<2x4xf32, #tpu.memory_space<smem>>
    %10 = arith.index_cast %arg0 : i32 to index
    %c1_1 = arith.constant 1 : index
    %11 = memref.load %arg5[%10, %c1_1] : memref<2x4xf32, #tpu.memory_space<smem>>
    %12 = arith.index_cast %arg0 : i32 to index
    %c2_2 = arith.constant 2 : index
    %13 = memref.load %arg5[%12, %c2_2] : memref<2x4xf32, #tpu.memory_space<smem>>
    %14 = arith.index_cast %arg0 : i32 to index
    %c3_3 = arith.constant 3 : index
    %15 = memref.load %arg5[%14, %c3_3] : memref<2x4xf32, #tpu.memory_space<smem>>
    %c0_4 = arith.constant 0 : index
    %c0_5 = arith.constant 0 : index
    %16 = memref.load %arg6[%c0_4, %c0_5] : memref<16x4xf32, #tpu.memory_space<smem>>
    %c0_6 = arith.constant 0 : index
    %c1_7 = arith.constant 1 : index
    %17 = memref.load %arg6[%c0_6, %c1_7] : memref<16x4xf32, #tpu.memory_space<smem>>
    %c0_8 = arith.constant 0 : index
    %c2_9 = arith.constant 2 : index
    %18 = memref.load %arg6[%c0_8, %c2_9] : memref<16x4xf32, #tpu.memory_space<smem>>
    %c0_10 = arith.constant 0 : index
    %c3_11 = arith.constant 3 : index
    %19 = memref.load %arg6[%c0_10, %c3_11] : memref<16x4xf32, #tpu.memory_space<smem>>
    %c1_12 = arith.constant 1 : index
    %c0_13 = arith.constant 0 : index
    %20 = memref.load %arg6[%c1_12, %c0_13] : memref<16x4xf32, #tpu.memory_space<smem>>
    %c1_14 = arith.constant 1 : index
    %c1_15 = arith.constant 1 : index
    %21 = memref.load %arg6[%c1_14, %c1_15] : memref<16x4xf32, #tpu.memory_space<smem>>
    %c1_16 = arith.constant 1 : index
    %c2_17 = arith.constant 2 : index
    %22 = memref.load %arg6[%c1_16, %c2_17] : memref<16x4xf32, #tpu.memory_space<smem>>
    %c1_18 = arith.constant 1 : index
    %c3_19 = arith.constant 3 : index
    %23 = memref.load %arg6[%c1_18, %c3_19] : memref<16x4xf32, #tpu.memory_space<smem>>
    %c2_20 = arith.constant 2 : index
    %c0_21 = arith.constant 0 : index
    %24 = memref.load %arg6[%c2_20, %c0_21] : memref<16x4xf32, #tpu.memory_space<smem>>
    %c2_22 = arith.constant 2 : index
    %c1_23 = arith.constant 1 : index
    %25 = memref.load %arg6[%c2_22, %c1_23] : memref<16x4xf32, #tpu.memory_space<smem>>
    %c2_24 = arith.constant 2 : index
    %c2_25 = arith.constant 2 : index
    %26 = memref.load %arg6[%c2_24, %c2_25] : memref<16x4xf32, #tpu.memory_space<smem>>
    %c2_26 = arith.constant 2 : index
    %c3_27 = arith.constant 3 : index
    %27 = memref.load %arg6[%c2_26, %c3_27] : memref<16x4xf32, #tpu.memory_space<smem>>
    %c3_28 = arith.constant 3 : index
    %c0_29 = arith.constant 0 : index
    %28 = memref.load %arg6[%c3_28, %c0_29] : memref<16x4xf32, #tpu.memory_space<smem>>
    %c3_30 = arith.constant 3 : index
    %c1_31 = arith.constant 1 : index
    %29 = memref.load %arg6[%c3_30, %c1_31] : memref<16x4xf32, #tpu.memory_space<smem>>
    %c3_32 = arith.constant 3 : index
    %c2_33 = arith.constant 2 : index
    %30 = memref.load %arg6[%c3_32, %c2_33] : memref<16x4xf32, #tpu.memory_space<smem>>
    %c3_34 = arith.constant 3 : index
    %c3_35 = arith.constant 3 : index
    %31 = memref.load %arg6[%c3_34, %c3_35] : memref<16x4xf32, #tpu.memory_space<smem>>
    %c4 = arith.constant 4 : index
    %c0_36 = arith.constant 0 : index
    %32 = memref.load %arg6[%c4, %c0_36] : memref<16x4xf32, #tpu.memory_space<smem>>
    %c4_37 = arith.constant 4 : index
    %c1_38 = arith.constant 1 : index
    %33 = memref.load %arg6[%c4_37, %c1_38] : memref<16x4xf32, #tpu.memory_space<smem>>
    %c4_39 = arith.constant 4 : index
    %c2_40 = arith.constant 2 : index
    %34 = memref.load %arg6[%c4_39, %c2_40] : memref<16x4xf32, #tpu.memory_space<smem>>
    %c4_41 = arith.constant 4 : index
    %c3_42 = arith.constant 3 : index
    %35 = memref.load %arg6[%c4_41, %c3_42] : memref<16x4xf32, #tpu.memory_space<smem>>
    %c5 = arith.constant 5 : index
    %c0_43 = arith.constant 0 : index
    %36 = memref.load %arg6[%c5, %c0_43] : memref<16x4xf32, #tpu.memory_space<smem>>
    %c5_44 = arith.constant 5 : index
    %c1_45 = arith.constant 1 : index
    %37 = memref.load %arg6[%c5_44, %c1_45] : memref<16x4xf32, #tpu.memory_space<smem>>
    %c5_46 = arith.constant 5 : index
    %c2_47 = arith.constant 2 : index
    %38 = memref.load %arg6[%c5_46, %c2_47] : memref<16x4xf32, #tpu.memory_space<smem>>
    %c5_48 = arith.constant 5 : index
    %c3_49 = arith.constant 3 : index
    %39 = memref.load %arg6[%c5_48, %c3_49] : memref<16x4xf32, #tpu.memory_space<smem>>
    %c6 = arith.constant 6 : index
    %c0_50 = arith.constant 0 : index
    %40 = memref.load %arg6[%c6, %c0_50] : memref<16x4xf32, #tpu.memory_space<smem>>
    %c6_51 = arith.constant 6 : index
    %c1_52 = arith.constant 1 : index
    %41 = memref.load %arg6[%c6_51, %c1_52] : memref<16x4xf32, #tpu.memory_space<smem>>
    %c6_53 = arith.constant 6 : index
    %c2_54 = arith.constant 2 : index
    %42 = memref.load %arg6[%c6_53, %c2_54] : memref<16x4xf32, #tpu.memory_space<smem>>
    %c6_55 = arith.constant 6 : index
    %c3_56 = arith.constant 3 : index
    %43 = memref.load %arg6[%c6_55, %c3_56] : memref<16x4xf32, #tpu.memory_space<smem>>
    %c7 = arith.constant 7 : index
    %c0_57 = arith.constant 0 : index
    %44 = memref.load %arg6[%c7, %c0_57] : memref<16x4xf32, #tpu.memory_space<smem>>
    %c7_58 = arith.constant 7 : index
    %c1_59 = arith.constant 1 : index
    %45 = memref.load %arg6[%c7_58, %c1_59] : memref<16x4xf32, #tpu.memory_space<smem>>
    %c7_60 = arith.constant 7 : index
    %c2_61 = arith.constant 2 : index
    %46 = memref.load %arg6[%c7_60, %c2_61] : memref<16x4xf32, #tpu.memory_space<smem>>
    %c7_62 = arith.constant 7 : index
    %c3_63 = arith.constant 3 : index
    %47 = memref.load %arg6[%c7_62, %c3_63] : memref<16x4xf32, #tpu.memory_space<smem>>
    %c8 = arith.constant 8 : index
    %c0_64 = arith.constant 0 : index
    %48 = memref.load %arg6[%c8, %c0_64] : memref<16x4xf32, #tpu.memory_space<smem>>
    %c8_65 = arith.constant 8 : index
    %c1_66 = arith.constant 1 : index
    %49 = memref.load %arg6[%c8_65, %c1_66] : memref<16x4xf32, #tpu.memory_space<smem>>
    %c8_67 = arith.constant 8 : index
    %c2_68 = arith.constant 2 : index
    %50 = memref.load %arg6[%c8_67, %c2_68] : memref<16x4xf32, #tpu.memory_space<smem>>
    %c8_69 = arith.constant 8 : index
    %c3_70 = arith.constant 3 : index
    %51 = memref.load %arg6[%c8_69, %c3_70] : memref<16x4xf32, #tpu.memory_space<smem>>
    %c9 = arith.constant 9 : index
    %c0_71 = arith.constant 0 : index
    %52 = memref.load %arg6[%c9, %c0_71] : memref<16x4xf32, #tpu.memory_space<smem>>
    %c9_72 = arith.constant 9 : index
    %c1_73 = arith.constant 1 : index
    %53 = memref.load %arg6[%c9_72, %c1_73] : memref<16x4xf32, #tpu.memory_space<smem>>
    %c9_74 = arith.constant 9 : index
    %c2_75 = arith.constant 2 : index
    %54 = memref.load %arg6[%c9_74, %c2_75] : memref<16x4xf32, #tpu.memory_space<smem>>
    %c9_76 = arith.constant 9 : index
    %c3_77 = arith.constant 3 : index
    %55 = memref.load %arg6[%c9_76, %c3_77] : memref<16x4xf32, #tpu.memory_space<smem>>
    %c10 = arith.constant 10 : index
    %c0_78 = arith.constant 0 : index
    %56 = memref.load %arg6[%c10, %c0_78] : memref<16x4xf32, #tpu.memory_space<smem>>
    %c10_79 = arith.constant 10 : index
    %c1_80 = arith.constant 1 : index
    %57 = memref.load %arg6[%c10_79, %c1_80] : memref<16x4xf32, #tpu.memory_space<smem>>
    %c10_81 = arith.constant 10 : index
    %c2_82 = arith.constant 2 : index
    %58 = memref.load %arg6[%c10_81, %c2_82] : memref<16x4xf32, #tpu.memory_space<smem>>
    %c10_83 = arith.constant 10 : index
    %c3_84 = arith.constant 3 : index
    %59 = memref.load %arg6[%c10_83, %c3_84] : memref<16x4xf32, #tpu.memory_space<smem>>
    %c11 = arith.constant 11 : index
    %c0_85 = arith.constant 0 : index
    %60 = memref.load %arg6[%c11, %c0_85] : memref<16x4xf32, #tpu.memory_space<smem>>
    %c11_86 = arith.constant 11 : index
    %c1_87 = arith.constant 1 : index
    %61 = memref.load %arg6[%c11_86, %c1_87] : memref<16x4xf32, #tpu.memory_space<smem>>
    %c11_88 = arith.constant 11 : index
    %c2_89 = arith.constant 2 : index
    %62 = memref.load %arg6[%c11_88, %c2_89] : memref<16x4xf32, #tpu.memory_space<smem>>
    %c11_90 = arith.constant 11 : index
    %c3_91 = arith.constant 3 : index
    %63 = memref.load %arg6[%c11_90, %c3_91] : memref<16x4xf32, #tpu.memory_space<smem>>
    %c12 = arith.constant 12 : index
    %c0_92 = arith.constant 0 : index
    %64 = memref.load %arg6[%c12, %c0_92] : memref<16x4xf32, #tpu.memory_space<smem>>
    %c12_93 = arith.constant 12 : index
    %c1_94 = arith.constant 1 : index
    %65 = memref.load %arg6[%c12_93, %c1_94] : memref<16x4xf32, #tpu.memory_space<smem>>
    %c12_95 = arith.constant 12 : index
    %c2_96 = arith.constant 2 : index
    %66 = memref.load %arg6[%c12_95, %c2_96] : memref<16x4xf32, #tpu.memory_space<smem>>
    %c12_97 = arith.constant 12 : index
    %c3_98 = arith.constant 3 : index
    %67 = memref.load %arg6[%c12_97, %c3_98] : memref<16x4xf32, #tpu.memory_space<smem>>
    %c13 = arith.constant 13 : index
    %c0_99 = arith.constant 0 : index
    %68 = memref.load %arg6[%c13, %c0_99] : memref<16x4xf32, #tpu.memory_space<smem>>
    %c13_100 = arith.constant 13 : index
    %c1_101 = arith.constant 1 : index
    %69 = memref.load %arg6[%c13_100, %c1_101] : memref<16x4xf32, #tpu.memory_space<smem>>
    %c13_102 = arith.constant 13 : index
    %c2_103 = arith.constant 2 : index
    %70 = memref.load %arg6[%c13_102, %c2_103] : memref<16x4xf32, #tpu.memory_space<smem>>
    %c13_104 = arith.constant 13 : index
    %c3_105 = arith.constant 3 : index
    %71 = memref.load %arg6[%c13_104, %c3_105] : memref<16x4xf32, #tpu.memory_space<smem>>
    %c14 = arith.constant 14 : index
    %c0_106 = arith.constant 0 : index
    %72 = memref.load %arg6[%c14, %c0_106] : memref<16x4xf32, #tpu.memory_space<smem>>
    %c14_107 = arith.constant 14 : index
    %c1_108 = arith.constant 1 : index
    %73 = memref.load %arg6[%c14_107, %c1_108] : memref<16x4xf32, #tpu.memory_space<smem>>
    %c14_109 = arith.constant 14 : index
    %c2_110 = arith.constant 2 : index
    %74 = memref.load %arg6[%c14_109, %c2_110] : memref<16x4xf32, #tpu.memory_space<smem>>
    %c14_111 = arith.constant 14 : index
    %c3_112 = arith.constant 3 : index
    %75 = memref.load %arg6[%c14_111, %c3_112] : memref<16x4xf32, #tpu.memory_space<smem>>
    %c15 = arith.constant 15 : index
    %c0_113 = arith.constant 0 : index
    %76 = memref.load %arg6[%c15, %c0_113] : memref<16x4xf32, #tpu.memory_space<smem>>
    %c15_114 = arith.constant 15 : index
    %c1_115 = arith.constant 1 : index
    %77 = memref.load %arg6[%c15_114, %c1_115] : memref<16x4xf32, #tpu.memory_space<smem>>
    %c15_116 = arith.constant 15 : index
    %c2_117 = arith.constant 2 : index
    %78 = memref.load %arg6[%c15_116, %c2_117] : memref<16x4xf32, #tpu.memory_space<smem>>
    %c15_118 = arith.constant 15 : index
    %c3_119 = arith.constant 3 : index
    %79 = memref.load %arg6[%c15_118, %c3_119] : memref<16x4xf32, #tpu.memory_space<smem>>
    %c0_120 = arith.constant 0 : index
    %80 = memref.load %arg7[%c0_120] : memref<16xf32, #tpu.memory_space<smem>>
    %c1_121 = arith.constant 1 : index
    %81 = memref.load %arg7[%c1_121] : memref<16xf32, #tpu.memory_space<smem>>
    %c2_122 = arith.constant 2 : index
    %82 = memref.load %arg7[%c2_122] : memref<16xf32, #tpu.memory_space<smem>>
    %c3_123 = arith.constant 3 : index
    %83 = memref.load %arg7[%c3_123] : memref<16xf32, #tpu.memory_space<smem>>
    %c4_124 = arith.constant 4 : index
    %84 = memref.load %arg7[%c4_124] : memref<16xf32, #tpu.memory_space<smem>>
    %c5_125 = arith.constant 5 : index
    %85 = memref.load %arg7[%c5_125] : memref<16xf32, #tpu.memory_space<smem>>
    %c6_126 = arith.constant 6 : index
    %86 = memref.load %arg7[%c6_126] : memref<16xf32, #tpu.memory_space<smem>>
    %c7_127 = arith.constant 7 : index
    %87 = memref.load %arg7[%c7_127] : memref<16xf32, #tpu.memory_space<smem>>
    %c8_128 = arith.constant 8 : index
    %88 = memref.load %arg7[%c8_128] : memref<16xf32, #tpu.memory_space<smem>>
    %c9_129 = arith.constant 9 : index
    %89 = memref.load %arg7[%c9_129] : memref<16xf32, #tpu.memory_space<smem>>
    %c10_130 = arith.constant 10 : index
    %90 = memref.load %arg7[%c10_130] : memref<16xf32, #tpu.memory_space<smem>>
    %c11_131 = arith.constant 11 : index
    %91 = memref.load %arg7[%c11_131] : memref<16xf32, #tpu.memory_space<smem>>
    %c12_132 = arith.constant 12 : index
    %92 = memref.load %arg7[%c12_132] : memref<16xf32, #tpu.memory_space<smem>>
    %c13_133 = arith.constant 13 : index
    %93 = memref.load %arg7[%c13_133] : memref<16xf32, #tpu.memory_space<smem>>
    %c14_134 = arith.constant 14 : index
    %94 = memref.load %arg7[%c14_134] : memref<16xf32, #tpu.memory_space<smem>>
    %c15_135 = arith.constant 15 : index
    %95 = memref.load %arg7[%c15_135] : memref<16xf32, #tpu.memory_space<smem>>
    %c0_136 = arith.constant 0 : index
    %c0_137 = arith.constant 0 : index
    %96 = memref.load %arg8[%c0_136, %c0_137] : memref<8x16xf32, #tpu.memory_space<smem>>
    %c0_138 = arith.constant 0 : index
    %c1_139 = arith.constant 1 : index
    %97 = memref.load %arg8[%c0_138, %c1_139] : memref<8x16xf32, #tpu.memory_space<smem>>
    %c0_140 = arith.constant 0 : index
    %c2_141 = arith.constant 2 : index
    %98 = memref.load %arg8[%c0_140, %c2_141] : memref<8x16xf32, #tpu.memory_space<smem>>
    %c0_142 = arith.constant 0 : index
    %c3_143 = arith.constant 3 : index
    %99 = memref.load %arg8[%c0_142, %c3_143] : memref<8x16xf32, #tpu.memory_space<smem>>
    %c0_144 = arith.constant 0 : index
    %c4_145 = arith.constant 4 : index
    %100 = memref.load %arg8[%c0_144, %c4_145] : memref<8x16xf32, #tpu.memory_space<smem>>
    %c0_146 = arith.constant 0 : index
    %c5_147 = arith.constant 5 : index
    %101 = memref.load %arg8[%c0_146, %c5_147] : memref<8x16xf32, #tpu.memory_space<smem>>
    %c0_148 = arith.constant 0 : index
    %c6_149 = arith.constant 6 : index
    %102 = memref.load %arg8[%c0_148, %c6_149] : memref<8x16xf32, #tpu.memory_space<smem>>
    %c0_150 = arith.constant 0 : index
    %c7_151 = arith.constant 7 : index
    %103 = memref.load %arg8[%c0_150, %c7_151] : memref<8x16xf32, #tpu.memory_space<smem>>
    %c0_152 = arith.constant 0 : index
    %c8_153 = arith.constant 8 : index
    %104 = memref.load %arg8[%c0_152, %c8_153] : memref<8x16xf32, #tpu.memory_space<smem>>
    %c0_154 = arith.constant 0 : index
    %c9_155 = arith.constant 9 : index
    %105 = memref.load %arg8[%c0_154, %c9_155] : memref<8x16xf32, #tpu.memory_space<smem>>
    %c0_156 = arith.constant 0 : index
    %c10_157 = arith.constant 10 : index
    %106 = memref.load %arg8[%c0_156, %c10_157] : memref<8x16xf32, #tpu.memory_space<smem>>
    %c0_158 = arith.constant 0 : index
    %c11_159 = arith.constant 11 : index
    %107 = memref.load %arg8[%c0_158, %c11_159] : memref<8x16xf32, #tpu.memory_space<smem>>
    %c0_160 = arith.constant 0 : index
    %c12_161 = arith.constant 12 : index
    %108 = memref.load %arg8[%c0_160, %c12_161] : memref<8x16xf32, #tpu.memory_space<smem>>
    %c0_162 = arith.constant 0 : index
    %c13_163 = arith.constant 13 : index
    %109 = memref.load %arg8[%c0_162, %c13_163] : memref<8x16xf32, #tpu.memory_space<smem>>
    %c0_164 = arith.constant 0 : index
    %c14_165 = arith.constant 14 : index
    %110 = memref.load %arg8[%c0_164, %c14_165] : memref<8x16xf32, #tpu.memory_space<smem>>
    %c0_166 = arith.constant 0 : index
    %c15_167 = arith.constant 15 : index
    %111 = memref.load %arg8[%c0_166, %c15_167] : memref<8x16xf32, #tpu.memory_space<smem>>
    %c1_168 = arith.constant 1 : index
    %c0_169 = arith.constant 0 : index
    %112 = memref.load %arg8[%c1_168, %c0_169] : memref<8x16xf32, #tpu.memory_space<smem>>
    %c1_170 = arith.constant 1 : index
    %c1_171 = arith.constant 1 : index
    %113 = memref.load %arg8[%c1_170, %c1_171] : memref<8x16xf32, #tpu.memory_space<smem>>
    %c1_172 = arith.constant 1 : index
    %c2_173 = arith.constant 2 : index
    %114 = memref.load %arg8[%c1_172, %c2_173] : memref<8x16xf32, #tpu.memory_space<smem>>
    %c1_174 = arith.constant 1 : index
    %c3_175 = arith.constant 3 : index
    %115 = memref.load %arg8[%c1_174, %c3_175] : memref<8x16xf32, #tpu.memory_space<smem>>
    %c1_176 = arith.constant 1 : index
    %c4_177 = arith.constant 4 : index
    %116 = memref.load %arg8[%c1_176, %c4_177] : memref<8x16xf32, #tpu.memory_space<smem>>
    %c1_178 = arith.constant 1 : index
    %c5_179 = arith.constant 5 : index
    %117 = memref.load %arg8[%c1_178, %c5_179] : memref<8x16xf32, #tpu.memory_space<smem>>
    %c1_180 = arith.constant 1 : index
    %c6_181 = arith.constant 6 : index
    %118 = memref.load %arg8[%c1_180, %c6_181] : memref<8x16xf32, #tpu.memory_space<smem>>
    %c1_182 = arith.constant 1 : index
    %c7_183 = arith.constant 7 : index
    %119 = memref.load %arg8[%c1_182, %c7_183] : memref<8x16xf32, #tpu.memory_space<smem>>
    %c1_184 = arith.constant 1 : index
    %c8_185 = arith.constant 8 : index
    %120 = memref.load %arg8[%c1_184, %c8_185] : memref<8x16xf32, #tpu.memory_space<smem>>
    %c1_186 = arith.constant 1 : index
    %c9_187 = arith.constant 9 : index
    %121 = memref.load %arg8[%c1_186, %c9_187] : memref<8x16xf32, #tpu.memory_space<smem>>
    %c1_188 = arith.constant 1 : index
    %c10_189 = arith.constant 10 : index
    %122 = memref.load %arg8[%c1_188, %c10_189] : memref<8x16xf32, #tpu.memory_space<smem>>
    %c1_190 = arith.constant 1 : index
    %c11_191 = arith.constant 11 : index
    %123 = memref.load %arg8[%c1_190, %c11_191] : memref<8x16xf32, #tpu.memory_space<smem>>
    %c1_192 = arith.constant 1 : index
    %c12_193 = arith.constant 12 : index
    %124 = memref.load %arg8[%c1_192, %c12_193] : memref<8x16xf32, #tpu.memory_space<smem>>
    %c1_194 = arith.constant 1 : index
    %c13_195 = arith.constant 13 : index
    %125 = memref.load %arg8[%c1_194, %c13_195] : memref<8x16xf32, #tpu.memory_space<smem>>
    %c1_196 = arith.constant 1 : index
    %c14_197 = arith.constant 14 : index
    %126 = memref.load %arg8[%c1_196, %c14_197] : memref<8x16xf32, #tpu.memory_space<smem>>
    %c1_198 = arith.constant 1 : index
    %c15_199 = arith.constant 15 : index
    %127 = memref.load %arg8[%c1_198, %c15_199] : memref<8x16xf32, #tpu.memory_space<smem>>
    %c2_200 = arith.constant 2 : index
    %c0_201 = arith.constant 0 : index
    %128 = memref.load %arg8[%c2_200, %c0_201] : memref<8x16xf32, #tpu.memory_space<smem>>
    %c2_202 = arith.constant 2 : index
    %c1_203 = arith.constant 1 : index
    %129 = memref.load %arg8[%c2_202, %c1_203] : memref<8x16xf32, #tpu.memory_space<smem>>
    %c2_204 = arith.constant 2 : index
    %c2_205 = arith.constant 2 : index
    %130 = memref.load %arg8[%c2_204, %c2_205] : memref<8x16xf32, #tpu.memory_space<smem>>
    %c2_206 = arith.constant 2 : index
    %c3_207 = arith.constant 3 : index
    %131 = memref.load %arg8[%c2_206, %c3_207] : memref<8x16xf32, #tpu.memory_space<smem>>
    %c2_208 = arith.constant 2 : index
    %c4_209 = arith.constant 4 : index
    %132 = memref.load %arg8[%c2_208, %c4_209] : memref<8x16xf32, #tpu.memory_space<smem>>
    %c2_210 = arith.constant 2 : index
    %c5_211 = arith.constant 5 : index
    %133 = memref.load %arg8[%c2_210, %c5_211] : memref<8x16xf32, #tpu.memory_space<smem>>
    %c2_212 = arith.constant 2 : index
    %c6_213 = arith.constant 6 : index
    %134 = memref.load %arg8[%c2_212, %c6_213] : memref<8x16xf32, #tpu.memory_space<smem>>
    %c2_214 = arith.constant 2 : index
    %c7_215 = arith.constant 7 : index
    %135 = memref.load %arg8[%c2_214, %c7_215] : memref<8x16xf32, #tpu.memory_space<smem>>
    %c2_216 = arith.constant 2 : index
    %c8_217 = arith.constant 8 : index
    %136 = memref.load %arg8[%c2_216, %c8_217] : memref<8x16xf32, #tpu.memory_space<smem>>
    %c2_218 = arith.constant 2 : index
    %c9_219 = arith.constant 9 : index
    %137 = memref.load %arg8[%c2_218, %c9_219] : memref<8x16xf32, #tpu.memory_space<smem>>
    %c2_220 = arith.constant 2 : index
    %c10_221 = arith.constant 10 : index
    %138 = memref.load %arg8[%c2_220, %c10_221] : memref<8x16xf32, #tpu.memory_space<smem>>
    %c2_222 = arith.constant 2 : index
    %c11_223 = arith.constant 11 : index
    %139 = memref.load %arg8[%c2_222, %c11_223] : memref<8x16xf32, #tpu.memory_space<smem>>
    %c2_224 = arith.constant 2 : index
    %c12_225 = arith.constant 12 : index
    %140 = memref.load %arg8[%c2_224, %c12_225] : memref<8x16xf32, #tpu.memory_space<smem>>
    %c2_226 = arith.constant 2 : index
    %c13_227 = arith.constant 13 : index
    %141 = memref.load %arg8[%c2_226, %c13_227] : memref<8x16xf32, #tpu.memory_space<smem>>
    %c2_228 = arith.constant 2 : index
    %c14_229 = arith.constant 14 : index
    %142 = memref.load %arg8[%c2_228, %c14_229] : memref<8x16xf32, #tpu.memory_space<smem>>
    %c2_230 = arith.constant 2 : index
    %c15_231 = arith.constant 15 : index
    %143 = memref.load %arg8[%c2_230, %c15_231] : memref<8x16xf32, #tpu.memory_space<smem>>
    %c3_232 = arith.constant 3 : index
    %c0_233 = arith.constant 0 : index
    %144 = memref.load %arg8[%c3_232, %c0_233] : memref<8x16xf32, #tpu.memory_space<smem>>
    %c3_234 = arith.constant 3 : index
    %c1_235 = arith.constant 1 : index
    %145 = memref.load %arg8[%c3_234, %c1_235] : memref<8x16xf32, #tpu.memory_space<smem>>
    %c3_236 = arith.constant 3 : index
    %c2_237 = arith.constant 2 : index
    %146 = memref.load %arg8[%c3_236, %c2_237] : memref<8x16xf32, #tpu.memory_space<smem>>
    %c3_238 = arith.constant 3 : index
    %c3_239 = arith.constant 3 : index
    %147 = memref.load %arg8[%c3_238, %c3_239] : memref<8x16xf32, #tpu.memory_space<smem>>
    %c3_240 = arith.constant 3 : index
    %c4_241 = arith.constant 4 : index
    %148 = memref.load %arg8[%c3_240, %c4_241] : memref<8x16xf32, #tpu.memory_space<smem>>
    %c3_242 = arith.constant 3 : index
    %c5_243 = arith.constant 5 : index
    %149 = memref.load %arg8[%c3_242, %c5_243] : memref<8x16xf32, #tpu.memory_space<smem>>
    %c3_244 = arith.constant 3 : index
    %c6_245 = arith.constant 6 : index
    %150 = memref.load %arg8[%c3_244, %c6_245] : memref<8x16xf32, #tpu.memory_space<smem>>
    %c3_246 = arith.constant 3 : index
    %c7_247 = arith.constant 7 : index
    %151 = memref.load %arg8[%c3_246, %c7_247] : memref<8x16xf32, #tpu.memory_space<smem>>
    %c3_248 = arith.constant 3 : index
    %c8_249 = arith.constant 8 : index
    %152 = memref.load %arg8[%c3_248, %c8_249] : memref<8x16xf32, #tpu.memory_space<smem>>
    %c3_250 = arith.constant 3 : index
    %c9_251 = arith.constant 9 : index
    %153 = memref.load %arg8[%c3_250, %c9_251] : memref<8x16xf32, #tpu.memory_space<smem>>
    %c3_252 = arith.constant 3 : index
    %c10_253 = arith.constant 10 : index
    %154 = memref.load %arg8[%c3_252, %c10_253] : memref<8x16xf32, #tpu.memory_space<smem>>
    %c3_254 = arith.constant 3 : index
    %c11_255 = arith.constant 11 : index
    %155 = memref.load %arg8[%c3_254, %c11_255] : memref<8x16xf32, #tpu.memory_space<smem>>
    %c3_256 = arith.constant 3 : index
    %c12_257 = arith.constant 12 : index
    %156 = memref.load %arg8[%c3_256, %c12_257] : memref<8x16xf32, #tpu.memory_space<smem>>
    %c3_258 = arith.constant 3 : index
    %c13_259 = arith.constant 13 : index
    %157 = memref.load %arg8[%c3_258, %c13_259] : memref<8x16xf32, #tpu.memory_space<smem>>
    %c3_260 = arith.constant 3 : index
    %c14_261 = arith.constant 14 : index
    %158 = memref.load %arg8[%c3_260, %c14_261] : memref<8x16xf32, #tpu.memory_space<smem>>
    %c3_262 = arith.constant 3 : index
    %c15_263 = arith.constant 15 : index
    %159 = memref.load %arg8[%c3_262, %c15_263] : memref<8x16xf32, #tpu.memory_space<smem>>
    %c4_264 = arith.constant 4 : index
    %c0_265 = arith.constant 0 : index
    %160 = memref.load %arg8[%c4_264, %c0_265] : memref<8x16xf32, #tpu.memory_space<smem>>
    %c4_266 = arith.constant 4 : index
    %c1_267 = arith.constant 1 : index
    %161 = memref.load %arg8[%c4_266, %c1_267] : memref<8x16xf32, #tpu.memory_space<smem>>
    %c4_268 = arith.constant 4 : index
    %c2_269 = arith.constant 2 : index
    %162 = memref.load %arg8[%c4_268, %c2_269] : memref<8x16xf32, #tpu.memory_space<smem>>
    %c4_270 = arith.constant 4 : index
    %c3_271 = arith.constant 3 : index
    %163 = memref.load %arg8[%c4_270, %c3_271] : memref<8x16xf32, #tpu.memory_space<smem>>
    %c4_272 = arith.constant 4 : index
    %c4_273 = arith.constant 4 : index
    %164 = memref.load %arg8[%c4_272, %c4_273] : memref<8x16xf32, #tpu.memory_space<smem>>
    %c4_274 = arith.constant 4 : index
    %c5_275 = arith.constant 5 : index
    %165 = memref.load %arg8[%c4_274, %c5_275] : memref<8x16xf32, #tpu.memory_space<smem>>
    %c4_276 = arith.constant 4 : index
    %c6_277 = arith.constant 6 : index
    %166 = memref.load %arg8[%c4_276, %c6_277] : memref<8x16xf32, #tpu.memory_space<smem>>
    %c4_278 = arith.constant 4 : index
    %c7_279 = arith.constant 7 : index
    %167 = memref.load %arg8[%c4_278, %c7_279] : memref<8x16xf32, #tpu.memory_space<smem>>
    %c4_280 = arith.constant 4 : index
    %c8_281 = arith.constant 8 : index
    %168 = memref.load %arg8[%c4_280, %c8_281] : memref<8x16xf32, #tpu.memory_space<smem>>
    %c4_282 = arith.constant 4 : index
    %c9_283 = arith.constant 9 : index
    %169 = memref.load %arg8[%c4_282, %c9_283] : memref<8x16xf32, #tpu.memory_space<smem>>
    %c4_284 = arith.constant 4 : index
    %c10_285 = arith.constant 10 : index
    %170 = memref.load %arg8[%c4_284, %c10_285] : memref<8x16xf32, #tpu.memory_space<smem>>
    %c4_286 = arith.constant 4 : index
    %c11_287 = arith.constant 11 : index
    %171 = memref.load %arg8[%c4_286, %c11_287] : memref<8x16xf32, #tpu.memory_space<smem>>
    %c4_288 = arith.constant 4 : index
    %c12_289 = arith.constant 12 : index
    %172 = memref.load %arg8[%c4_288, %c12_289] : memref<8x16xf32, #tpu.memory_space<smem>>
    %c4_290 = arith.constant 4 : index
    %c13_291 = arith.constant 13 : index
    %173 = memref.load %arg8[%c4_290, %c13_291] : memref<8x16xf32, #tpu.memory_space<smem>>
    %c4_292 = arith.constant 4 : index
    %c14_293 = arith.constant 14 : index
    %174 = memref.load %arg8[%c4_292, %c14_293] : memref<8x16xf32, #tpu.memory_space<smem>>
    %c4_294 = arith.constant 4 : index
    %c15_295 = arith.constant 15 : index
    %175 = memref.load %arg8[%c4_294, %c15_295] : memref<8x16xf32, #tpu.memory_space<smem>>
    %c5_296 = arith.constant 5 : index
    %c0_297 = arith.constant 0 : index
    %176 = memref.load %arg8[%c5_296, %c0_297] : memref<8x16xf32, #tpu.memory_space<smem>>
    %c5_298 = arith.constant 5 : index
    %c1_299 = arith.constant 1 : index
    %177 = memref.load %arg8[%c5_298, %c1_299] : memref<8x16xf32, #tpu.memory_space<smem>>
    %c5_300 = arith.constant 5 : index
    %c2_301 = arith.constant 2 : index
    %178 = memref.load %arg8[%c5_300, %c2_301] : memref<8x16xf32, #tpu.memory_space<smem>>
    %c5_302 = arith.constant 5 : index
    %c3_303 = arith.constant 3 : index
    %179 = memref.load %arg8[%c5_302, %c3_303] : memref<8x16xf32, #tpu.memory_space<smem>>
    %c5_304 = arith.constant 5 : index
    %c4_305 = arith.constant 4 : index
    %180 = memref.load %arg8[%c5_304, %c4_305] : memref<8x16xf32, #tpu.memory_space<smem>>
    %c5_306 = arith.constant 5 : index
    %c5_307 = arith.constant 5 : index
    %181 = memref.load %arg8[%c5_306, %c5_307] : memref<8x16xf32, #tpu.memory_space<smem>>
    %c5_308 = arith.constant 5 : index
    %c6_309 = arith.constant 6 : index
    %182 = memref.load %arg8[%c5_308, %c6_309] : memref<8x16xf32, #tpu.memory_space<smem>>
    %c5_310 = arith.constant 5 : index
    %c7_311 = arith.constant 7 : index
    %183 = memref.load %arg8[%c5_310, %c7_311] : memref<8x16xf32, #tpu.memory_space<smem>>
    %c5_312 = arith.constant 5 : index
    %c8_313 = arith.constant 8 : index
    %184 = memref.load %arg8[%c5_312, %c8_313] : memref<8x16xf32, #tpu.memory_space<smem>>
    %c5_314 = arith.constant 5 : index
    %c9_315 = arith.constant 9 : index
    %185 = memref.load %arg8[%c5_314, %c9_315] : memref<8x16xf32, #tpu.memory_space<smem>>
    %c5_316 = arith.constant 5 : index
    %c10_317 = arith.constant 10 : index
    %186 = memref.load %arg8[%c5_316, %c10_317] : memref<8x16xf32, #tpu.memory_space<smem>>
    %c5_318 = arith.constant 5 : index
    %c11_319 = arith.constant 11 : index
    %187 = memref.load %arg8[%c5_318, %c11_319] : memref<8x16xf32, #tpu.memory_space<smem>>
    %c5_320 = arith.constant 5 : index
    %c12_321 = arith.constant 12 : index
    %188 = memref.load %arg8[%c5_320, %c12_321] : memref<8x16xf32, #tpu.memory_space<smem>>
    %c5_322 = arith.constant 5 : index
    %c13_323 = arith.constant 13 : index
    %189 = memref.load %arg8[%c5_322, %c13_323] : memref<8x16xf32, #tpu.memory_space<smem>>
    %c5_324 = arith.constant 5 : index
    %c14_325 = arith.constant 14 : index
    %190 = memref.load %arg8[%c5_324, %c14_325] : memref<8x16xf32, #tpu.memory_space<smem>>
    %c5_326 = arith.constant 5 : index
    %c15_327 = arith.constant 15 : index
    %191 = memref.load %arg8[%c5_326, %c15_327] : memref<8x16xf32, #tpu.memory_space<smem>>
    %c6_328 = arith.constant 6 : index
    %c0_329 = arith.constant 0 : index
    %192 = memref.load %arg8[%c6_328, %c0_329] : memref<8x16xf32, #tpu.memory_space<smem>>
    %c6_330 = arith.constant 6 : index
    %c1_331 = arith.constant 1 : index
    %193 = memref.load %arg8[%c6_330, %c1_331] : memref<8x16xf32, #tpu.memory_space<smem>>
    %c6_332 = arith.constant 6 : index
    %c2_333 = arith.constant 2 : index
    %194 = memref.load %arg8[%c6_332, %c2_333] : memref<8x16xf32, #tpu.memory_space<smem>>
    %c6_334 = arith.constant 6 : index
    %c3_335 = arith.constant 3 : index
    %195 = memref.load %arg8[%c6_334, %c3_335] : memref<8x16xf32, #tpu.memory_space<smem>>
    %c6_336 = arith.constant 6 : index
    %c4_337 = arith.constant 4 : index
    %196 = memref.load %arg8[%c6_336, %c4_337] : memref<8x16xf32, #tpu.memory_space<smem>>
    %c6_338 = arith.constant 6 : index
    %c5_339 = arith.constant 5 : index
    %197 = memref.load %arg8[%c6_338, %c5_339] : memref<8x16xf32, #tpu.memory_space<smem>>
    %c6_340 = arith.constant 6 : index
    %c6_341 = arith.constant 6 : index
    %198 = memref.load %arg8[%c6_340, %c6_341] : memref<8x16xf32, #tpu.memory_space<smem>>
    %c6_342 = arith.constant 6 : index
    %c7_343 = arith.constant 7 : index
    %199 = memref.load %arg8[%c6_342, %c7_343] : memref<8x16xf32, #tpu.memory_space<smem>>
    %c6_344 = arith.constant 6 : index
    %c8_345 = arith.constant 8 : index
    %200 = memref.load %arg8[%c6_344, %c8_345] : memref<8x16xf32, #tpu.memory_space<smem>>
    %c6_346 = arith.constant 6 : index
    %c9_347 = arith.constant 9 : index
    %201 = memref.load %arg8[%c6_346, %c9_347] : memref<8x16xf32, #tpu.memory_space<smem>>
    %c6_348 = arith.constant 6 : index
    %c10_349 = arith.constant 10 : index
    %202 = memref.load %arg8[%c6_348, %c10_349] : memref<8x16xf32, #tpu.memory_space<smem>>
    %c6_350 = arith.constant 6 : index
    %c11_351 = arith.constant 11 : index
    %203 = memref.load %arg8[%c6_350, %c11_351] : memref<8x16xf32, #tpu.memory_space<smem>>
    %c6_352 = arith.constant 6 : index
    %c12_353 = arith.constant 12 : index
    %204 = memref.load %arg8[%c6_352, %c12_353] : memref<8x16xf32, #tpu.memory_space<smem>>
    %c6_354 = arith.constant 6 : index
    %c13_355 = arith.constant 13 : index
    %205 = memref.load %arg8[%c6_354, %c13_355] : memref<8x16xf32, #tpu.memory_space<smem>>
    %c6_356 = arith.constant 6 : index
    %c14_357 = arith.constant 14 : index
    %206 = memref.load %arg8[%c6_356, %c14_357] : memref<8x16xf32, #tpu.memory_space<smem>>
    %c6_358 = arith.constant 6 : index
    %c15_359 = arith.constant 15 : index
    %207 = memref.load %arg8[%c6_358, %c15_359] : memref<8x16xf32, #tpu.memory_space<smem>>
    %c7_360 = arith.constant 7 : index
    %c0_361 = arith.constant 0 : index
    %208 = memref.load %arg8[%c7_360, %c0_361] : memref<8x16xf32, #tpu.memory_space<smem>>
    %c7_362 = arith.constant 7 : index
    %c1_363 = arith.constant 1 : index
    %209 = memref.load %arg8[%c7_362, %c1_363] : memref<8x16xf32, #tpu.memory_space<smem>>
    %c7_364 = arith.constant 7 : index
    %c2_365 = arith.constant 2 : index
    %210 = memref.load %arg8[%c7_364, %c2_365] : memref<8x16xf32, #tpu.memory_space<smem>>
    %c7_366 = arith.constant 7 : index
    %c3_367 = arith.constant 3 : index
    %211 = memref.load %arg8[%c7_366, %c3_367] : memref<8x16xf32, #tpu.memory_space<smem>>
    %c7_368 = arith.constant 7 : index
    %c4_369 = arith.constant 4 : index
    %212 = memref.load %arg8[%c7_368, %c4_369] : memref<8x16xf32, #tpu.memory_space<smem>>
    %c7_370 = arith.constant 7 : index
    %c5_371 = arith.constant 5 : index
    %213 = memref.load %arg8[%c7_370, %c5_371] : memref<8x16xf32, #tpu.memory_space<smem>>
    %c7_372 = arith.constant 7 : index
    %c6_373 = arith.constant 6 : index
    %214 = memref.load %arg8[%c7_372, %c6_373] : memref<8x16xf32, #tpu.memory_space<smem>>
    %c7_374 = arith.constant 7 : index
    %c7_375 = arith.constant 7 : index
    %215 = memref.load %arg8[%c7_374, %c7_375] : memref<8x16xf32, #tpu.memory_space<smem>>
    %c7_376 = arith.constant 7 : index
    %c8_377 = arith.constant 8 : index
    %216 = memref.load %arg8[%c7_376, %c8_377] : memref<8x16xf32, #tpu.memory_space<smem>>
    %c7_378 = arith.constant 7 : index
    %c9_379 = arith.constant 9 : index
    %217 = memref.load %arg8[%c7_378, %c9_379] : memref<8x16xf32, #tpu.memory_space<smem>>
    %c7_380 = arith.constant 7 : index
    %c10_381 = arith.constant 10 : index
    %218 = memref.load %arg8[%c7_380, %c10_381] : memref<8x16xf32, #tpu.memory_space<smem>>
    %c7_382 = arith.constant 7 : index
    %c11_383 = arith.constant 11 : index
    %219 = memref.load %arg8[%c7_382, %c11_383] : memref<8x16xf32, #tpu.memory_space<smem>>
    %c7_384 = arith.constant 7 : index
    %c12_385 = arith.constant 12 : index
    %220 = memref.load %arg8[%c7_384, %c12_385] : memref<8x16xf32, #tpu.memory_space<smem>>
    %c7_386 = arith.constant 7 : index
    %c13_387 = arith.constant 13 : index
    %221 = memref.load %arg8[%c7_386, %c13_387] : memref<8x16xf32, #tpu.memory_space<smem>>
    %c7_388 = arith.constant 7 : index
    %c14_389 = arith.constant 14 : index
    %222 = memref.load %arg8[%c7_388, %c14_389] : memref<8x16xf32, #tpu.memory_space<smem>>
    %c7_390 = arith.constant 7 : index
    %c15_391 = arith.constant 15 : index
    %223 = memref.load %arg8[%c7_390, %c15_391] : memref<8x16xf32, #tpu.memory_space<smem>>
    %c0_392 = arith.constant 0 : index
    %224 = memref.load %arg9[%c0_392] : memref<8xf32, #tpu.memory_space<smem>>
    %c1_393 = arith.constant 1 : index
    %225 = memref.load %arg9[%c1_393] : memref<8xf32, #tpu.memory_space<smem>>
    %c2_394 = arith.constant 2 : index
    %226 = memref.load %arg9[%c2_394] : memref<8xf32, #tpu.memory_space<smem>>
    %c3_395 = arith.constant 3 : index
    %227 = memref.load %arg9[%c3_395] : memref<8xf32, #tpu.memory_space<smem>>
    %c4_396 = arith.constant 4 : index
    %228 = memref.load %arg9[%c4_396] : memref<8xf32, #tpu.memory_space<smem>>
    %c5_397 = arith.constant 5 : index
    %229 = memref.load %arg9[%c5_397] : memref<8xf32, #tpu.memory_space<smem>>
    %c6_398 = arith.constant 6 : index
    %230 = memref.load %arg9[%c6_398] : memref<8xf32, #tpu.memory_space<smem>>
    %c7_399 = arith.constant 7 : index
    %231 = memref.load %arg9[%c7_399] : memref<8xf32, #tpu.memory_space<smem>>
    %c0_400 = arith.constant 0 : index
    %c0_401 = arith.constant 0 : index
    %232 = memref.load %arg10[%c0_400, %c0_401] : memref<8x4xf32, #tpu.memory_space<smem>>
    %c0_402 = arith.constant 0 : index
    %c1_403 = arith.constant 1 : index
    %233 = memref.load %arg10[%c0_402, %c1_403] : memref<8x4xf32, #tpu.memory_space<smem>>
    %c0_404 = arith.constant 0 : index
    %c2_405 = arith.constant 2 : index
    %234 = memref.load %arg10[%c0_404, %c2_405] : memref<8x4xf32, #tpu.memory_space<smem>>
    %c0_406 = arith.constant 0 : index
    %c3_407 = arith.constant 3 : index
    %235 = memref.load %arg10[%c0_406, %c3_407] : memref<8x4xf32, #tpu.memory_space<smem>>
    %c1_408 = arith.constant 1 : index
    %c0_409 = arith.constant 0 : index
    %236 = memref.load %arg10[%c1_408, %c0_409] : memref<8x4xf32, #tpu.memory_space<smem>>
    %c1_410 = arith.constant 1 : index
    %c1_411 = arith.constant 1 : index
    %237 = memref.load %arg10[%c1_410, %c1_411] : memref<8x4xf32, #tpu.memory_space<smem>>
    %c1_412 = arith.constant 1 : index
    %c2_413 = arith.constant 2 : index
    %238 = memref.load %arg10[%c1_412, %c2_413] : memref<8x4xf32, #tpu.memory_space<smem>>
    %c1_414 = arith.constant 1 : index
    %c3_415 = arith.constant 3 : index
    %239 = memref.load %arg10[%c1_414, %c3_415] : memref<8x4xf32, #tpu.memory_space<smem>>
    %c2_416 = arith.constant 2 : index
    %c0_417 = arith.constant 0 : index
    %240 = memref.load %arg10[%c2_416, %c0_417] : memref<8x4xf32, #tpu.memory_space<smem>>
    %c2_418 = arith.constant 2 : index
    %c1_419 = arith.constant 1 : index
    %241 = memref.load %arg10[%c2_418, %c1_419] : memref<8x4xf32, #tpu.memory_space<smem>>
    %c2_420 = arith.constant 2 : index
    %c2_421 = arith.constant 2 : index
    %242 = memref.load %arg10[%c2_420, %c2_421] : memref<8x4xf32, #tpu.memory_space<smem>>
    %c2_422 = arith.constant 2 : index
    %c3_423 = arith.constant 3 : index
    %243 = memref.load %arg10[%c2_422, %c3_423] : memref<8x4xf32, #tpu.memory_space<smem>>
    %c3_424 = arith.constant 3 : index
    %c0_425 = arith.constant 0 : index
    %244 = memref.load %arg10[%c3_424, %c0_425] : memref<8x4xf32, #tpu.memory_space<smem>>
    %c3_426 = arith.constant 3 : index
    %c1_427 = arith.constant 1 : index
    %245 = memref.load %arg10[%c3_426, %c1_427] : memref<8x4xf32, #tpu.memory_space<smem>>
    %c3_428 = arith.constant 3 : index
    %c2_429 = arith.constant 2 : index
    %246 = memref.load %arg10[%c3_428, %c2_429] : memref<8x4xf32, #tpu.memory_space<smem>>
    %c3_430 = arith.constant 3 : index
    %c3_431 = arith.constant 3 : index
    %247 = memref.load %arg10[%c3_430, %c3_431] : memref<8x4xf32, #tpu.memory_space<smem>>
    %c4_432 = arith.constant 4 : index
    %c0_433 = arith.constant 0 : index
    %248 = memref.load %arg10[%c4_432, %c0_433] : memref<8x4xf32, #tpu.memory_space<smem>>
    %c4_434 = arith.constant 4 : index
    %c1_435 = arith.constant 1 : index
    %249 = memref.load %arg10[%c4_434, %c1_435] : memref<8x4xf32, #tpu.memory_space<smem>>
    %c4_436 = arith.constant 4 : index
    %c2_437 = arith.constant 2 : index
    %250 = memref.load %arg10[%c4_436, %c2_437] : memref<8x4xf32, #tpu.memory_space<smem>>
    %c4_438 = arith.constant 4 : index
    %c3_439 = arith.constant 3 : index
    %251 = memref.load %arg10[%c4_438, %c3_439] : memref<8x4xf32, #tpu.memory_space<smem>>
    %c5_440 = arith.constant 5 : index
    %c0_441 = arith.constant 0 : index
    %252 = memref.load %arg10[%c5_440, %c0_441] : memref<8x4xf32, #tpu.memory_space<smem>>
    %c5_442 = arith.constant 5 : index
    %c1_443 = arith.constant 1 : index
    %253 = memref.load %arg10[%c5_442, %c1_443] : memref<8x4xf32, #tpu.memory_space<smem>>
    %c5_444 = arith.constant 5 : index
    %c2_445 = arith.constant 2 : index
    %254 = memref.load %arg10[%c5_444, %c2_445] : memref<8x4xf32, #tpu.memory_space<smem>>
    %c5_446 = arith.constant 5 : index
    %c3_447 = arith.constant 3 : index
    %255 = memref.load %arg10[%c5_446, %c3_447] : memref<8x4xf32, #tpu.memory_space<smem>>
    %c6_448 = arith.constant 6 : index
    %c0_449 = arith.constant 0 : index
    %256 = memref.load %arg10[%c6_448, %c0_449] : memref<8x4xf32, #tpu.memory_space<smem>>
    %c6_450 = arith.constant 6 : index
    %c1_451 = arith.constant 1 : index
    %257 = memref.load %arg10[%c6_450, %c1_451] : memref<8x4xf32, #tpu.memory_space<smem>>
    %c6_452 = arith.constant 6 : index
    %c2_453 = arith.constant 2 : index
    %258 = memref.load %arg10[%c6_452, %c2_453] : memref<8x4xf32, #tpu.memory_space<smem>>
    %c6_454 = arith.constant 6 : index
    %c3_455 = arith.constant 3 : index
    %259 = memref.load %arg10[%c6_454, %c3_455] : memref<8x4xf32, #tpu.memory_space<smem>>
    %c7_456 = arith.constant 7 : index
    %c0_457 = arith.constant 0 : index
    %260 = memref.load %arg10[%c7_456, %c0_457] : memref<8x4xf32, #tpu.memory_space<smem>>
    %c7_458 = arith.constant 7 : index
    %c1_459 = arith.constant 1 : index
    %261 = memref.load %arg10[%c7_458, %c1_459] : memref<8x4xf32, #tpu.memory_space<smem>>
    %c7_460 = arith.constant 7 : index
    %c2_461 = arith.constant 2 : index
    %262 = memref.load %arg10[%c7_460, %c2_461] : memref<8x4xf32, #tpu.memory_space<smem>>
    %c7_462 = arith.constant 7 : index
    %c3_463 = arith.constant 3 : index
    %263 = memref.load %arg10[%c7_462, %c3_463] : memref<8x4xf32, #tpu.memory_space<smem>>
    %c0_464 = arith.constant 0 : index
    %c0_465 = arith.constant 0 : index
    %c0_466 = arith.constant 0 : index
    %c0_467 = arith.constant 0 : index
    %264 = vector.load %arg2[%c0_464, %c0_465, %c0_466, %c0_467] : memref<1x4x8x72xf32, #tpu.memory_space<vmem>>, vector<1x1x8x72xf32>
    %265 = vector.shape_cast %264 : vector<1x1x8x72xf32> to vector<8x72xf32>
    %266 = vector.broadcast %1 : f32 to vector<8x72xf32>
    %267 = arith.mulf %265, %266 : vector<8x72xf32>
    %268 = vector.broadcast %9 : f32 to vector<8x72xf32>
    %269 = arith.addf %267, %268 : vector<8x72xf32>
    %c0_468 = arith.constant 0 : index
    %c1_469 = arith.constant 1 : index
    %c0_470 = arith.constant 0 : index
    %c0_471 = arith.constant 0 : index
    %270 = vector.load %arg2[%c0_468, %c1_469, %c0_470, %c0_471] : memref<1x4x8x72xf32, #tpu.memory_space<vmem>>, vector<1x1x8x72xf32>
    %271 = vector.shape_cast %270 : vector<1x1x8x72xf32> to vector<8x72xf32>
    %272 = vector.broadcast %3 : f32 to vector<8x72xf32>
    %273 = arith.mulf %271, %272 : vector<8x72xf32>
    %274 = vector.broadcast %11 : f32 to vector<8x72xf32>
    %275 = arith.addf %273, %274 : vector<8x72xf32>
    %c0_472 = arith.constant 0 : index
    %c2_473 = arith.constant 2 : index
    %c0_474 = arith.constant 0 : index
    %c0_475 = arith.constant 0 : index
    %276 = vector.load %arg2[%c0_472, %c2_473, %c0_474, %c0_475] : memref<1x4x8x72xf32, #tpu.memory_space<vmem>>, vector<1x1x8x72xf32>
    %277 = vector.shape_cast %276 : vector<1x1x8x72xf32> to vector<8x72xf32>
    %278 = vector.broadcast %5 : f32 to vector<8x72xf32>
    %279 = arith.mulf %277, %278 : vector<8x72xf32>
    %280 = vector.broadcast %13 : f32 to vector<8x72xf32>
    %281 = arith.addf %279, %280 : vector<8x72xf32>
    %c0_476 = arith.constant 0 : index
    %c3_477 = arith.constant 3 : index
    %c0_478 = arith.constant 0 : index
    %c0_479 = arith.constant 0 : index
    %282 = vector.load %arg2[%c0_476, %c3_477, %c0_478, %c0_479] : memref<1x4x8x72xf32, #tpu.memory_space<vmem>>, vector<1x1x8x72xf32>
    %283 = vector.shape_cast %282 : vector<1x1x8x72xf32> to vector<8x72xf32>
    %284 = vector.broadcast %7 : f32 to vector<8x72xf32>
    %285 = arith.mulf %283, %284 : vector<8x72xf32>
    %286 = vector.broadcast %15 : f32 to vector<8x72xf32>
    %287 = arith.addf %285, %286 : vector<8x72xf32>
    %cst = arith.constant 0.000000e+00 : f32
    %288 = vector.broadcast %cst : f32 to vector<8x72xf32>
    %cst_480 = arith.constant 0.000000e+00 : f32
    %289 = vector.broadcast %cst_480 : f32 to vector<8x72xf32>
    %cst_481 = arith.constant 0.000000e+00 : f32
    %290 = vector.broadcast %cst_481 : f32 to vector<8x72xf32>
    %cst_482 = arith.constant 0.000000e+00 : f32
    %291 = vector.broadcast %cst_482 : f32 to vector<8x72xf32>
    %cst_483 = arith.constant 0.000000e+00 : f32
    %292 = vector.broadcast %cst_483 : f32 to vector<8x72xf32>
    %cst_484 = arith.constant 0.000000e+00 : f32
    %293 = vector.broadcast %cst_484 : f32 to vector<8x72xf32>
    %cst_485 = arith.constant 0.000000e+00 : f32
    %294 = vector.broadcast %cst_485 : f32 to vector<8x72xf32>
    %cst_486 = arith.constant 0.000000e+00 : f32
    %295 = vector.broadcast %cst_486 : f32 to vector<8x72xf32>
    %296 = vector.broadcast %16 : f32 to vector<8x72xf32>
    %297 = arith.mulf %269, %296 : vector<8x72xf32>
    %298 = vector.broadcast %17 : f32 to vector<8x72xf32>
    %299 = arith.mulf %275, %298 : vector<8x72xf32>
    %300 = arith.addf %297, %299 : vector<8x72xf32>
    %301 = vector.broadcast %18 : f32 to vector<8x72xf32>
    %302 = arith.mulf %281, %301 : vector<8x72xf32>
    %303 = arith.addf %300, %302 : vector<8x72xf32>
    %304 = vector.broadcast %19 : f32 to vector<8x72xf32>
    %305 = arith.mulf %287, %304 : vector<8x72xf32>
    %306 = arith.addf %303, %305 : vector<8x72xf32>
    %307 = vector.broadcast %80 : f32 to vector<8x72xf32>
    %308 = arith.addf %306, %307 : vector<8x72xf32>
    %cst_487 = arith.constant 5.000000e-01 : f32
    %309 = vector.broadcast %cst_487 : f32 to vector<8x72xf32>
    %310 = arith.mulf %309, %308 : vector<8x72xf32>
    %cst_488 = arith.constant 4.471500e-02 : f32
    %311 = vector.broadcast %cst_488 : f32 to vector<8x72xf32>
    %312 = arith.mulf %311, %308 : vector<8x72xf32>
    %313 = arith.mulf %312, %308 : vector<8x72xf32>
    %314 = arith.mulf %313, %308 : vector<8x72xf32>
    %315 = arith.addf %308, %314 : vector<8x72xf32>
    %cst_489 = arith.constant 0.797884583 : f32
    %316 = vector.broadcast %cst_489 : f32 to vector<8x72xf32>
    %317 = arith.mulf %316, %315 : vector<8x72xf32>
    %318 = math.tanh %317 : vector<8x72xf32>
    %cst_490 = arith.constant 1.000000e+00 : f32
    %319 = vector.broadcast %cst_490 : f32 to vector<8x72xf32>
    %320 = arith.addf %319, %318 : vector<8x72xf32>
    %321 = arith.mulf %310, %320 : vector<8x72xf32>
    %322 = vector.broadcast %96 : f32 to vector<8x72xf32>
    %323 = arith.mulf %321, %322 : vector<8x72xf32>
    %324 = arith.addf %288, %323 : vector<8x72xf32>
    %325 = vector.broadcast %112 : f32 to vector<8x72xf32>
    %326 = arith.mulf %321, %325 : vector<8x72xf32>
    %327 = arith.addf %289, %326 : vector<8x72xf32>
    %328 = vector.broadcast %128 : f32 to vector<8x72xf32>
    %329 = arith.mulf %321, %328 : vector<8x72xf32>
    %330 = arith.addf %290, %329 : vector<8x72xf32>
    %331 = vector.broadcast %144 : f32 to vector<8x72xf32>
    %332 = arith.mulf %321, %331 : vector<8x72xf32>
    %333 = arith.addf %291, %332 : vector<8x72xf32>
    %334 = vector.broadcast %160 : f32 to vector<8x72xf32>
    %335 = arith.mulf %321, %334 : vector<8x72xf32>
    %336 = arith.addf %292, %335 : vector<8x72xf32>
    %337 = vector.broadcast %176 : f32 to vector<8x72xf32>
    %338 = arith.mulf %321, %337 : vector<8x72xf32>
    %339 = arith.addf %293, %338 : vector<8x72xf32>
    %340 = vector.broadcast %192 : f32 to vector<8x72xf32>
    %341 = arith.mulf %321, %340 : vector<8x72xf32>
    %342 = arith.addf %294, %341 : vector<8x72xf32>
    %343 = vector.broadcast %208 : f32 to vector<8x72xf32>
    %344 = arith.mulf %321, %343 : vector<8x72xf32>
    %345 = arith.addf %295, %344 : vector<8x72xf32>
    %346 = vector.broadcast %20 : f32 to vector<8x72xf32>
    %347 = arith.mulf %269, %346 : vector<8x72xf32>
    %348 = vector.broadcast %21 : f32 to vector<8x72xf32>
    %349 = arith.mulf %275, %348 : vector<8x72xf32>
    %350 = arith.addf %347, %349 : vector<8x72xf32>
    %351 = vector.broadcast %22 : f32 to vector<8x72xf32>
    %352 = arith.mulf %281, %351 : vector<8x72xf32>
    %353 = arith.addf %350, %352 : vector<8x72xf32>
    %354 = vector.broadcast %23 : f32 to vector<8x72xf32>
    %355 = arith.mulf %287, %354 : vector<8x72xf32>
    %356 = arith.addf %353, %355 : vector<8x72xf32>
    %357 = vector.broadcast %81 : f32 to vector<8x72xf32>
    %358 = arith.addf %356, %357 : vector<8x72xf32>
    %cst_491 = arith.constant 5.000000e-01 : f32
    %359 = vector.broadcast %cst_491 : f32 to vector<8x72xf32>
    %360 = arith.mulf %359, %358 : vector<8x72xf32>
    %cst_492 = arith.constant 4.471500e-02 : f32
    %361 = vector.broadcast %cst_492 : f32 to vector<8x72xf32>
    %362 = arith.mulf %361, %358 : vector<8x72xf32>
    %363 = arith.mulf %362, %358 : vector<8x72xf32>
    %364 = arith.mulf %363, %358 : vector<8x72xf32>
    %365 = arith.addf %358, %364 : vector<8x72xf32>
    %cst_493 = arith.constant 0.797884583 : f32
    %366 = vector.broadcast %cst_493 : f32 to vector<8x72xf32>
    %367 = arith.mulf %366, %365 : vector<8x72xf32>
    %368 = math.tanh %367 : vector<8x72xf32>
    %cst_494 = arith.constant 1.000000e+00 : f32
    %369 = vector.broadcast %cst_494 : f32 to vector<8x72xf32>
    %370 = arith.addf %369, %368 : vector<8x72xf32>
    %371 = arith.mulf %360, %370 : vector<8x72xf32>
    %372 = vector.broadcast %97 : f32 to vector<8x72xf32>
    %373 = arith.mulf %371, %372 : vector<8x72xf32>
    %374 = arith.addf %324, %373 : vector<8x72xf32>
    %375 = vector.broadcast %113 : f32 to vector<8x72xf32>
    %376 = arith.mulf %371, %375 : vector<8x72xf32>
    %377 = arith.addf %327, %376 : vector<8x72xf32>
    %378 = vector.broadcast %129 : f32 to vector<8x72xf32>
    %379 = arith.mulf %371, %378 : vector<8x72xf32>
    %380 = arith.addf %330, %379 : vector<8x72xf32>
    %381 = vector.broadcast %145 : f32 to vector<8x72xf32>
    %382 = arith.mulf %371, %381 : vector<8x72xf32>
    %383 = arith.addf %333, %382 : vector<8x72xf32>
    %384 = vector.broadcast %161 : f32 to vector<8x72xf32>
    %385 = arith.mulf %371, %384 : vector<8x72xf32>
    %386 = arith.addf %336, %385 : vector<8x72xf32>
    %387 = vector.broadcast %177 : f32 to vector<8x72xf32>
    %388 = arith.mulf %371, %387 : vector<8x72xf32>
    %389 = arith.addf %339, %388 : vector<8x72xf32>
    %390 = vector.broadcast %193 : f32 to vector<8x72xf32>
    %391 = arith.mulf %371, %390 : vector<8x72xf32>
    %392 = arith.addf %342, %391 : vector<8x72xf32>
    %393 = vector.broadcast %209 : f32 to vector<8x72xf32>
    %394 = arith.mulf %371, %393 : vector<8x72xf32>
    %395 = arith.addf %345, %394 : vector<8x72xf32>
    %396 = vector.broadcast %24 : f32 to vector<8x72xf32>
    %397 = arith.mulf %269, %396 : vector<8x72xf32>
    %398 = vector.broadcast %25 : f32 to vector<8x72xf32>
    %399 = arith.mulf %275, %398 : vector<8x72xf32>
    %400 = arith.addf %397, %399 : vector<8x72xf32>
    %401 = vector.broadcast %26 : f32 to vector<8x72xf32>
    %402 = arith.mulf %281, %401 : vector<8x72xf32>
    %403 = arith.addf %400, %402 : vector<8x72xf32>
    %404 = vector.broadcast %27 : f32 to vector<8x72xf32>
    %405 = arith.mulf %287, %404 : vector<8x72xf32>
    %406 = arith.addf %403, %405 : vector<8x72xf32>
    %407 = vector.broadcast %82 : f32 to vector<8x72xf32>
    %408 = arith.addf %406, %407 : vector<8x72xf32>
    %cst_495 = arith.constant 5.000000e-01 : f32
    %409 = vector.broadcast %cst_495 : f32 to vector<8x72xf32>
    %410 = arith.mulf %409, %408 : vector<8x72xf32>
    %cst_496 = arith.constant 4.471500e-02 : f32
    %411 = vector.broadcast %cst_496 : f32 to vector<8x72xf32>
    %412 = arith.mulf %411, %408 : vector<8x72xf32>
    %413 = arith.mulf %412, %408 : vector<8x72xf32>
    %414 = arith.mulf %413, %408 : vector<8x72xf32>
    %415 = arith.addf %408, %414 : vector<8x72xf32>
    %cst_497 = arith.constant 0.797884583 : f32
    %416 = vector.broadcast %cst_497 : f32 to vector<8x72xf32>
    %417 = arith.mulf %416, %415 : vector<8x72xf32>
    %418 = math.tanh %417 : vector<8x72xf32>
    %cst_498 = arith.constant 1.000000e+00 : f32
    %419 = vector.broadcast %cst_498 : f32 to vector<8x72xf32>
    %420 = arith.addf %419, %418 : vector<8x72xf32>
    %421 = arith.mulf %410, %420 : vector<8x72xf32>
    %422 = vector.broadcast %98 : f32 to vector<8x72xf32>
    %423 = arith.mulf %421, %422 : vector<8x72xf32>
    %424 = arith.addf %374, %423 : vector<8x72xf32>
    %425 = vector.broadcast %114 : f32 to vector<8x72xf32>
    %426 = arith.mulf %421, %425 : vector<8x72xf32>
    %427 = arith.addf %377, %426 : vector<8x72xf32>
    %428 = vector.broadcast %130 : f32 to vector<8x72xf32>
    %429 = arith.mulf %421, %428 : vector<8x72xf32>
    %430 = arith.addf %380, %429 : vector<8x72xf32>
    %431 = vector.broadcast %146 : f32 to vector<8x72xf32>
    %432 = arith.mulf %421, %431 : vector<8x72xf32>
    %433 = arith.addf %383, %432 : vector<8x72xf32>
    %434 = vector.broadcast %162 : f32 to vector<8x72xf32>
    %435 = arith.mulf %421, %434 : vector<8x72xf32>
    %436 = arith.addf %386, %435 : vector<8x72xf32>
    %437 = vector.broadcast %178 : f32 to vector<8x72xf32>
    %438 = arith.mulf %421, %437 : vector<8x72xf32>
    %439 = arith.addf %389, %438 : vector<8x72xf32>
    %440 = vector.broadcast %194 : f32 to vector<8x72xf32>
    %441 = arith.mulf %421, %440 : vector<8x72xf32>
    %442 = arith.addf %392, %441 : vector<8x72xf32>
    %443 = vector.broadcast %210 : f32 to vector<8x72xf32>
    %444 = arith.mulf %421, %443 : vector<8x72xf32>
    %445 = arith.addf %395, %444 : vector<8x72xf32>
    %446 = vector.broadcast %28 : f32 to vector<8x72xf32>
    %447 = arith.mulf %269, %446 : vector<8x72xf32>
    %448 = vector.broadcast %29 : f32 to vector<8x72xf32>
    %449 = arith.mulf %275, %448 : vector<8x72xf32>
    %450 = arith.addf %447, %449 : vector<8x72xf32>
    %451 = vector.broadcast %30 : f32 to vector<8x72xf32>
    %452 = arith.mulf %281, %451 : vector<8x72xf32>
    %453 = arith.addf %450, %452 : vector<8x72xf32>
    %454 = vector.broadcast %31 : f32 to vector<8x72xf32>
    %455 = arith.mulf %287, %454 : vector<8x72xf32>
    %456 = arith.addf %453, %455 : vector<8x72xf32>
    %457 = vector.broadcast %83 : f32 to vector<8x72xf32>
    %458 = arith.addf %456, %457 : vector<8x72xf32>
    %cst_499 = arith.constant 5.000000e-01 : f32
    %459 = vector.broadcast %cst_499 : f32 to vector<8x72xf32>
    %460 = arith.mulf %459, %458 : vector<8x72xf32>
    %cst_500 = arith.constant 4.471500e-02 : f32
    %461 = vector.broadcast %cst_500 : f32 to vector<8x72xf32>
    %462 = arith.mulf %461, %458 : vector<8x72xf32>
    %463 = arith.mulf %462, %458 : vector<8x72xf32>
    %464 = arith.mulf %463, %458 : vector<8x72xf32>
    %465 = arith.addf %458, %464 : vector<8x72xf32>
    %cst_501 = arith.constant 0.797884583 : f32
    %466 = vector.broadcast %cst_501 : f32 to vector<8x72xf32>
    %467 = arith.mulf %466, %465 : vector<8x72xf32>
    %468 = math.tanh %467 : vector<8x72xf32>
    %cst_502 = arith.constant 1.000000e+00 : f32
    %469 = vector.broadcast %cst_502 : f32 to vector<8x72xf32>
    %470 = arith.addf %469, %468 : vector<8x72xf32>
    %471 = arith.mulf %460, %470 : vector<8x72xf32>
    %472 = vector.broadcast %99 : f32 to vector<8x72xf32>
    %473 = arith.mulf %471, %472 : vector<8x72xf32>
    %474 = arith.addf %424, %473 : vector<8x72xf32>
    %475 = vector.broadcast %115 : f32 to vector<8x72xf32>
    %476 = arith.mulf %471, %475 : vector<8x72xf32>
    %477 = arith.addf %427, %476 : vector<8x72xf32>
    %478 = vector.broadcast %131 : f32 to vector<8x72xf32>
    %479 = arith.mulf %471, %478 : vector<8x72xf32>
    %480 = arith.addf %430, %479 : vector<8x72xf32>
    %481 = vector.broadcast %147 : f32 to vector<8x72xf32>
    %482 = arith.mulf %471, %481 : vector<8x72xf32>
    %483 = arith.addf %433, %482 : vector<8x72xf32>
    %484 = vector.broadcast %163 : f32 to vector<8x72xf32>
    %485 = arith.mulf %471, %484 : vector<8x72xf32>
    %486 = arith.addf %436, %485 : vector<8x72xf32>
    %487 = vector.broadcast %179 : f32 to vector<8x72xf32>
    %488 = arith.mulf %471, %487 : vector<8x72xf32>
    %489 = arith.addf %439, %488 : vector<8x72xf32>
    %490 = vector.broadcast %195 : f32 to vector<8x72xf32>
    %491 = arith.mulf %471, %490 : vector<8x72xf32>
    %492 = arith.addf %442, %491 : vector<8x72xf32>
    %493 = vector.broadcast %211 : f32 to vector<8x72xf32>
    %494 = arith.mulf %471, %493 : vector<8x72xf32>
    %495 = arith.addf %445, %494 : vector<8x72xf32>
    %496 = vector.broadcast %32 : f32 to vector<8x72xf32>
    %497 = arith.mulf %269, %496 : vector<8x72xf32>
    %498 = vector.broadcast %33 : f32 to vector<8x72xf32>
    %499 = arith.mulf %275, %498 : vector<8x72xf32>
    %500 = arith.addf %497, %499 : vector<8x72xf32>
    %501 = vector.broadcast %34 : f32 to vector<8x72xf32>
    %502 = arith.mulf %281, %501 : vector<8x72xf32>
    %503 = arith.addf %500, %502 : vector<8x72xf32>
    %504 = vector.broadcast %35 : f32 to vector<8x72xf32>
    %505 = arith.mulf %287, %504 : vector<8x72xf32>
    %506 = arith.addf %503, %505 : vector<8x72xf32>
    %507 = vector.broadcast %84 : f32 to vector<8x72xf32>
    %508 = arith.addf %506, %507 : vector<8x72xf32>
    %cst_503 = arith.constant 5.000000e-01 : f32
    %509 = vector.broadcast %cst_503 : f32 to vector<8x72xf32>
    %510 = arith.mulf %509, %508 : vector<8x72xf32>
    %cst_504 = arith.constant 4.471500e-02 : f32
    %511 = vector.broadcast %cst_504 : f32 to vector<8x72xf32>
    %512 = arith.mulf %511, %508 : vector<8x72xf32>
    %513 = arith.mulf %512, %508 : vector<8x72xf32>
    %514 = arith.mulf %513, %508 : vector<8x72xf32>
    %515 = arith.addf %508, %514 : vector<8x72xf32>
    %cst_505 = arith.constant 0.797884583 : f32
    %516 = vector.broadcast %cst_505 : f32 to vector<8x72xf32>
    %517 = arith.mulf %516, %515 : vector<8x72xf32>
    %518 = math.tanh %517 : vector<8x72xf32>
    %cst_506 = arith.constant 1.000000e+00 : f32
    %519 = vector.broadcast %cst_506 : f32 to vector<8x72xf32>
    %520 = arith.addf %519, %518 : vector<8x72xf32>
    %521 = arith.mulf %510, %520 : vector<8x72xf32>
    %522 = vector.broadcast %100 : f32 to vector<8x72xf32>
    %523 = arith.mulf %521, %522 : vector<8x72xf32>
    %524 = arith.addf %474, %523 : vector<8x72xf32>
    %525 = vector.broadcast %116 : f32 to vector<8x72xf32>
    %526 = arith.mulf %521, %525 : vector<8x72xf32>
    %527 = arith.addf %477, %526 : vector<8x72xf32>
    %528 = vector.broadcast %132 : f32 to vector<8x72xf32>
    %529 = arith.mulf %521, %528 : vector<8x72xf32>
    %530 = arith.addf %480, %529 : vector<8x72xf32>
    %531 = vector.broadcast %148 : f32 to vector<8x72xf32>
    %532 = arith.mulf %521, %531 : vector<8x72xf32>
    %533 = arith.addf %483, %532 : vector<8x72xf32>
    %534 = vector.broadcast %164 : f32 to vector<8x72xf32>
    %535 = arith.mulf %521, %534 : vector<8x72xf32>
    %536 = arith.addf %486, %535 : vector<8x72xf32>
    %537 = vector.broadcast %180 : f32 to vector<8x72xf32>
    %538 = arith.mulf %521, %537 : vector<8x72xf32>
    %539 = arith.addf %489, %538 : vector<8x72xf32>
    %540 = vector.broadcast %196 : f32 to vector<8x72xf32>
    %541 = arith.mulf %521, %540 : vector<8x72xf32>
    %542 = arith.addf %492, %541 : vector<8x72xf32>
    %543 = vector.broadcast %212 : f32 to vector<8x72xf32>
    %544 = arith.mulf %521, %543 : vector<8x72xf32>
    %545 = arith.addf %495, %544 : vector<8x72xf32>
    %546 = vector.broadcast %36 : f32 to vector<8x72xf32>
    %547 = arith.mulf %269, %546 : vector<8x72xf32>
    %548 = vector.broadcast %37 : f32 to vector<8x72xf32>
    %549 = arith.mulf %275, %548 : vector<8x72xf32>
    %550 = arith.addf %547, %549 : vector<8x72xf32>
    %551 = vector.broadcast %38 : f32 to vector<8x72xf32>
    %552 = arith.mulf %281, %551 : vector<8x72xf32>
    %553 = arith.addf %550, %552 : vector<8x72xf32>
    %554 = vector.broadcast %39 : f32 to vector<8x72xf32>
    %555 = arith.mulf %287, %554 : vector<8x72xf32>
    %556 = arith.addf %553, %555 : vector<8x72xf32>
    %557 = vector.broadcast %85 : f32 to vector<8x72xf32>
    %558 = arith.addf %556, %557 : vector<8x72xf32>
    %cst_507 = arith.constant 5.000000e-01 : f32
    %559 = vector.broadcast %cst_507 : f32 to vector<8x72xf32>
    %560 = arith.mulf %559, %558 : vector<8x72xf32>
    %cst_508 = arith.constant 4.471500e-02 : f32
    %561 = vector.broadcast %cst_508 : f32 to vector<8x72xf32>
    %562 = arith.mulf %561, %558 : vector<8x72xf32>
    %563 = arith.mulf %562, %558 : vector<8x72xf32>
    %564 = arith.mulf %563, %558 : vector<8x72xf32>
    %565 = arith.addf %558, %564 : vector<8x72xf32>
    %cst_509 = arith.constant 0.797884583 : f32
    %566 = vector.broadcast %cst_509 : f32 to vector<8x72xf32>
    %567 = arith.mulf %566, %565 : vector<8x72xf32>
    %568 = math.tanh %567 : vector<8x72xf32>
    %cst_510 = arith.constant 1.000000e+00 : f32
    %569 = vector.broadcast %cst_510 : f32 to vector<8x72xf32>
    %570 = arith.addf %569, %568 : vector<8x72xf32>
    %571 = arith.mulf %560, %570 : vector<8x72xf32>
    %572 = vector.broadcast %101 : f32 to vector<8x72xf32>
    %573 = arith.mulf %571, %572 : vector<8x72xf32>
    %574 = arith.addf %524, %573 : vector<8x72xf32>
    %575 = vector.broadcast %117 : f32 to vector<8x72xf32>
    %576 = arith.mulf %571, %575 : vector<8x72xf32>
    %577 = arith.addf %527, %576 : vector<8x72xf32>
    %578 = vector.broadcast %133 : f32 to vector<8x72xf32>
    %579 = arith.mulf %571, %578 : vector<8x72xf32>
    %580 = arith.addf %530, %579 : vector<8x72xf32>
    %581 = vector.broadcast %149 : f32 to vector<8x72xf32>
    %582 = arith.mulf %571, %581 : vector<8x72xf32>
    %583 = arith.addf %533, %582 : vector<8x72xf32>
    %584 = vector.broadcast %165 : f32 to vector<8x72xf32>
    %585 = arith.mulf %571, %584 : vector<8x72xf32>
    %586 = arith.addf %536, %585 : vector<8x72xf32>
    %587 = vector.broadcast %181 : f32 to vector<8x72xf32>
    %588 = arith.mulf %571, %587 : vector<8x72xf32>
    %589 = arith.addf %539, %588 : vector<8x72xf32>
    %590 = vector.broadcast %197 : f32 to vector<8x72xf32>
    %591 = arith.mulf %571, %590 : vector<8x72xf32>
    %592 = arith.addf %542, %591 : vector<8x72xf32>
    %593 = vector.broadcast %213 : f32 to vector<8x72xf32>
    %594 = arith.mulf %571, %593 : vector<8x72xf32>
    %595 = arith.addf %545, %594 : vector<8x72xf32>
    %596 = vector.broadcast %40 : f32 to vector<8x72xf32>
    %597 = arith.mulf %269, %596 : vector<8x72xf32>
    %598 = vector.broadcast %41 : f32 to vector<8x72xf32>
    %599 = arith.mulf %275, %598 : vector<8x72xf32>
    %600 = arith.addf %597, %599 : vector<8x72xf32>
    %601 = vector.broadcast %42 : f32 to vector<8x72xf32>
    %602 = arith.mulf %281, %601 : vector<8x72xf32>
    %603 = arith.addf %600, %602 : vector<8x72xf32>
    %604 = vector.broadcast %43 : f32 to vector<8x72xf32>
    %605 = arith.mulf %287, %604 : vector<8x72xf32>
    %606 = arith.addf %603, %605 : vector<8x72xf32>
    %607 = vector.broadcast %86 : f32 to vector<8x72xf32>
    %608 = arith.addf %606, %607 : vector<8x72xf32>
    %cst_511 = arith.constant 5.000000e-01 : f32
    %609 = vector.broadcast %cst_511 : f32 to vector<8x72xf32>
    %610 = arith.mulf %609, %608 : vector<8x72xf32>
    %cst_512 = arith.constant 4.471500e-02 : f32
    %611 = vector.broadcast %cst_512 : f32 to vector<8x72xf32>
    %612 = arith.mulf %611, %608 : vector<8x72xf32>
    %613 = arith.mulf %612, %608 : vector<8x72xf32>
    %614 = arith.mulf %613, %608 : vector<8x72xf32>
    %615 = arith.addf %608, %614 : vector<8x72xf32>
    %cst_513 = arith.constant 0.797884583 : f32
    %616 = vector.broadcast %cst_513 : f32 to vector<8x72xf32>
    %617 = arith.mulf %616, %615 : vector<8x72xf32>
    %618 = math.tanh %617 : vector<8x72xf32>
    %cst_514 = arith.constant 1.000000e+00 : f32
    %619 = vector.broadcast %cst_514 : f32 to vector<8x72xf32>
    %620 = arith.addf %619, %618 : vector<8x72xf32>
    %621 = arith.mulf %610, %620 : vector<8x72xf32>
    %622 = vector.broadcast %102 : f32 to vector<8x72xf32>
    %623 = arith.mulf %621, %622 : vector<8x72xf32>
    %624 = arith.addf %574, %623 : vector<8x72xf32>
    %625 = vector.broadcast %118 : f32 to vector<8x72xf32>
    %626 = arith.mulf %621, %625 : vector<8x72xf32>
    %627 = arith.addf %577, %626 : vector<8x72xf32>
    %628 = vector.broadcast %134 : f32 to vector<8x72xf32>
    %629 = arith.mulf %621, %628 : vector<8x72xf32>
    %630 = arith.addf %580, %629 : vector<8x72xf32>
    %631 = vector.broadcast %150 : f32 to vector<8x72xf32>
    %632 = arith.mulf %621, %631 : vector<8x72xf32>
    %633 = arith.addf %583, %632 : vector<8x72xf32>
    %634 = vector.broadcast %166 : f32 to vector<8x72xf32>
    %635 = arith.mulf %621, %634 : vector<8x72xf32>
    %636 = arith.addf %586, %635 : vector<8x72xf32>
    %637 = vector.broadcast %182 : f32 to vector<8x72xf32>
    %638 = arith.mulf %621, %637 : vector<8x72xf32>
    %639 = arith.addf %589, %638 : vector<8x72xf32>
    %640 = vector.broadcast %198 : f32 to vector<8x72xf32>
    %641 = arith.mulf %621, %640 : vector<8x72xf32>
    %642 = arith.addf %592, %641 : vector<8x72xf32>
    %643 = vector.broadcast %214 : f32 to vector<8x72xf32>
    %644 = arith.mulf %621, %643 : vector<8x72xf32>
    %645 = arith.addf %595, %644 : vector<8x72xf32>
    %646 = vector.broadcast %44 : f32 to vector<8x72xf32>
    %647 = arith.mulf %269, %646 : vector<8x72xf32>
    %648 = vector.broadcast %45 : f32 to vector<8x72xf32>
    %649 = arith.mulf %275, %648 : vector<8x72xf32>
    %650 = arith.addf %647, %649 : vector<8x72xf32>
    %651 = vector.broadcast %46 : f32 to vector<8x72xf32>
    %652 = arith.mulf %281, %651 : vector<8x72xf32>
    %653 = arith.addf %650, %652 : vector<8x72xf32>
    %654 = vector.broadcast %47 : f32 to vector<8x72xf32>
    %655 = arith.mulf %287, %654 : vector<8x72xf32>
    %656 = arith.addf %653, %655 : vector<8x72xf32>
    %657 = vector.broadcast %87 : f32 to vector<8x72xf32>
    %658 = arith.addf %656, %657 : vector<8x72xf32>
    %cst_515 = arith.constant 5.000000e-01 : f32
    %659 = vector.broadcast %cst_515 : f32 to vector<8x72xf32>
    %660 = arith.mulf %659, %658 : vector<8x72xf32>
    %cst_516 = arith.constant 4.471500e-02 : f32
    %661 = vector.broadcast %cst_516 : f32 to vector<8x72xf32>
    %662 = arith.mulf %661, %658 : vector<8x72xf32>
    %663 = arith.mulf %662, %658 : vector<8x72xf32>
    %664 = arith.mulf %663, %658 : vector<8x72xf32>
    %665 = arith.addf %658, %664 : vector<8x72xf32>
    %cst_517 = arith.constant 0.797884583 : f32
    %666 = vector.broadcast %cst_517 : f32 to vector<8x72xf32>
    %667 = arith.mulf %666, %665 : vector<8x72xf32>
    %668 = math.tanh %667 : vector<8x72xf32>
    %cst_518 = arith.constant 1.000000e+00 : f32
    %669 = vector.broadcast %cst_518 : f32 to vector<8x72xf32>
    %670 = arith.addf %669, %668 : vector<8x72xf32>
    %671 = arith.mulf %660, %670 : vector<8x72xf32>
    %672 = vector.broadcast %103 : f32 to vector<8x72xf32>
    %673 = arith.mulf %671, %672 : vector<8x72xf32>
    %674 = arith.addf %624, %673 : vector<8x72xf32>
    %675 = vector.broadcast %119 : f32 to vector<8x72xf32>
    %676 = arith.mulf %671, %675 : vector<8x72xf32>
    %677 = arith.addf %627, %676 : vector<8x72xf32>
    %678 = vector.broadcast %135 : f32 to vector<8x72xf32>
    %679 = arith.mulf %671, %678 : vector<8x72xf32>
    %680 = arith.addf %630, %679 : vector<8x72xf32>
    %681 = vector.broadcast %151 : f32 to vector<8x72xf32>
    %682 = arith.mulf %671, %681 : vector<8x72xf32>
    %683 = arith.addf %633, %682 : vector<8x72xf32>
    %684 = vector.broadcast %167 : f32 to vector<8x72xf32>
    %685 = arith.mulf %671, %684 : vector<8x72xf32>
    %686 = arith.addf %636, %685 : vector<8x72xf32>
    %687 = vector.broadcast %183 : f32 to vector<8x72xf32>
    %688 = arith.mulf %671, %687 : vector<8x72xf32>
    %689 = arith.addf %639, %688 : vector<8x72xf32>
    %690 = vector.broadcast %199 : f32 to vector<8x72xf32>
    %691 = arith.mulf %671, %690 : vector<8x72xf32>
    %692 = arith.addf %642, %691 : vector<8x72xf32>
    %693 = vector.broadcast %215 : f32 to vector<8x72xf32>
    %694 = arith.mulf %671, %693 : vector<8x72xf32>
    %695 = arith.addf %645, %694 : vector<8x72xf32>
    %696 = vector.broadcast %48 : f32 to vector<8x72xf32>
    %697 = arith.mulf %269, %696 : vector<8x72xf32>
    %698 = vector.broadcast %49 : f32 to vector<8x72xf32>
    %699 = arith.mulf %275, %698 : vector<8x72xf32>
    %700 = arith.addf %697, %699 : vector<8x72xf32>
    %701 = vector.broadcast %50 : f32 to vector<8x72xf32>
    %702 = arith.mulf %281, %701 : vector<8x72xf32>
    %703 = arith.addf %700, %702 : vector<8x72xf32>
    %704 = vector.broadcast %51 : f32 to vector<8x72xf32>
    %705 = arith.mulf %287, %704 : vector<8x72xf32>
    %706 = arith.addf %703, %705 : vector<8x72xf32>
    %707 = vector.broadcast %88 : f32 to vector<8x72xf32>
    %708 = arith.addf %706, %707 : vector<8x72xf32>
    %cst_519 = arith.constant 5.000000e-01 : f32
    %709 = vector.broadcast %cst_519 : f32 to vector<8x72xf32>
    %710 = arith.mulf %709, %708 : vector<8x72xf32>
    %cst_520 = arith.constant 4.471500e-02 : f32
    %711 = vector.broadcast %cst_520 : f32 to vector<8x72xf32>
    %712 = arith.mulf %711, %708 : vector<8x72xf32>
    %713 = arith.mulf %712, %708 : vector<8x72xf32>
    %714 = arith.mulf %713, %708 : vector<8x72xf32>
    %715 = arith.addf %708, %714 : vector<8x72xf32>
    %cst_521 = arith.constant 0.797884583 : f32
    %716 = vector.broadcast %cst_521 : f32 to vector<8x72xf32>
    %717 = arith.mulf %716, %715 : vector<8x72xf32>
    %718 = math.tanh %717 : vector<8x72xf32>
    %cst_522 = arith.constant 1.000000e+00 : f32
    %719 = vector.broadcast %cst_522 : f32 to vector<8x72xf32>
    %720 = arith.addf %719, %718 : vector<8x72xf32>
    %721 = arith.mulf %710, %720 : vector<8x72xf32>
    %722 = vector.broadcast %104 : f32 to vector<8x72xf32>
    %723 = arith.mulf %721, %722 : vector<8x72xf32>
    %724 = arith.addf %674, %723 : vector<8x72xf32>
    %725 = vector.broadcast %120 : f32 to vector<8x72xf32>
    %726 = arith.mulf %721, %725 : vector<8x72xf32>
    %727 = arith.addf %677, %726 : vector<8x72xf32>
    %728 = vector.broadcast %136 : f32 to vector<8x72xf32>
    %729 = arith.mulf %721, %728 : vector<8x72xf32>
    %730 = arith.addf %680, %729 : vector<8x72xf32>
    %731 = vector.broadcast %152 : f32 to vector<8x72xf32>
    %732 = arith.mulf %721, %731 : vector<8x72xf32>
    %733 = arith.addf %683, %732 : vector<8x72xf32>
    %734 = vector.broadcast %168 : f32 to vector<8x72xf32>
    %735 = arith.mulf %721, %734 : vector<8x72xf32>
    %736 = arith.addf %686, %735 : vector<8x72xf32>
    %737 = vector.broadcast %184 : f32 to vector<8x72xf32>
    %738 = arith.mulf %721, %737 : vector<8x72xf32>
    %739 = arith.addf %689, %738 : vector<8x72xf32>
    %740 = vector.broadcast %200 : f32 to vector<8x72xf32>
    %741 = arith.mulf %721, %740 : vector<8x72xf32>
    %742 = arith.addf %692, %741 : vector<8x72xf32>
    %743 = vector.broadcast %216 : f32 to vector<8x72xf32>
    %744 = arith.mulf %721, %743 : vector<8x72xf32>
    %745 = arith.addf %695, %744 : vector<8x72xf32>
    %746 = vector.broadcast %52 : f32 to vector<8x72xf32>
    %747 = arith.mulf %269, %746 : vector<8x72xf32>
    %748 = vector.broadcast %53 : f32 to vector<8x72xf32>
    %749 = arith.mulf %275, %748 : vector<8x72xf32>
    %750 = arith.addf %747, %749 : vector<8x72xf32>
    %751 = vector.broadcast %54 : f32 to vector<8x72xf32>
    %752 = arith.mulf %281, %751 : vector<8x72xf32>
    %753 = arith.addf %750, %752 : vector<8x72xf32>
    %754 = vector.broadcast %55 : f32 to vector<8x72xf32>
    %755 = arith.mulf %287, %754 : vector<8x72xf32>
    %756 = arith.addf %753, %755 : vector<8x72xf32>
    %757 = vector.broadcast %89 : f32 to vector<8x72xf32>
    %758 = arith.addf %756, %757 : vector<8x72xf32>
    %cst_523 = arith.constant 5.000000e-01 : f32
    %759 = vector.broadcast %cst_523 : f32 to vector<8x72xf32>
    %760 = arith.mulf %759, %758 : vector<8x72xf32>
    %cst_524 = arith.constant 4.471500e-02 : f32
    %761 = vector.broadcast %cst_524 : f32 to vector<8x72xf32>
    %762 = arith.mulf %761, %758 : vector<8x72xf32>
    %763 = arith.mulf %762, %758 : vector<8x72xf32>
    %764 = arith.mulf %763, %758 : vector<8x72xf32>
    %765 = arith.addf %758, %764 : vector<8x72xf32>
    %cst_525 = arith.constant 0.797884583 : f32
    %766 = vector.broadcast %cst_525 : f32 to vector<8x72xf32>
    %767 = arith.mulf %766, %765 : vector<8x72xf32>
    %768 = math.tanh %767 : vector<8x72xf32>
    %cst_526 = arith.constant 1.000000e+00 : f32
    %769 = vector.broadcast %cst_526 : f32 to vector<8x72xf32>
    %770 = arith.addf %769, %768 : vector<8x72xf32>
    %771 = arith.mulf %760, %770 : vector<8x72xf32>
    %772 = vector.broadcast %105 : f32 to vector<8x72xf32>
    %773 = arith.mulf %771, %772 : vector<8x72xf32>
    %774 = arith.addf %724, %773 : vector<8x72xf32>
    %775 = vector.broadcast %121 : f32 to vector<8x72xf32>
    %776 = arith.mulf %771, %775 : vector<8x72xf32>
    %777 = arith.addf %727, %776 : vector<8x72xf32>
    %778 = vector.broadcast %137 : f32 to vector<8x72xf32>
    %779 = arith.mulf %771, %778 : vector<8x72xf32>
    %780 = arith.addf %730, %779 : vector<8x72xf32>
    %781 = vector.broadcast %153 : f32 to vector<8x72xf32>
    %782 = arith.mulf %771, %781 : vector<8x72xf32>
    %783 = arith.addf %733, %782 : vector<8x72xf32>
    %784 = vector.broadcast %169 : f32 to vector<8x72xf32>
    %785 = arith.mulf %771, %784 : vector<8x72xf32>
    %786 = arith.addf %736, %785 : vector<8x72xf32>
    %787 = vector.broadcast %185 : f32 to vector<8x72xf32>
    %788 = arith.mulf %771, %787 : vector<8x72xf32>
    %789 = arith.addf %739, %788 : vector<8x72xf32>
    %790 = vector.broadcast %201 : f32 to vector<8x72xf32>
    %791 = arith.mulf %771, %790 : vector<8x72xf32>
    %792 = arith.addf %742, %791 : vector<8x72xf32>
    %793 = vector.broadcast %217 : f32 to vector<8x72xf32>
    %794 = arith.mulf %771, %793 : vector<8x72xf32>
    %795 = arith.addf %745, %794 : vector<8x72xf32>
    %796 = vector.broadcast %56 : f32 to vector<8x72xf32>
    %797 = arith.mulf %269, %796 : vector<8x72xf32>
    %798 = vector.broadcast %57 : f32 to vector<8x72xf32>
    %799 = arith.mulf %275, %798 : vector<8x72xf32>
    %800 = arith.addf %797, %799 : vector<8x72xf32>
    %801 = vector.broadcast %58 : f32 to vector<8x72xf32>
    %802 = arith.mulf %281, %801 : vector<8x72xf32>
    %803 = arith.addf %800, %802 : vector<8x72xf32>
    %804 = vector.broadcast %59 : f32 to vector<8x72xf32>
    %805 = arith.mulf %287, %804 : vector<8x72xf32>
    %806 = arith.addf %803, %805 : vector<8x72xf32>
    %807 = vector.broadcast %90 : f32 to vector<8x72xf32>
    %808 = arith.addf %806, %807 : vector<8x72xf32>
    %cst_527 = arith.constant 5.000000e-01 : f32
    %809 = vector.broadcast %cst_527 : f32 to vector<8x72xf32>
    %810 = arith.mulf %809, %808 : vector<8x72xf32>
    %cst_528 = arith.constant 4.471500e-02 : f32
    %811 = vector.broadcast %cst_528 : f32 to vector<8x72xf32>
    %812 = arith.mulf %811, %808 : vector<8x72xf32>
    %813 = arith.mulf %812, %808 : vector<8x72xf32>
    %814 = arith.mulf %813, %808 : vector<8x72xf32>
    %815 = arith.addf %808, %814 : vector<8x72xf32>
    %cst_529 = arith.constant 0.797884583 : f32
    %816 = vector.broadcast %cst_529 : f32 to vector<8x72xf32>
    %817 = arith.mulf %816, %815 : vector<8x72xf32>
    %818 = math.tanh %817 : vector<8x72xf32>
    %cst_530 = arith.constant 1.000000e+00 : f32
    %819 = vector.broadcast %cst_530 : f32 to vector<8x72xf32>
    %820 = arith.addf %819, %818 : vector<8x72xf32>
    %821 = arith.mulf %810, %820 : vector<8x72xf32>
    %822 = vector.broadcast %106 : f32 to vector<8x72xf32>
    %823 = arith.mulf %821, %822 : vector<8x72xf32>
    %824 = arith.addf %774, %823 : vector<8x72xf32>
    %825 = vector.broadcast %122 : f32 to vector<8x72xf32>
    %826 = arith.mulf %821, %825 : vector<8x72xf32>
    %827 = arith.addf %777, %826 : vector<8x72xf32>
    %828 = vector.broadcast %138 : f32 to vector<8x72xf32>
    %829 = arith.mulf %821, %828 : vector<8x72xf32>
    %830 = arith.addf %780, %829 : vector<8x72xf32>
    %831 = vector.broadcast %154 : f32 to vector<8x72xf32>
    %832 = arith.mulf %821, %831 : vector<8x72xf32>
    %833 = arith.addf %783, %832 : vector<8x72xf32>
    %834 = vector.broadcast %170 : f32 to vector<8x72xf32>
    %835 = arith.mulf %821, %834 : vector<8x72xf32>
    %836 = arith.addf %786, %835 : vector<8x72xf32>
    %837 = vector.broadcast %186 : f32 to vector<8x72xf32>
    %838 = arith.mulf %821, %837 : vector<8x72xf32>
    %839 = arith.addf %789, %838 : vector<8x72xf32>
    %840 = vector.broadcast %202 : f32 to vector<8x72xf32>
    %841 = arith.mulf %821, %840 : vector<8x72xf32>
    %842 = arith.addf %792, %841 : vector<8x72xf32>
    %843 = vector.broadcast %218 : f32 to vector<8x72xf32>
    %844 = arith.mulf %821, %843 : vector<8x72xf32>
    %845 = arith.addf %795, %844 : vector<8x72xf32>
    %846 = vector.broadcast %60 : f32 to vector<8x72xf32>
    %847 = arith.mulf %269, %846 : vector<8x72xf32>
    %848 = vector.broadcast %61 : f32 to vector<8x72xf32>
    %849 = arith.mulf %275, %848 : vector<8x72xf32>
    %850 = arith.addf %847, %849 : vector<8x72xf32>
    %851 = vector.broadcast %62 : f32 to vector<8x72xf32>
    %852 = arith.mulf %281, %851 : vector<8x72xf32>
    %853 = arith.addf %850, %852 : vector<8x72xf32>
    %854 = vector.broadcast %63 : f32 to vector<8x72xf32>
    %855 = arith.mulf %287, %854 : vector<8x72xf32>
    %856 = arith.addf %853, %855 : vector<8x72xf32>
    %857 = vector.broadcast %91 : f32 to vector<8x72xf32>
    %858 = arith.addf %856, %857 : vector<8x72xf32>
    %cst_531 = arith.constant 5.000000e-01 : f32
    %859 = vector.broadcast %cst_531 : f32 to vector<8x72xf32>
    %860 = arith.mulf %859, %858 : vector<8x72xf32>
    %cst_532 = arith.constant 4.471500e-02 : f32
    %861 = vector.broadcast %cst_532 : f32 to vector<8x72xf32>
    %862 = arith.mulf %861, %858 : vector<8x72xf32>
    %863 = arith.mulf %862, %858 : vector<8x72xf32>
    %864 = arith.mulf %863, %858 : vector<8x72xf32>
    %865 = arith.addf %858, %864 : vector<8x72xf32>
    %cst_533 = arith.constant 0.797884583 : f32
    %866 = vector.broadcast %cst_533 : f32 to vector<8x72xf32>
    %867 = arith.mulf %866, %865 : vector<8x72xf32>
    %868 = math.tanh %867 : vector<8x72xf32>
    %cst_534 = arith.constant 1.000000e+00 : f32
    %869 = vector.broadcast %cst_534 : f32 to vector<8x72xf32>
    %870 = arith.addf %869, %868 : vector<8x72xf32>
    %871 = arith.mulf %860, %870 : vector<8x72xf32>
    %872 = vector.broadcast %107 : f32 to vector<8x72xf32>
    %873 = arith.mulf %871, %872 : vector<8x72xf32>
    %874 = arith.addf %824, %873 : vector<8x72xf32>
    %875 = vector.broadcast %123 : f32 to vector<8x72xf32>
    %876 = arith.mulf %871, %875 : vector<8x72xf32>
    %877 = arith.addf %827, %876 : vector<8x72xf32>
    %878 = vector.broadcast %139 : f32 to vector<8x72xf32>
    %879 = arith.mulf %871, %878 : vector<8x72xf32>
    %880 = arith.addf %830, %879 : vector<8x72xf32>
    %881 = vector.broadcast %155 : f32 to vector<8x72xf32>
    %882 = arith.mulf %871, %881 : vector<8x72xf32>
    %883 = arith.addf %833, %882 : vector<8x72xf32>
    %884 = vector.broadcast %171 : f32 to vector<8x72xf32>
    %885 = arith.mulf %871, %884 : vector<8x72xf32>
    %886 = arith.addf %836, %885 : vector<8x72xf32>
    %887 = vector.broadcast %187 : f32 to vector<8x72xf32>
    %888 = arith.mulf %871, %887 : vector<8x72xf32>
    %889 = arith.addf %839, %888 : vector<8x72xf32>
    %890 = vector.broadcast %203 : f32 to vector<8x72xf32>
    %891 = arith.mulf %871, %890 : vector<8x72xf32>
    %892 = arith.addf %842, %891 : vector<8x72xf32>
    %893 = vector.broadcast %219 : f32 to vector<8x72xf32>
    %894 = arith.mulf %871, %893 : vector<8x72xf32>
    %895 = arith.addf %845, %894 : vector<8x72xf32>
    %896 = vector.broadcast %64 : f32 to vector<8x72xf32>
    %897 = arith.mulf %269, %896 : vector<8x72xf32>
    %898 = vector.broadcast %65 : f32 to vector<8x72xf32>
    %899 = arith.mulf %275, %898 : vector<8x72xf32>
    %900 = arith.addf %897, %899 : vector<8x72xf32>
    %901 = vector.broadcast %66 : f32 to vector<8x72xf32>
    %902 = arith.mulf %281, %901 : vector<8x72xf32>
    %903 = arith.addf %900, %902 : vector<8x72xf32>
    %904 = vector.broadcast %67 : f32 to vector<8x72xf32>
    %905 = arith.mulf %287, %904 : vector<8x72xf32>
    %906 = arith.addf %903, %905 : vector<8x72xf32>
    %907 = vector.broadcast %92 : f32 to vector<8x72xf32>
    %908 = arith.addf %906, %907 : vector<8x72xf32>
    %cst_535 = arith.constant 5.000000e-01 : f32
    %909 = vector.broadcast %cst_535 : f32 to vector<8x72xf32>
    %910 = arith.mulf %909, %908 : vector<8x72xf32>
    %cst_536 = arith.constant 4.471500e-02 : f32
    %911 = vector.broadcast %cst_536 : f32 to vector<8x72xf32>
    %912 = arith.mulf %911, %908 : vector<8x72xf32>
    %913 = arith.mulf %912, %908 : vector<8x72xf32>
    %914 = arith.mulf %913, %908 : vector<8x72xf32>
    %915 = arith.addf %908, %914 : vector<8x72xf32>
    %cst_537 = arith.constant 0.797884583 : f32
    %916 = vector.broadcast %cst_537 : f32 to vector<8x72xf32>
    %917 = arith.mulf %916, %915 : vector<8x72xf32>
    %918 = math.tanh %917 : vector<8x72xf32>
    %cst_538 = arith.constant 1.000000e+00 : f32
    %919 = vector.broadcast %cst_538 : f32 to vector<8x72xf32>
    %920 = arith.addf %919, %918 : vector<8x72xf32>
    %921 = arith.mulf %910, %920 : vector<8x72xf32>
    %922 = vector.broadcast %108 : f32 to vector<8x72xf32>
    %923 = arith.mulf %921, %922 : vector<8x72xf32>
    %924 = arith.addf %874, %923 : vector<8x72xf32>
    %925 = vector.broadcast %124 : f32 to vector<8x72xf32>
    %926 = arith.mulf %921, %925 : vector<8x72xf32>
    %927 = arith.addf %877, %926 : vector<8x72xf32>
    %928 = vector.broadcast %140 : f32 to vector<8x72xf32>
    %929 = arith.mulf %921, %928 : vector<8x72xf32>
    %930 = arith.addf %880, %929 : vector<8x72xf32>
    %931 = vector.broadcast %156 : f32 to vector<8x72xf32>
    %932 = arith.mulf %921, %931 : vector<8x72xf32>
    %933 = arith.addf %883, %932 : vector<8x72xf32>
    %934 = vector.broadcast %172 : f32 to vector<8x72xf32>
    %935 = arith.mulf %921, %934 : vector<8x72xf32>
    %936 = arith.addf %886, %935 : vector<8x72xf32>
    %937 = vector.broadcast %188 : f32 to vector<8x72xf32>
    %938 = arith.mulf %921, %937 : vector<8x72xf32>
    %939 = arith.addf %889, %938 : vector<8x72xf32>
    %940 = vector.broadcast %204 : f32 to vector<8x72xf32>
    %941 = arith.mulf %921, %940 : vector<8x72xf32>
    %942 = arith.addf %892, %941 : vector<8x72xf32>
    %943 = vector.broadcast %220 : f32 to vector<8x72xf32>
    %944 = arith.mulf %921, %943 : vector<8x72xf32>
    %945 = arith.addf %895, %944 : vector<8x72xf32>
    %946 = vector.broadcast %68 : f32 to vector<8x72xf32>
    %947 = arith.mulf %269, %946 : vector<8x72xf32>
    %948 = vector.broadcast %69 : f32 to vector<8x72xf32>
    %949 = arith.mulf %275, %948 : vector<8x72xf32>
    %950 = arith.addf %947, %949 : vector<8x72xf32>
    %951 = vector.broadcast %70 : f32 to vector<8x72xf32>
    %952 = arith.mulf %281, %951 : vector<8x72xf32>
    %953 = arith.addf %950, %952 : vector<8x72xf32>
    %954 = vector.broadcast %71 : f32 to vector<8x72xf32>
    %955 = arith.mulf %287, %954 : vector<8x72xf32>
    %956 = arith.addf %953, %955 : vector<8x72xf32>
    %957 = vector.broadcast %93 : f32 to vector<8x72xf32>
    %958 = arith.addf %956, %957 : vector<8x72xf32>
    %cst_539 = arith.constant 5.000000e-01 : f32
    %959 = vector.broadcast %cst_539 : f32 to vector<8x72xf32>
    %960 = arith.mulf %959, %958 : vector<8x72xf32>
    %cst_540 = arith.constant 4.471500e-02 : f32
    %961 = vector.broadcast %cst_540 : f32 to vector<8x72xf32>
    %962 = arith.mulf %961, %958 : vector<8x72xf32>
    %963 = arith.mulf %962, %958 : vector<8x72xf32>
    %964 = arith.mulf %963, %958 : vector<8x72xf32>
    %965 = arith.addf %958, %964 : vector<8x72xf32>
    %cst_541 = arith.constant 0.797884583 : f32
    %966 = vector.broadcast %cst_541 : f32 to vector<8x72xf32>
    %967 = arith.mulf %966, %965 : vector<8x72xf32>
    %968 = math.tanh %967 : vector<8x72xf32>
    %cst_542 = arith.constant 1.000000e+00 : f32
    %969 = vector.broadcast %cst_542 : f32 to vector<8x72xf32>
    %970 = arith.addf %969, %968 : vector<8x72xf32>
    %971 = arith.mulf %960, %970 : vector<8x72xf32>
    %972 = vector.broadcast %109 : f32 to vector<8x72xf32>
    %973 = arith.mulf %971, %972 : vector<8x72xf32>
    %974 = arith.addf %924, %973 : vector<8x72xf32>
    %975 = vector.broadcast %125 : f32 to vector<8x72xf32>
    %976 = arith.mulf %971, %975 : vector<8x72xf32>
    %977 = arith.addf %927, %976 : vector<8x72xf32>
    %978 = vector.broadcast %141 : f32 to vector<8x72xf32>
    %979 = arith.mulf %971, %978 : vector<8x72xf32>
    %980 = arith.addf %930, %979 : vector<8x72xf32>
    %981 = vector.broadcast %157 : f32 to vector<8x72xf32>
    %982 = arith.mulf %971, %981 : vector<8x72xf32>
    %983 = arith.addf %933, %982 : vector<8x72xf32>
    %984 = vector.broadcast %173 : f32 to vector<8x72xf32>
    %985 = arith.mulf %971, %984 : vector<8x72xf32>
    %986 = arith.addf %936, %985 : vector<8x72xf32>
    %987 = vector.broadcast %189 : f32 to vector<8x72xf32>
    %988 = arith.mulf %971, %987 : vector<8x72xf32>
    %989 = arith.addf %939, %988 : vector<8x72xf32>
    %990 = vector.broadcast %205 : f32 to vector<8x72xf32>
    %991 = arith.mulf %971, %990 : vector<8x72xf32>
    %992 = arith.addf %942, %991 : vector<8x72xf32>
    %993 = vector.broadcast %221 : f32 to vector<8x72xf32>
    %994 = arith.mulf %971, %993 : vector<8x72xf32>
    %995 = arith.addf %945, %994 : vector<8x72xf32>
    %996 = vector.broadcast %72 : f32 to vector<8x72xf32>
    %997 = arith.mulf %269, %996 : vector<8x72xf32>
    %998 = vector.broadcast %73 : f32 to vector<8x72xf32>
    %999 = arith.mulf %275, %998 : vector<8x72xf32>
    %1000 = arith.addf %997, %999 : vector<8x72xf32>
    %1001 = vector.broadcast %74 : f32 to vector<8x72xf32>
    %1002 = arith.mulf %281, %1001 : vector<8x72xf32>
    %1003 = arith.addf %1000, %1002 : vector<8x72xf32>
    %1004 = vector.broadcast %75 : f32 to vector<8x72xf32>
    %1005 = arith.mulf %287, %1004 : vector<8x72xf32>
    %1006 = arith.addf %1003, %1005 : vector<8x72xf32>
    %1007 = vector.broadcast %94 : f32 to vector<8x72xf32>
    %1008 = arith.addf %1006, %1007 : vector<8x72xf32>
    %cst_543 = arith.constant 5.000000e-01 : f32
    %1009 = vector.broadcast %cst_543 : f32 to vector<8x72xf32>
    %1010 = arith.mulf %1009, %1008 : vector<8x72xf32>
    %cst_544 = arith.constant 4.471500e-02 : f32
    %1011 = vector.broadcast %cst_544 : f32 to vector<8x72xf32>
    %1012 = arith.mulf %1011, %1008 : vector<8x72xf32>
    %1013 = arith.mulf %1012, %1008 : vector<8x72xf32>
    %1014 = arith.mulf %1013, %1008 : vector<8x72xf32>
    %1015 = arith.addf %1008, %1014 : vector<8x72xf32>
    %cst_545 = arith.constant 0.797884583 : f32
    %1016 = vector.broadcast %cst_545 : f32 to vector<8x72xf32>
    %1017 = arith.mulf %1016, %1015 : vector<8x72xf32>
    %1018 = math.tanh %1017 : vector<8x72xf32>
    %cst_546 = arith.constant 1.000000e+00 : f32
    %1019 = vector.broadcast %cst_546 : f32 to vector<8x72xf32>
    %1020 = arith.addf %1019, %1018 : vector<8x72xf32>
    %1021 = arith.mulf %1010, %1020 : vector<8x72xf32>
    %1022 = vector.broadcast %110 : f32 to vector<8x72xf32>
    %1023 = arith.mulf %1021, %1022 : vector<8x72xf32>
    %1024 = arith.addf %974, %1023 : vector<8x72xf32>
    %1025 = vector.broadcast %126 : f32 to vector<8x72xf32>
    %1026 = arith.mulf %1021, %1025 : vector<8x72xf32>
    %1027 = arith.addf %977, %1026 : vector<8x72xf32>
    %1028 = vector.broadcast %142 : f32 to vector<8x72xf32>
    %1029 = arith.mulf %1021, %1028 : vector<8x72xf32>
    %1030 = arith.addf %980, %1029 : vector<8x72xf32>
    %1031 = vector.broadcast %158 : f32 to vector<8x72xf32>
    %1032 = arith.mulf %1021, %1031 : vector<8x72xf32>
    %1033 = arith.addf %983, %1032 : vector<8x72xf32>
    %1034 = vector.broadcast %174 : f32 to vector<8x72xf32>
    %1035 = arith.mulf %1021, %1034 : vector<8x72xf32>
    %1036 = arith.addf %986, %1035 : vector<8x72xf32>
    %1037 = vector.broadcast %190 : f32 to vector<8x72xf32>
    %1038 = arith.mulf %1021, %1037 : vector<8x72xf32>
    %1039 = arith.addf %989, %1038 : vector<8x72xf32>
    %1040 = vector.broadcast %206 : f32 to vector<8x72xf32>
    %1041 = arith.mulf %1021, %1040 : vector<8x72xf32>
    %1042 = arith.addf %992, %1041 : vector<8x72xf32>
    %1043 = vector.broadcast %222 : f32 to vector<8x72xf32>
    %1044 = arith.mulf %1021, %1043 : vector<8x72xf32>
    %1045 = arith.addf %995, %1044 : vector<8x72xf32>
    %1046 = vector.broadcast %76 : f32 to vector<8x72xf32>
    %1047 = arith.mulf %269, %1046 : vector<8x72xf32>
    %1048 = vector.broadcast %77 : f32 to vector<8x72xf32>
    %1049 = arith.mulf %275, %1048 : vector<8x72xf32>
    %1050 = arith.addf %1047, %1049 : vector<8x72xf32>
    %1051 = vector.broadcast %78 : f32 to vector<8x72xf32>
    %1052 = arith.mulf %281, %1051 : vector<8x72xf32>
    %1053 = arith.addf %1050, %1052 : vector<8x72xf32>
    %1054 = vector.broadcast %79 : f32 to vector<8x72xf32>
    %1055 = arith.mulf %287, %1054 : vector<8x72xf32>
    %1056 = arith.addf %1053, %1055 : vector<8x72xf32>
    %1057 = vector.broadcast %95 : f32 to vector<8x72xf32>
    %1058 = arith.addf %1056, %1057 : vector<8x72xf32>
    %cst_547 = arith.constant 5.000000e-01 : f32
    %1059 = vector.broadcast %cst_547 : f32 to vector<8x72xf32>
    %1060 = arith.mulf %1059, %1058 : vector<8x72xf32>
    %cst_548 = arith.constant 4.471500e-02 : f32
    %1061 = vector.broadcast %cst_548 : f32 to vector<8x72xf32>
    %1062 = arith.mulf %1061, %1058 : vector<8x72xf32>
    %1063 = arith.mulf %1062, %1058 : vector<8x72xf32>
    %1064 = arith.mulf %1063, %1058 : vector<8x72xf32>
    %1065 = arith.addf %1058, %1064 : vector<8x72xf32>
    %cst_549 = arith.constant 0.797884583 : f32
    %1066 = vector.broadcast %cst_549 : f32 to vector<8x72xf32>
    %1067 = arith.mulf %1066, %1065 : vector<8x72xf32>
    %1068 = math.tanh %1067 : vector<8x72xf32>
    %cst_550 = arith.constant 1.000000e+00 : f32
    %1069 = vector.broadcast %cst_550 : f32 to vector<8x72xf32>
    %1070 = arith.addf %1069, %1068 : vector<8x72xf32>
    %1071 = arith.mulf %1060, %1070 : vector<8x72xf32>
    %1072 = vector.broadcast %111 : f32 to vector<8x72xf32>
    %1073 = arith.mulf %1071, %1072 : vector<8x72xf32>
    %1074 = arith.addf %1024, %1073 : vector<8x72xf32>
    %1075 = vector.broadcast %127 : f32 to vector<8x72xf32>
    %1076 = arith.mulf %1071, %1075 : vector<8x72xf32>
    %1077 = arith.addf %1027, %1076 : vector<8x72xf32>
    %1078 = vector.broadcast %143 : f32 to vector<8x72xf32>
    %1079 = arith.mulf %1071, %1078 : vector<8x72xf32>
    %1080 = arith.addf %1030, %1079 : vector<8x72xf32>
    %1081 = vector.broadcast %159 : f32 to vector<8x72xf32>
    %1082 = arith.mulf %1071, %1081 : vector<8x72xf32>
    %1083 = arith.addf %1033, %1082 : vector<8x72xf32>
    %1084 = vector.broadcast %175 : f32 to vector<8x72xf32>
    %1085 = arith.mulf %1071, %1084 : vector<8x72xf32>
    %1086 = arith.addf %1036, %1085 : vector<8x72xf32>
    %1087 = vector.broadcast %191 : f32 to vector<8x72xf32>
    %1088 = arith.mulf %1071, %1087 : vector<8x72xf32>
    %1089 = arith.addf %1039, %1088 : vector<8x72xf32>
    %1090 = vector.broadcast %207 : f32 to vector<8x72xf32>
    %1091 = arith.mulf %1071, %1090 : vector<8x72xf32>
    %1092 = arith.addf %1042, %1091 : vector<8x72xf32>
    %1093 = vector.broadcast %223 : f32 to vector<8x72xf32>
    %1094 = arith.mulf %1071, %1093 : vector<8x72xf32>
    %1095 = arith.addf %1045, %1094 : vector<8x72xf32>
    %c0_551 = arith.constant 0 : index
    %c0_552 = arith.constant 0 : index
    %c0_553 = arith.constant 0 : index
    %c0_554 = arith.constant 0 : index
    %1096 = vector.load %arg3[%c0_551, %c0_552, %c0_553, %c0_554] : memref<1x4x8x90xf32, #tpu.memory_space<vmem>>, vector<1x1x8x72xf32>
    %1097 = vector.shape_cast %1096 : vector<1x1x8x72xf32> to vector<8x72xf32>
    %1098 = vector.broadcast %232 : f32 to vector<8x72xf32>
    %1099 = arith.mulf %1097, %1098 : vector<8x72xf32>
    %1100 = arith.addf %1074, %1099 : vector<8x72xf32>
    %1101 = vector.broadcast %236 : f32 to vector<8x72xf32>
    %1102 = arith.mulf %1097, %1101 : vector<8x72xf32>
    %1103 = arith.addf %1077, %1102 : vector<8x72xf32>
    %1104 = vector.broadcast %240 : f32 to vector<8x72xf32>
    %1105 = arith.mulf %1097, %1104 : vector<8x72xf32>
    %1106 = arith.addf %1080, %1105 : vector<8x72xf32>
    %1107 = vector.broadcast %244 : f32 to vector<8x72xf32>
    %1108 = arith.mulf %1097, %1107 : vector<8x72xf32>
    %1109 = arith.addf %1083, %1108 : vector<8x72xf32>
    %1110 = vector.broadcast %248 : f32 to vector<8x72xf32>
    %1111 = arith.mulf %1097, %1110 : vector<8x72xf32>
    %1112 = arith.addf %1086, %1111 : vector<8x72xf32>
    %1113 = vector.broadcast %252 : f32 to vector<8x72xf32>
    %1114 = arith.mulf %1097, %1113 : vector<8x72xf32>
    %1115 = arith.addf %1089, %1114 : vector<8x72xf32>
    %1116 = vector.broadcast %256 : f32 to vector<8x72xf32>
    %1117 = arith.mulf %1097, %1116 : vector<8x72xf32>
    %1118 = arith.addf %1092, %1117 : vector<8x72xf32>
    %1119 = vector.broadcast %260 : f32 to vector<8x72xf32>
    %1120 = arith.mulf %1097, %1119 : vector<8x72xf32>
    %1121 = arith.addf %1095, %1120 : vector<8x72xf32>
    %c0_555 = arith.constant 0 : index
    %c1_556 = arith.constant 1 : index
    %c0_557 = arith.constant 0 : index
    %c0_558 = arith.constant 0 : index
    %1122 = vector.load %arg3[%c0_555, %c1_556, %c0_557, %c0_558] : memref<1x4x8x90xf32, #tpu.memory_space<vmem>>, vector<1x1x8x72xf32>
    %1123 = vector.shape_cast %1122 : vector<1x1x8x72xf32> to vector<8x72xf32>
    %1124 = vector.broadcast %233 : f32 to vector<8x72xf32>
    %1125 = arith.mulf %1123, %1124 : vector<8x72xf32>
    %1126 = arith.addf %1100, %1125 : vector<8x72xf32>
    %1127 = vector.broadcast %237 : f32 to vector<8x72xf32>
    %1128 = arith.mulf %1123, %1127 : vector<8x72xf32>
    %1129 = arith.addf %1103, %1128 : vector<8x72xf32>
    %1130 = vector.broadcast %241 : f32 to vector<8x72xf32>
    %1131 = arith.mulf %1123, %1130 : vector<8x72xf32>
    %1132 = arith.addf %1106, %1131 : vector<8x72xf32>
    %1133 = vector.broadcast %245 : f32 to vector<8x72xf32>
    %1134 = arith.mulf %1123, %1133 : vector<8x72xf32>
    %1135 = arith.addf %1109, %1134 : vector<8x72xf32>
    %1136 = vector.broadcast %249 : f32 to vector<8x72xf32>
    %1137 = arith.mulf %1123, %1136 : vector<8x72xf32>
    %1138 = arith.addf %1112, %1137 : vector<8x72xf32>
    %1139 = vector.broadcast %253 : f32 to vector<8x72xf32>
    %1140 = arith.mulf %1123, %1139 : vector<8x72xf32>
    %1141 = arith.addf %1115, %1140 : vector<8x72xf32>
    %1142 = vector.broadcast %257 : f32 to vector<8x72xf32>
    %1143 = arith.mulf %1123, %1142 : vector<8x72xf32>
    %1144 = arith.addf %1118, %1143 : vector<8x72xf32>
    %1145 = vector.broadcast %261 : f32 to vector<8x72xf32>
    %1146 = arith.mulf %1123, %1145 : vector<8x72xf32>
    %1147 = arith.addf %1121, %1146 : vector<8x72xf32>
    %c0_559 = arith.constant 0 : index
    %c2_560 = arith.constant 2 : index
    %c0_561 = arith.constant 0 : index
    %c0_562 = arith.constant 0 : index
    %1148 = vector.load %arg3[%c0_559, %c2_560, %c0_561, %c0_562] : memref<1x4x8x90xf32, #tpu.memory_space<vmem>>, vector<1x1x8x72xf32>
    %1149 = vector.shape_cast %1148 : vector<1x1x8x72xf32> to vector<8x72xf32>
    %1150 = vector.broadcast %234 : f32 to vector<8x72xf32>
    %1151 = arith.mulf %1149, %1150 : vector<8x72xf32>
    %1152 = arith.addf %1126, %1151 : vector<8x72xf32>
    %1153 = vector.broadcast %238 : f32 to vector<8x72xf32>
    %1154 = arith.mulf %1149, %1153 : vector<8x72xf32>
    %1155 = arith.addf %1129, %1154 : vector<8x72xf32>
    %1156 = vector.broadcast %242 : f32 to vector<8x72xf32>
    %1157 = arith.mulf %1149, %1156 : vector<8x72xf32>
    %1158 = arith.addf %1132, %1157 : vector<8x72xf32>
    %1159 = vector.broadcast %246 : f32 to vector<8x72xf32>
    %1160 = arith.mulf %1149, %1159 : vector<8x72xf32>
    %1161 = arith.addf %1135, %1160 : vector<8x72xf32>
    %1162 = vector.broadcast %250 : f32 to vector<8x72xf32>
    %1163 = arith.mulf %1149, %1162 : vector<8x72xf32>
    %1164 = arith.addf %1138, %1163 : vector<8x72xf32>
    %1165 = vector.broadcast %254 : f32 to vector<8x72xf32>
    %1166 = arith.mulf %1149, %1165 : vector<8x72xf32>
    %1167 = arith.addf %1141, %1166 : vector<8x72xf32>
    %1168 = vector.broadcast %258 : f32 to vector<8x72xf32>
    %1169 = arith.mulf %1149, %1168 : vector<8x72xf32>
    %1170 = arith.addf %1144, %1169 : vector<8x72xf32>
    %1171 = vector.broadcast %262 : f32 to vector<8x72xf32>
    %1172 = arith.mulf %1149, %1171 : vector<8x72xf32>
    %1173 = arith.addf %1147, %1172 : vector<8x72xf32>
    %c0_563 = arith.constant 0 : index
    %c3_564 = arith.constant 3 : index
    %c0_565 = arith.constant 0 : index
    %c0_566 = arith.constant 0 : index
    %1174 = vector.load %arg3[%c0_563, %c3_564, %c0_565, %c0_566] : memref<1x4x8x90xf32, #tpu.memory_space<vmem>>, vector<1x1x8x72xf32>
    %1175 = vector.shape_cast %1174 : vector<1x1x8x72xf32> to vector<8x72xf32>
    %1176 = vector.broadcast %235 : f32 to vector<8x72xf32>
    %1177 = arith.mulf %1175, %1176 : vector<8x72xf32>
    %1178 = arith.addf %1152, %1177 : vector<8x72xf32>
    %1179 = vector.broadcast %239 : f32 to vector<8x72xf32>
    %1180 = arith.mulf %1175, %1179 : vector<8x72xf32>
    %1181 = arith.addf %1155, %1180 : vector<8x72xf32>
    %1182 = vector.broadcast %243 : f32 to vector<8x72xf32>
    %1183 = arith.mulf %1175, %1182 : vector<8x72xf32>
    %1184 = arith.addf %1158, %1183 : vector<8x72xf32>
    %1185 = vector.broadcast %247 : f32 to vector<8x72xf32>
    %1186 = arith.mulf %1175, %1185 : vector<8x72xf32>
    %1187 = arith.addf %1161, %1186 : vector<8x72xf32>
    %1188 = vector.broadcast %251 : f32 to vector<8x72xf32>
    %1189 = arith.mulf %1175, %1188 : vector<8x72xf32>
    %1190 = arith.addf %1164, %1189 : vector<8x72xf32>
    %1191 = vector.broadcast %255 : f32 to vector<8x72xf32>
    %1192 = arith.mulf %1175, %1191 : vector<8x72xf32>
    %1193 = arith.addf %1167, %1192 : vector<8x72xf32>
    %1194 = vector.broadcast %259 : f32 to vector<8x72xf32>
    %1195 = arith.mulf %1175, %1194 : vector<8x72xf32>
    %1196 = arith.addf %1170, %1195 : vector<8x72xf32>
    %1197 = vector.broadcast %263 : f32 to vector<8x72xf32>
    %1198 = arith.mulf %1175, %1197 : vector<8x72xf32>
    %1199 = arith.addf %1173, %1198 : vector<8x72xf32>
    %1200 = vector.broadcast %224 : f32 to vector<8x72xf32>
    %1201 = arith.addf %1178, %1200 : vector<8x72xf32>
    %c0_567 = arith.constant 0 : index
    %c0_568 = arith.constant 0 : index
    %c0_569 = arith.constant 0 : index
    %c0_570 = arith.constant 0 : index
    %1202 = vector.load %arg11[%c0_567, %c0_568, %c0_569, %c0_570] : memref<1x8x8x72xf32, #tpu.memory_space<vmem>>, vector<1x1x8x72xf32>
    %1203 = vector.shape_cast %1202 : vector<1x1x8x72xf32> to vector<8x72xf32>
    %1204 = vector.shape_cast %1201 : vector<8x72xf32> to vector<1x1x8x72xf32>
    tpu.vector_store %arg11[%c0_567, %c0_568, %c0_569, %c0_570], %1204 {strides = array<i32>} : memref<1x8x8x72xf32, #tpu.memory_space<vmem>>, vector<1x1x8x72xf32>,
    %1205 = vector.broadcast %225 : f32 to vector<8x72xf32>
    %1206 = arith.addf %1181, %1205 : vector<8x72xf32>
    %c0_571 = arith.constant 0 : index
    %c1_572 = arith.constant 1 : index
    %c0_573 = arith.constant 0 : index
    %c0_574 = arith.constant 0 : index
    %1207 = vector.load %arg11[%c0_571, %c1_572, %c0_573, %c0_574] : memref<1x8x8x72xf32, #tpu.memory_space<vmem>>, vector<1x1x8x72xf32>
    %1208 = vector.shape_cast %1207 : vector<1x1x8x72xf32> to vector<8x72xf32>
    %1209 = vector.shape_cast %1206 : vector<8x72xf32> to vector<1x1x8x72xf32>
    tpu.vector_store %arg11[%c0_571, %c1_572, %c0_573, %c0_574], %1209 {strides = array<i32>} : memref<1x8x8x72xf32, #tpu.memory_space<vmem>>, vector<1x1x8x72xf32>,
    %1210 = vector.broadcast %226 : f32 to vector<8x72xf32>
    %1211 = arith.addf %1184, %1210 : vector<8x72xf32>
    %c0_575 = arith.constant 0 : index
    %c2_576 = arith.constant 2 : index
    %c0_577 = arith.constant 0 : index
    %c0_578 = arith.constant 0 : index
    %1212 = vector.load %arg11[%c0_575, %c2_576, %c0_577, %c0_578] : memref<1x8x8x72xf32, #tpu.memory_space<vmem>>, vector<1x1x8x72xf32>
    %1213 = vector.shape_cast %1212 : vector<1x1x8x72xf32> to vector<8x72xf32>
    %1214 = vector.shape_cast %1211 : vector<8x72xf32> to vector<1x1x8x72xf32>
    tpu.vector_store %arg11[%c0_575, %c2_576, %c0_577, %c0_578], %1214 {strides = array<i32>} : memref<1x8x8x72xf32, #tpu.memory_space<vmem>>, vector<1x1x8x72xf32>,
    %1215 = vector.broadcast %227 : f32 to vector<8x72xf32>
    %1216 = arith.addf %1187, %1215 : vector<8x72xf32>
    %c0_579 = arith.constant 0 : index
    %c3_580 = arith.constant 3 : index
    %c0_581 = arith.constant 0 : index
    %c0_582 = arith.constant 0 : index
    %1217 = vector.load %arg11[%c0_579, %c3_580, %c0_581, %c0_582] : memref<1x8x8x72xf32, #tpu.memory_space<vmem>>, vector<1x1x8x72xf32>
    %1218 = vector.shape_cast %1217 : vector<1x1x8x72xf32> to vector<8x72xf32>
    %1219 = vector.shape_cast %1216 : vector<8x72xf32> to vector<1x1x8x72xf32>
    tpu.vector_store %arg11[%c0_579, %c3_580, %c0_581, %c0_582], %1219 {strides = array<i32>} : memref<1x8x8x72xf32, #tpu.memory_space<vmem>>, vector<1x1x8x72xf32>,
    %1220 = vector.broadcast %228 : f32 to vector<8x72xf32>
    %1221 = arith.addf %1190, %1220 : vector<8x72xf32>
    %c0_583 = arith.constant 0 : index
    %c4_584 = arith.constant 4 : index
    %c0_585 = arith.constant 0 : index
    %c0_586 = arith.constant 0 : index
    %1222 = vector.load %arg11[%c0_583, %c4_584, %c0_585, %c0_586] : memref<1x8x8x72xf32, #tpu.memory_space<vmem>>, vector<1x1x8x72xf32>
    %1223 = vector.shape_cast %1222 : vector<1x1x8x72xf32> to vector<8x72xf32>
    %1224 = vector.shape_cast %1221 : vector<8x72xf32> to vector<1x1x8x72xf32>
    tpu.vector_store %arg11[%c0_583, %c4_584, %c0_585, %c0_586], %1224 {strides = array<i32>} : memref<1x8x8x72xf32, #tpu.memory_space<vmem>>, vector<1x1x8x72xf32>,
    %1225 = vector.broadcast %229 : f32 to vector<8x72xf32>
    %1226 = arith.addf %1193, %1225 : vector<8x72xf32>
    %c0_587 = arith.constant 0 : index
    %c5_588 = arith.constant 5 : index
    %c0_589 = arith.constant 0 : index
    %c0_590 = arith.constant 0 : index
    %1227 = vector.load %arg11[%c0_587, %c5_588, %c0_589, %c0_590] : memref<1x8x8x72xf32, #tpu.memory_space<vmem>>, vector<1x1x8x72xf32>
    %1228 = vector.shape_cast %1227 : vector<1x1x8x72xf32> to vector<8x72xf32>
    %1229 = vector.shape_cast %1226 : vector<8x72xf32> to vector<1x1x8x72xf32>
    tpu.vector_store %arg11[%c0_587, %c5_588, %c0_589, %c0_590], %1229 {strides = array<i32>} : memref<1x8x8x72xf32, #tpu.memory_space<vmem>>, vector<1x1x8x72xf32>,
    %1230 = vector.broadcast %230 : f32 to vector<8x72xf32>
    %1231 = arith.addf %1196, %1230 : vector<8x72xf32>
    %c0_591 = arith.constant 0 : index
    %c6_592 = arith.constant 6 : index
    %c0_593 = arith.constant 0 : index
    %c0_594 = arith.constant 0 : index
    %1232 = vector.load %arg11[%c0_591, %c6_592, %c0_593, %c0_594] : memref<1x8x8x72xf32, #tpu.memory_space<vmem>>, vector<1x1x8x72xf32>
    %1233 = vector.shape_cast %1232 : vector<1x1x8x72xf32> to vector<8x72xf32>
    %1234 = vector.shape_cast %1231 : vector<8x72xf32> to vector<1x1x8x72xf32>
    tpu.vector_store %arg11[%c0_591, %c6_592, %c0_593, %c0_594], %1234 {strides = array<i32>} : memref<1x8x8x72xf32, #tpu.memory_space<vmem>>, vector<1x1x8x72xf32>,
    %1235 = vector.broadcast %231 : f32 to vector<8x72xf32>
    %1236 = arith.addf %1199, %1235 : vector<8x72xf32>
    %c0_595 = arith.constant 0 : index
    %c7_596 = arith.constant 7 : index
    %c0_597 = arith.constant 0 : index
    %c0_598 = arith.constant 0 : index
    %1237 = vector.load %arg11[%c0_595, %c7_596, %c0_597, %c0_598] : memref<1x8x8x72xf32, #tpu.memory_space<vmem>>, vector<1x1x8x72xf32>
    %1238 = vector.shape_cast %1237 : vector<1x1x8x72xf32> to vector<8x72xf32>
    %1239 = vector.shape_cast %1236 : vector<8x72xf32> to vector<1x1x8x72xf32>
    tpu.vector_store %arg11[%c0_595, %c7_596, %c0_597, %c0_598], %1239 {strides = array<i32>} : memref<1x8x8x72xf32, #tpu.memory_space<vmem>>, vector<1x1x8x72xf32>,
    return
  }
  func.func @transform_0(%arg0: i32, %arg1: i32) -> (i32, i32, i32, i32) {
    %c0_i32 = arith.constant 0 : i32
    %c0_i32_0 = arith.constant 0 : i32
    %c0_i32_1 = arith.constant 0 : i32
    return %arg0, %c0_i32, %arg1, %c0_i32_0 : i32, i32, i32, i32
  }
  func.func @transform_1(%arg0: i32, %arg1: i32) -> (i32, i32, i32, i32) {
    %c0_i32 = arith.constant 0 : i32
    %c0_i32_0 = arith.constant 0 : i32
    %c0_i32_1 = arith.constant 0 : i32
    return %arg0, %c0_i32, %arg1, %c0_i32_0 : i32, i32, i32, i32
  }
  func.func @transform_2(%arg0: i32, %arg1: i32) -> (i32, i32) {
    %c0_i32 = arith.constant 0 : i32
    %c0_i32_0 = arith.constant 0 : i32
    %c0_i32_1 = arith.constant 0 : i32
    return %c0_i32, %c0_i32_0 : i32, i32
  }
  func.func @transform_3(%arg0: i32, %arg1: i32) -> (i32, i32) {
    %c0_i32 = arith.constant 0 : i32
    %c0_i32_0 = arith.constant 0 : i32
    %c0_i32_1 = arith.constant 0 : i32
    return %c0_i32, %c0_i32_0 : i32, i32
  }
  func.func @transform_4(%arg0: i32, %arg1: i32) -> (i32, i32) {
    %c0_i32 = arith.constant 0 : i32
    %c0_i32_0 = arith.constant 0 : i32
    %c0_i32_1 = arith.constant 0 : i32
    return %c0_i32, %c0_i32_0 : i32, i32
  }
  func.func @transform_5(%arg0: i32, %arg1: i32) -> i32 {
    %c0_i32 = arith.constant 0 : i32
    %c0_i32_0 = arith.constant 0 : i32
    return %c0_i32 : i32
  }
  func.func @transform_6(%arg0: i32, %arg1: i32) -> (i32, i32) {
    %c0_i32 = arith.constant 0 : i32
    %c0_i32_0 = arith.constant 0 : i32
    %c0_i32_1 = arith.constant 0 : i32
    return %c0_i32, %c0_i32_0 : i32, i32
  }
  func.func @transform_7(%arg0: i32, %arg1: i32) -> i32 {
    %c0_i32 = arith.constant 0 : i32
    %c0_i32_0 = arith.constant 0 : i32
    return %c0_i32 : i32
  }
  func.func @transform_8(%arg0: i32, %arg1: i32) -> (i32, i32) {
    %c0_i32 = arith.constant 0 : i32
    %c0_i32_0 = arith.constant 0 : i32
    %c0_i32_1 = arith.constant 0 : i32
    return %c0_i32, %c0_i32_0 : i32, i32
  }
  func.func @transform_9(%arg0: i32, %arg1: i32) -> (i32, i32, i32, i32) {
    %c0_i32 = arith.constant 0 : i32
    %c0_i32_0 = arith.constant 0 : i32
    %c0_i32_1 = arith.constant 0 : i32
    return %arg0, %c0_i32, %arg1, %c0_i32_0 : i32, i32, i32, i32
  }
}

</mosaic_0001>

<llo_original>
// kernel: down_block_forward.2
$region0: #{down_block_forward.2}
  #allocation0 [shape = 'u32[]', space=smem, size = 0x4, offset = 0x4, fixed_abs, tag = 'smem constant byte address 0x4 - core index']
  #allocation1 [shape = 'u32[72,128]{1,0:T(1,128)}', space=vmem, size = 0x9000, scoped, tag = 'internal scratch']
  %s0 = inlined_call_operand.vmem [shape: f32[2,4,8,9,90], index: 0, kind: input, shape index: {}]
  %s1 = inlined_call_operand.vmem [shape: f32[4,27], index: 1, kind: input, shape index: {}]
  %s2 = inlined_call_operand.vmem [shape: f32[1,72], index: 2, kind: input, shape index: {}]
  %s3 = inlined_call_operand.vmem [shape: f32[2,4,8,72], index: 3, kind: output, shape index: {0}]
  %s4 = inlined_call_operand.vmem [shape: f32[2,4,1,1], index: 4, kind: output, shape index: {1}]
  %s5 = inlined_call_operand.vmem [shape: f32[2,4,1,1], index: 5, kind: output, shape index: {2}]
  %6 = xla_tuple %s3, %s4, %s5
  %s7 = sld [smem:[#allocation0]]
  $region65: #{down_block_forward.2} parent=0
    _
  %s9 = ssub.s32 1, %s7
  %s10 = scalar_select 0, %s9, %s7
  $region1: #{down_block_forward.2} parent=0
    #allocation2 [shape = 'u8[2048]{0}', space=smem, size = 0x800, scoped, tag = 'input window, operand 1, single buffered']
    #allocation3 [shape = 's32[2]{0}', space=sflag, size = 0x8, scoped, tag = 'scoped memory for down_block_forward.2']
    %11 = vsyncpa [#allocation3], 0
    loop: start=0, step=1, limit=10
    $region2: #{down_block_forward.2} parent=1 // loop_pre_header
      _
    $region3: #{down_block_forward.2} parent=1 // loop_header
      %s13 = sphi 0, %s17
      %p14 = scmp.ge.s32.totalorder %s13, 10
      %s20 = sphi 0, %s32
      %s21 = sphi 0, %s28
      %s22 = sphi 0, %s20
      %s23 = sphi 0, %s21
      %s24 = sphi 0, %s22
      %s25 = sphi 0, %s23
      %s37 = sphi 0, %s39
      %s40 = sphi 0, %s37
      %s41 = sphi 0, %s40
      %s57 = sphi 0, %s41
      %s61 = sphi 0, %s61
      %s63 = sphi 0, %s61
      %s64 = sphi 0, %s63
      %s78 = sphi 0, %s64
      %s82 = sphi 0, %s82
      %s84 = sphi 0, %s82
      %s85 = sphi 0, %s84
      %s99 = sphi 0, %s85
      %s107 = sphi 0, %s109
      %s110 = sphi 0, %s107
      %s111 = sphi 0, %s110
      %s127 = sphi 0, %s111
      %s135 = sphi 0, %s137
      %s138 = sphi 0, %s135
      %s139 = sphi 0, %s138
      %s155 = sphi 0, %s139
      %s163 = sphi 0, %s165
      %s166 = sphi 0, %s163
      %s167 = sphi 0, %s166
      %s183 = sphi 0, %s167
    $region4: #{down_block_forward.2} parent=1 // loop_header_branch
      %16 = sbr.rel (%p14) target = $region8
    $region5: #{down_block_forward.2} parent=1 // loop_body
      %s18 = ssub.s32 %s13, 1
      %s19 = ssub.s32 %s13, 2
      %s26 = sadd.s32 1, %s21
      %p27 = scmp.ge.s32.totalorder %s26, 4
      %s28 = scalar_select %p27, 0, %s26
      %s29 = sadd.s32 1, %s20
      %s30 = scalar_select %p27, %s29, %s20
      %p31 = scmp.ge.s32.totalorder %s30, 2
      %s32 = scalar_select %p31, 0, %s30
      %s33 = ssub.s32 %s20, %s32
      %s34 = ssub.s32 %s21, %s28
      %s35 = sor.u32 %s33, %s34
      %p36 = scmp.eq.s32.totalorder %s35, 0
      %s38 = sadd.s32 %s37, 1
      %s39 = scalar_select %p36, %s37, %s38
      %p42 = pneg %p36
      %p43 = scmp.eq.s32.totalorder %s13, 7
      %p44 = por %p42, %p43
      %p45 = scmp.ne.s32.totalorder %s37, %s40
      %p46 = scmp.eq.s32.totalorder %s13, 0
      %p47 = por %p45, %p46
      %p48 = scmp.ne.s32.totalorder %s37, %s40
      %p49 = scmp.eq.s32.totalorder %s18, 7
      %p50 = por %p48, %p49
      %p51 = scmp.ne.s32.totalorder %s40, %s41
      %p52 = scmp.eq.s32.totalorder %s18, 0
      %p53 = por %p51, %p52
      %p54 = scmp.ne.s32.totalorder %s40, %s41
      %p55 = scmp.eq.s32.totalorder %s19, 7
      %p56 = por %p54, %p55
      %p58 = scmp.ne.s32.totalorder %s41, %s57
      %p59 = scmp.eq.s32.totalorder %s19, 0
      %p60 = por %p58, %p59
      %s62 = sadd.s32 %s61, 1
      %p65 = scmp.eq.s32.totalorder %s13, 7
      %p66 = scmp.ne.s32.totalorder %s61, %s63
      %p67 = scmp.eq.s32.totalorder %s13, 0
      %p68 = por %p66, %p67
      %p69 = scmp.ne.s32.totalorder %s61, %s63
      %p70 = scmp.eq.s32.totalorder %s18, 7
      %p71 = por %p69, %p70
      %p72 = scmp.ne.s32.totalorder %s63, %s64
      %p73 = scmp.eq.s32.totalorder %s18, 0
      %p74 = por %p72, %p73
      %p75 = scmp.ne.s32.totalorder %s63, %s64
      %p76 = scmp.eq.s32.totalorder %s19, 7
      %p77 = por %p75, %p76
      %p79 = scmp.ne.s32.totalorder %s64, %s78
      %p80 = scmp.eq.s32.totalorder %s19, 0
      %p81 = por %p79, %p80
      %s83 = sadd.s32 %s82, 1
      %p86 = scmp.eq.s32.totalorder %s13, 7
      %p87 = scmp.ne.s32.totalorder %s82, %s84
      %p88 = scmp.eq.s32.totalorder %s13, 0
      %p89 = por %p87, %p88
      %p90 = scmp.ne.s32.totalorder %s82, %s84
      %p91 = scmp.eq.s32.totalorder %s18, 7
      %p92 = por %p90, %p91
      %p93 = scmp.ne.s32.totalorder %s84, %s85
      %p94 = scmp.eq.s32.totalorder %s18, 0
      %p95 = por %p93, %p94
      %p96 = scmp.ne.s32.totalorder %s84, %s85
      %p97 = scmp.eq.s32.totalorder %s19, 7
      %p98 = por %p96, %p97
      %p100 = scmp.ne.s32.totalorder %s85, %s99
      %p101 = scmp.eq.s32.totalorder %s19, 0
      %p102 = por %p100, %p101
      %s103 = ssub.s32 %s20, %s32
      %s104 = ssub.s32 %s21, %s28
      %s105 = sor.u32 %s103, %s104
      %p106 = scmp.eq.s32.totalorder %s105, 0
      %s108 = sadd.s32 %s107, 1
      %s109 = scalar_select %p106, %s107, %s108
      %p112 = pneg %p106
      %p113 = scmp.eq.s32.totalorder %s13, 7
      %p114 = por %p112, %p113
      %p115 = scmp.ne.s32.totalorder %s107, %s110
      %p116 = scmp.eq.s32.totalorder %s13, 0
      %p117 = por %p115, %p116
      %p118 = scmp.ne.s32.totalorder %s107, %s110
      %p119 = scmp.eq.s32.totalorder %s18, 7
      %p120 = por %p118, %p119
      %p121 = scmp.ne.s32.totalorder %s110, %s111
      %p122 = scmp.eq.s32.totalorder %s18, 0
      %p123 = por %p121, %p122
      %p124 = scmp.ne.s32.totalorder %s110, %s111
      %p125 = scmp.eq.s32.totalorder %s19, 7
      %p126 = por %p124, %p125
      %p128 = scmp.ne.s32.totalorder %s111, %s127
      %p129 = scmp.eq.s32.totalorder %s19, 0
      %p130 = por %p128, %p129
      %s131 = ssub.s32 %s20, %s32
      %s132 = ssub.s32 %s21, %s28
      %s133 = sor.u32 %s131, %s132
      %p134 = scmp.eq.s32.totalorder %s133, 0
      %s136 = sadd.s32 %s135, 1
      %s137 = scalar_select %p134, %s135, %s136
      %p140 = pneg %p134
      %p141 = scmp.eq.s32.totalorder %s13, 7
      %p142 = por %p140, %p141
      %p143 = scmp.ne.s32.totalorder %s135, %s138
      %p144 = scmp.eq.s32.totalorder %s13, 0
      %p145 = por %p143, %p144
      %p146 = scmp.ne.s32.totalorder %s135, %s138
      %p147 = scmp.eq.s32.totalorder %s18, 7
      %p148 = por %p146, %p147
      %p149 = scmp.ne.s32.totalorder %s138, %s139
      %p150 = scmp.eq.s32.totalorder %s18, 0
      %p151 = por %p149, %p150
      %p152 = scmp.ne.s32.totalorder %s138, %s139
      %p153 = scmp.eq.s32.totalorder %s19, 7
      %p154 = por %p152, %p153
      %p156 = scmp.ne.s32.totalorder %s139, %s155
      %p157 = scmp.eq.s32.totalorder %s19, 0
      %p158 = por %p156, %p157
      %s159 = ssub.s32 %s20, %s32
      %s160 = ssub.s32 %s21, %s28
      %s161 = sor.u32 %s159, %s160
      %p162 = scmp.eq.s32.totalorder %s161, 0
      %s164 = sadd.s32 %s163, 1
      %s165 = scalar_select %p162, %s163, %s164
      %p168 = pneg %p162
      %p169 = scmp.eq.s32.totalorder %s13, 7
      %p170 = por %p168, %p169
      %p171 = scmp.ne.s32.totalorder %s163, %s166
      %p172 = scmp.eq.s32.totalorder %s13, 0
      %p173 = por %p171, %p172
      %p174 = scmp.ne.s32.totalorder %s163, %s166
      %p175 = scmp.eq.s32.totalorder %s18, 7
      %p176 = por %p174, %p175
      %p177 = scmp.ne.s32.totalorder %s166, %s167
      %p178 = scmp.eq.s32.totalorder %s18, 0
      %p179 = por %p177, %p178
      %p180 = scmp.ne.s32.totalorder %s166, %s167
      %p181 = scmp.eq.s32.totalorder %s19, 7
      %p182 = por %p180, %p181
      %p184 = scmp.ne.s32.totalorder %s167, %s183
      %p185 = scmp.eq.s32.totalorder %s19, 0
      %p186 = por %p184, %p185
      %p187 = scmp.le.s32.totalorder 1, %s13
      %p188 = scmp.lt.s32.totalorder %s13, 9
      %p189 = pnand %p187, %p188
      %p190 = pneg %p189
      // Predicated region
      $region9: #{down_block_forward.2} parent=5 // pred_check
        _
      $region10: #{down_block_forward.2} parent=5 // pred_check_branch
        %192 = sbr.rel (%p189) target = $region12
      $region11: #{down_block_forward.2} parent=5 // pred_region
        %s193 = ssub.s32 %s13, 1
        // Predicated region
        $region13: #{down_block_forward.2} parent=11 // pred_check
          %p194 = pneg %p74
        $region14: #{down_block_forward.2} parent=11 // pred_check_branch
          %196 = sbr.rel (%p194) target = $region16
        $region15: #{down_block_forward.2} parent=11 // pred_region
          %198 = vsyncadd [#allocation3], 0
          %s200 = sshll.u32 %s1, 4
          %s201 = int_to_ptr.vmem [resolvable:$true] %s200
          %203 = dma.vmem_to_smem %s201, 64, [#allocation2], [#allocation3]
        $region16: #{down_block_forward.2} parent=11 // pred_fallthru
          _
        // Predicated region
        $region17: #{down_block_forward.2} parent=11 // pred_check
          %p204 = pneg %p95
        $region18: #{down_block_forward.2} parent=11 // pred_check_branch
          %206 = sbr.rel (%p204) target = $region20
        $region19: #{down_block_forward.2} parent=11 // pred_region
          _
        $region20: #{down_block_forward.2} parent=11 // pred_fallthru
          _
      $region12: #{down_block_forward.2} parent=5 // pred_fallthru
        _
      %p207 = scmp.lt.s32.totalorder %s13, 8
      // Predicated region
      $region21: #{down_block_forward.2} parent=5 // pred_check
        %p208 = pneg %p207
      $region22: #{down_block_forward.2} parent=5 // pred_check_branch
        %210 = sbr.rel (%p208) target = $region24
      $region23: #{down_block_forward.2} parent=5 // pred_region
        // Predicated region
        $region25: #{down_block_forward.2} parent=23 // pred_check
          %p211 = pneg %p47
        $region26: #{down_block_forward.2} parent=23 // pred_check_branch
          %213 = sbr.rel (%p211) target = $region28
        $region27: #{down_block_forward.2} parent=23 // pred_region
          %p214 = scmp.lt.s32.totalorder %s20, 1
          %s215 = scalar_select %p214, %s20, 1
          %p216 = scmp.lt.s32.totalorder %s21, 3
          %s217 = scalar_select %p216, %s21, 3
          %s218 = smul.addr %s217, 16
          %s219 = smul.addr %s215, 64
          %s220 = sadd.s32 %s218, %s219
          %s221 = smul.addr %s220, 8
          %s222 = scalar_lea.vmem %s0, %s221
        $region28: #{down_block_forward.2} parent=23 // pred_fallthru
          _
      $region24: #{down_block_forward.2} parent=5 // pred_fallthru
        _
      %p223 = scmp.le.s32.totalorder 1, %s13
      %p224 = scmp.lt.s32.totalorder %s13, 9
      %p225 = pnand %p223, %p224
      %p226 = pneg %p225
      // Predicated region
      $region29: #{down_block_forward.2} parent=5 // pred_check
        _
      $region30: #{down_block_forward.2} parent=5 // pred_check_branch
        %228 = sbr.rel (%p225) target = $region32
      $region31: #{down_block_forward.2} parent=5 // pred_region
        %s229 = ssub.s32 %s13, 1
        // Predicated region
        $region33: #{down_block_forward.2} parent=31 // pred_check
          %p230 = pneg %p74
        $region34: #{down_block_forward.2} parent=31 // pred_check_branch
          %232 = sbr.rel (%p230) target = $region36
        $region35: #{down_block_forward.2} parent=31 // pred_region
          %234 = dma.done [#allocation3], 64
        $region36: #{down_block_forward.2} parent=31 // pred_fallthru
          _
        %235 = sfence
        %p236 = scmp.lt.s32.totalorder %s22, 1
        %s237 = scalar_select %p236, %s22, 1
        %p238 = scmp.lt.s32.totalorder %s23, 3
        %s239 = scalar_select %p238, %s23, 3
        %s240 = smul.addr %s239, 16
        %s241 = smul.addr %s237, 64
        %s242 = sadd.s32 %s240, %s241
        %s243 = smul.addr %s242, 8
        %s244 = scalar_lea.vmem %s0, %s243
        %p245 = pneg %p53
        %p246 = pneg %p50
        %p247 = pneg %p74
        %p248 = pneg %p71
        %p249 = pneg %p95
        %p250 = pneg %p92
        %p251 = pneg %p123
        %p252 = pneg %p120
        %p253 = scmp.lt.s32.totalorder %s22, 1
        %s254 = scalar_select %p253, %s22, 1
        %p255 = scmp.lt.s32.totalorder %s23, 3
        %s256 = scalar_select %p255, %s23, 3
        %s257 = smul.addr %s254, 4
        %s258 = sadd.s32 %s256, %s257
        %s259 = smul.addr %s258, 8
        %s260 = scalar_lea.vmem %s3, %s259
        %p261 = pneg %p151
        %p262 = pneg %p148
        %p263 = scmp.lt.s32.totalorder %s22, 1
        %s264 = scalar_select %p263, %s22, 1
        %p265 = scmp.lt.s32.totalorder %s23, 3
        %s266 = scalar_select %p265, %s23, 3
        %s267 = smul.addr %s264, 4
        %s268 = sadd.s32 %s266, %s267
        %s269 = scalar_lea.vmem %s4, %s268
        %p270 = pneg %p179
        %p271 = pneg %p176
        %p272 = scmp.lt.s32.totalorder %s22, 1
        %s273 = scalar_select %p272, %s22, 1
        %p274 = scmp.lt.s32.totalorder %s23, 3
        %s275 = scalar_select %p274, %s23, 3
        %s276 = smul.addr %s273, 4
        %s277 = sadd.s32 %s275, %s276
        %s278 = scalar_lea.vmem %s5, %s277
        %p279 = scmp.lt.s32.totalorder %s22, 1
        %s280 = scalar_select %p279, %s22, 1
        %p281 = scmp.lt.s32.totalorder %s23, 3
        %s282 = scalar_select %p281, %s23, 3
        %s283 = smul.addr %s282, 16
        %s284 = smul.addr %s280, 64
        %s285 = sadd.s32 %s283, %s284
        %s286 = smul.addr %s285, 8
        %s287 = scalar_lea.vmem %s0, %s286
        %p288 = scmp.lt.s32.totalorder %s22, 1
        %s289 = scalar_select %p288, %s22, 1
        %p290 = scmp.lt.s32.totalorder %s23, 3
        %s291 = scalar_select %p290, %s23, 3
        %s292 = smul.addr %s289, 4
        %s293 = sadd.s32 %s291, %s292
        %s294 = smul.addr %s293, 8
        %s295 = scalar_lea.vmem %s3, %s294
        %p296 = scmp.lt.s32.totalorder %s22, 1
        %s297 = scalar_select %p296, %s22, 1
        %p298 = scmp.lt.s32.totalorder %s23, 3
        %s299 = scalar_select %p298, %s23, 3
        %s300 = smul.addr %s297, 4
        %s301 = sadd.s32 %s299, %s300
        %s302 = scalar_lea.vmem %s4, %s301
        %p303 = scmp.lt.s32.totalorder %s22, 1
        %s304 = scalar_select %p303, %s22, 1
        %p305 = scmp.lt.s32.totalorder %s23, 3
        %s306 = scalar_select %p305, %s23, 3
        %s307 = smul.addr %s304, 4
        %s308 = sadd.s32 %s306, %s307
        %s309 = scalar_lea.vmem %s5, %s308
        %s310 = smul.u32 %s23, 128
        %s311 = sld [smem:[#allocation2 + %s310]]
        %s312 = sadd.s32 %s310, 1
        %s313 = sld [smem:[#allocation2 + %s312]]
        %s314 = sadd.s32 %s310, 2
        %s315 = sld [smem:[#allocation2 + %s314]]
        %s316 = sadd.s32 %s310, 3
        %s317 = sld [smem:[#allocation2 + %s316]]
        %s318 = sadd.s32 %s310, 4
        %s319 = sld [smem:[#allocation2 + %s318]]
        %s320 = sadd.s32 %s310, 5
        %s321 = sld [smem:[#allocation2 + %s320]]
        %s322 = sadd.s32 %s310, 6
        %s323 = sld [smem:[#allocation2 + %s322]]
        %s324 = sadd.s32 %s310, 7
        %s325 = sld [smem:[#allocation2 + %s324]]
        %s326 = sadd.s32 %s310, 8
        %s327 = sld [smem:[#allocation2 + %s326]]
        %s328 = sadd.s32 %s310, 9
        %s329 = sld [smem:[#allocation2 + %s328]]
        %s330 = sadd.s32 %s310, 10
        %s331 = sld [smem:[#allocation2 + %s330]]
        %s332 = sadd.s32 %s310, 11
        %s333 = sld [smem:[#allocation2 + %s332]]
        %s334 = sadd.s32 %s310, 12
        %s335 = sld [smem:[#allocation2 + %s334]]
        %s336 = sadd.s32 %s310, 13
        %s337 = sld [smem:[#allocation2 + %s336]]
        %s338 = sadd.s32 %s310, 14
        %s339 = sld [smem:[#allocation2 + %s338]]
        %s340 = sadd.s32 %s310, 15
        %s341 = sld [smem:[#allocation2 + %s340]]
        %s342 = sadd.s32 %s310, 16
        %s343 = sld [smem:[#allocation2 + %s342]]
        %s344 = sadd.s32 %s310, 17
        %s345 = sld [smem:[#allocation2 + %s344]]
        %s346 = sadd.s32 %s310, 18
        %s347 = sld [smem:[#allocation2 + %s346]]
        %s348 = sadd.s32 %s310, 19
        %s349 = sld [smem:[#allocation2 + %s348]]
        %s350 = sadd.s32 %s310, 20
        %s351 = sld [smem:[#allocation2 + %s350]]
        %s352 = sadd.s32 %s310, 21
        %s353 = sld [smem:[#allocation2 + %s352]]
        %s354 = sadd.s32 %s310, 22
        %s355 = sld [smem:[#allocation2 + %s354]]
        %s356 = sadd.s32 %s310, 23
        %s357 = sld [smem:[#allocation2 + %s356]]
        %s358 = sadd.s32 %s310, 24
        %s359 = sld [smem:[#allocation2 + %s358]]
        %s360 = sadd.s32 %s310, 25
        %s361 = sld [smem:[#allocation2 + %s360]]
        %s362 = sadd.s32 %s310, 26
        %s363 = sld [smem:[#allocation2 + %s362]]
        %v364 = vld [vmem:[%s287] sm:$0xff]
        %v365 = vstv %s311
        %v366 = vmul.f32 %v364, %v365
        %v367 = vadd.f32 %v366, 0.0
        %s368 = scalar_lea.vmem %s287, 16
        %v369 = vld [vmem:[%s368] sm:$0xff]
        %v370 = vstv %s313
        %v371 = vmul.f32 %v369, %v370
        %v372 = vadd.f32 %v367, %v371
        %v373 = vstv %s315
        %v374 = vmul.f32 %v364, %v373
        %376 = vrot.lane.b32.xlu0 %v374, 127
        %v377 = vpop.permute.xlu0 %376
        %v379 = vadd.f32 %v372, %v377
        %s380 = scalar_lea.vmem %s287, 32
        %v381 = vld [vmem:[%s380] sm:$0xff]
        %v382 = vstv %s317
        %v383 = vmul.f32 %v381, %v382
        %v384 = vadd.f32 %v379, %v383
        %s385 = scalar_lea.vmem %s287, 48
        %v386 = vld [vmem:[%s385] sm:$0xff]
        %v387 = vstv %s319
        %v388 = vmul.f32 %v386, %v387
        %v389 = vadd.f32 %v384, %v388
        %v390 = vstv %s321
        %v391 = vmul.f32 %v381, %v390
        %393 = vrot.lane.b32.xlu0 %v391, 127
        %v394 = vpop.permute.xlu0 %393
        %v396 = vadd.f32 %v389, %v394
        %v397 = vstv %s323
        %v398 = vmul.f32 %v364, %v397
        %400 = vrot.lane.b32.xlu0 %v398, 119
        %v401 = vpop.permute.xlu0 %400
        %v403 = vadd.f32 %v396, %v401
        %v404 = vstv %s325
        %v405 = vmul.f32 %v369, %v404
        %407 = vrot.lane.b32.xlu0 %v405, 119
        %v408 = vpop.permute.xlu0 %407
        %v410 = vadd.f32 %v403, %v408
        %v411 = vstv %s327
        %v412 = vmul.f32 %v364, %v411
        %414 = vrot.lane.b32.xlu0 %v412, 118
        %v415 = vpop.permute.xlu0 %414
        %v417 = vadd.f32 %v410, %v415
        %s418 = scalar_lea.vmem %s287, 64
        %v419 = vld [vmem:[%s418] sm:$0xff]
        %v420 = vstv %s329
        %v421 = vmul.f32 %v419, %v420
        %v422 = vadd.f32 %v417, %v421
        %s423 = scalar_lea.vmem %s287, 80
        %v424 = vld [vmem:[%s423] sm:$0xff]
        %v425 = vstv %s331
        %v426 = vmul.f32 %v424, %v425
        %v427 = vadd.f32 %v422, %v426
        %v428 = vstv %s333
        %v429 = vmul.f32 %v419, %v428
        %431 = vrot.lane.b32.xlu0 %v429, 127
        %v432 = vpop.permute.xlu0 %431
        %v434 = vadd.f32 %v427, %v432
        %s435 = scalar_lea.vmem %s287, 96
        %v436 = vld [vmem:[%s435] sm:$0xff]
        %v437 = vstv %s335
        %v438 = vmul.f32 %v436, %v437
        %v439 = vadd.f32 %v434, %v438
        %s440 = scalar_lea.vmem %s287, 112
        %v441 = vld [vmem:[%s440] sm:$0xff]
        %v442 = vstv %s337
        %v443 = vmul.f32 %v441, %v442
        %v444 = vadd.f32 %v439, %v443
        %v445 = vstv %s339
        %v446 = vmul.f32 %v436, %v445
        %448 = vrot.lane.b32.xlu0 %v446, 127
        %v449 = vpop.permute.xlu0 %448
        %v451 = vadd.f32 %v444, %v449
        %v452 = vstv %s341
        %v453 = vmul.f32 %v419, %v452
        %455 = vrot.lane.b32.xlu0 %v453, 119
        %v456 = vpop.permute.xlu0 %455
        %v458 = vadd.f32 %v451, %v456
        %v459 = vstv %s343
        %v460 = vmul.f32 %v424, %v459
        %462 = vrot.lane.b32.xlu0 %v460, 119
        %v463 = vpop.permute.xlu0 %462
        %v465 = vadd.f32 %v458, %v463
        %v466 = vstv %s345
        %v467 = vmul.f32 %v419, %v466
        %469 = vrot.lane.b32.xlu0 %v467, 118
        %v470 = vpop.permute.xlu0 %469
        %v472 = vadd.f32 %v465, %v470
        %v473 = vld [vmem:[%s287 + $0x1] sm:$0xff]
        %v474 = vstv %s347
        %v475 = vmul.f32 %v473, %v474
        %v476 = vadd.f32 %v472, %v475
        %v477 = vld [vmem:[%s368 + $0x1] sm:$0xff]
        %v478 = vstv %s349
        %v479 = vmul.f32 %v477, %v478
        %v480 = vadd.f32 %v476, %v479
        %v481 = vstv %s351
        %v482 = vmul.f32 %v473, %v481
        %484 = vrot.lane.b32.xlu0 %v482, 127
        %v485 = vpop.permute.xlu0 %484
        %v487 = vadd.f32 %v480, %v485
        %v488 = vld [vmem:[%s380 + $0x1] sm:$0xff]
        %v489 = vstv %s353
        %v490 = vmul.f32 %v488, %v489
        %v491 = vadd.f32 %v487, %v490
        %v492 = vld [vmem:[%s385 + $0x1] sm:$0xff]
        %v493 = vstv %s355
        %v494 = vmul.f32 %v492, %v493
        %v495 = vadd.f32 %v491, %v494
        %v496 = vstv %s357
        %v497 = vmul.f32 %v488, %v496
        %499 = vrot.lane.b32.xlu0 %v497, 127
        %v500 = vpop.permute.xlu0 %499
        %v502 = vadd.f32 %v495, %v500
        %v503 = vstv %s359
        %v504 = vmul.f32 %v473, %v503
        %506 = vrot.lane.b32.xlu0 %v504, 119
        %v507 = vpop.permute.xlu0 %506
        %v509 = vadd.f32 %v502, %v507
        %v510 = vstv %s361
        %v511 = vmul.f32 %v477, %v510
        %513 = vrot.lane.b32.xlu0 %v511, 119
        %v514 = vpop.permute.xlu0 %513
        %v516 = vadd.f32 %v509, %v514
        %v517 = vstv %s363
        %v518 = vmul.f32 %v473, %v517
        %520 = vrot.lane.b32.xlu0 %v518, 118
        %v521 = vpop.permute.xlu0 %520
        %v523 = vadd.f32 %v516, %v521
        %vm524 = vcmask 588800
        %525 = vst.msk [vmem:[%s295] sm:$0xff] %vm524, %v523
        %v526 = vld [vmem:[%s2] sm:$0x1]
        %v528 = vperm.slane %v526, 0
        %v530 = vmul.f32 %v523, %v528
        %v531 = vsel %vm524, %v530, 0.0
        %532 = vadd.xlane.f32.xlu0 %v531
        %v533 = vpop.xlane.xlu0 %532
        %v534 = vrot.slane %v533, 4
        %v535 = vadd.f32 %v533, %v534
        %v536 = vrot.slane %v535, 2
        %v537 = vadd.f32 %v535, %v536
        %v538 = vrot.slane %v537, 1
        %v539 = vadd.f32 %v537, %v538
        %v540 = vadd.f32 %v539, 0.0
        %v541 = vmul.f32 %v530, %v523
        %v542 = vsel %vm524, %v541, 0.0
        %543 = vadd.xlane.f32.xlu0 %v542
        %v544 = vpop.xlane.xlu0 %543
        %v545 = vrot.slane %v544, 4
        %v546 = vadd.f32 %v544, %v545
        %v547 = vrot.slane %v546, 2
        %v548 = vadd.f32 %v546, %v547
        %v549 = vrot.slane %v548, 1
        %v550 = vadd.f32 %v548, %v549
        %v551 = vadd.f32 %v550, 0.0
        %vm552 = vcmask 0
        %553 = vst.msk [vmem:[%s302] sm:$0x1] %vm552, %v540
        %554 = vst.msk [vmem:[%s309] sm:$0x1] %vm552, %v551
        %p555 = scmp.lt.s32.totalorder %s22, 1
        %s556 = scalar_select %p555, %s22, 1
        %p557 = scmp.lt.s32.totalorder %s23, 3
        %s558 = scalar_select %p557, %s23, 3
        %s559 = smul.addr %s556, 4
        %s560 = sadd.s32 %s558, %s559
        %s561 = smul.addr %s560, 8
        %s562 = scalar_lea.vmem %s3, %s561
        %p563 = scmp.lt.s32.totalorder %s22, 1
        %s564 = scalar_select %p563, %s22, 1
        %p565 = scmp.lt.s32.totalorder %s23, 3
        %s566 = scalar_select %p565, %s23, 3
        %s567 = smul.addr %s564, 4
        %s568 = sadd.s32 %s566, %s567
        %s569 = scalar_lea.vmem %s4, %s568
        %p570 = scmp.lt.s32.totalorder %s22, 1
        %s571 = scalar_select %p570, %s22, 1
        %p572 = scmp.lt.s32.totalorder %s23, 3
        %s573 = scalar_select %p572, %s23, 3
        %s574 = smul.addr %s571, 4
        %s575 = sadd.s32 %s573, %s574
        %s576 = scalar_lea.vmem %s5, %s575
        // Predicated region
        $region37: #{down_block_forward.2} parent=31 // pred_check
          %p577 = pneg %p120
        $region38: #{down_block_forward.2} parent=31 // pred_check_branch
          %579 = sbr.rel (%p577) target = $region40
        $region39: #{down_block_forward.2} parent=31 // pred_region
          _
        $region40: #{down_block_forward.2} parent=31 // pred_fallthru
          _
        // Predicated region
        $region41: #{down_block_forward.2} parent=31 // pred_check
          %p580 = pneg %p148
        $region42: #{down_block_forward.2} parent=31 // pred_check_branch
          %582 = sbr.rel (%p580) target = $region44
        $region43: #{down_block_forward.2} parent=31 // pred_region
          _
        $region44: #{down_block_forward.2} parent=31 // pred_fallthru
          _
        // Predicated region
        $region45: #{down_block_forward.2} parent=31 // pred_check
          %p583 = pneg %p176
        $region46: #{down_block_forward.2} parent=31 // pred_check_branch
          %585 = sbr.rel (%p583) target = $region48
        $region47: #{down_block_forward.2} parent=31 // pred_region
          _
        $region48: #{down_block_forward.2} parent=31 // pred_fallthru
          _
      $region32: #{down_block_forward.2} parent=5 // pred_fallthru
        _
      %p586 = scmp.le.s32.totalorder 2, %s13
      // Predicated region
      $region49: #{down_block_forward.2} parent=5 // pred_check
        %p587 = pneg %p586
      $region50: #{down_block_forward.2} parent=5 // pred_check_branch
        %589 = sbr.rel (%p587) target = $region52
      $region51: #{down_block_forward.2} parent=5 // pred_region
        %s590 = ssub.s32 %s13, 2
        // Predicated region
        $region53: #{down_block_forward.2} parent=51 // pred_check
          %p591 = pneg %p126
        $region54: #{down_block_forward.2} parent=51 // pred_check_branch
          %593 = sbr.rel (%p591) target = $region56
        $region55: #{down_block_forward.2} parent=51 // pred_region
          %p594 = scmp.lt.s32.totalorder %s24, 1
          %s595 = scalar_select %p594, %s24, 1
          %p596 = scmp.lt.s32.totalorder %s25, 3
          %s597 = scalar_select %p596, %s25, 3
          %s598 = smul.addr %s595, 4
          %s599 = sadd.s32 %s597, %s598
          %s600 = smul.addr %s599, 8
          %s601 = scalar_lea.vmem %s3, %s600
        $region56: #{down_block_forward.2} parent=51 // pred_fallthru
          _
        // Predicated region
        $region57: #{down_block_forward.2} parent=51 // pred_check
          %p602 = pneg %p154
        $region58: #{down_block_forward.2} parent=51 // pred_check_branch
          %604 = sbr.rel (%p602) target = $region60
        $region59: #{down_block_forward.2} parent=51 // pred_region
          %p605 = scmp.lt.s32.totalorder %s24, 1
          %s606 = scalar_select %p605, %s24, 1
          %p607 = scmp.lt.s32.totalorder %s25, 3
          %s608 = scalar_select %p607, %s25, 3
          %s609 = smul.addr %s606, 4
          %s610 = sadd.s32 %s608, %s609
          %s611 = scalar_lea.vmem %s4, %s610
        $region60: #{down_block_forward.2} parent=51 // pred_fallthru
          _
        // Predicated region
        $region61: #{down_block_forward.2} parent=51 // pred_check
          %p612 = pneg %p182
        $region62: #{down_block_forward.2} parent=51 // pred_check_branch
          %614 = sbr.rel (%p612) target = $region64
        $region63: #{down_block_forward.2} parent=51 // pred_region
          %p615 = scmp.lt.s32.totalorder %s24, 1
          %s616 = scalar_select %p615, %s24, 1
          %p617 = scmp.lt.s32.totalorder %s25, 3
          %s618 = scalar_select %p617, %s25, 3
          %s619 = smul.addr %s616, 4
          %s620 = sadd.s32 %s618, %s619
          %s621 = scalar_lea.vmem %s5, %s620
        $region64: #{down_block_forward.2} parent=51 // pred_fallthru
          _
      $region52: #{down_block_forward.2} parent=5 // pred_fallthru
        _
    $region6: #{down_block_forward.2} parent=1 // loop_footer
      %s17 = sadd.s32 1, %s13
    $region7: #{down_block_forward.2} parent=1 // loop_footer_branch
      %12 = sbr.rel target = $region3
    $region8: #{down_block_forward.2} parent=1 // loop_exit
      _
    %622 = vsyncpa [#allocation3], 1
    %s623 = scalar_lea.sflag [#allocation3], 1
    %624 = vsyncpa %s623, 1

// kernel: down_block_forward.3
$region0: #{down_block_forward.3}
  #allocation0 [shape = 'u32[]', space=smem, size = 0x4, offset = 0x4, fixed_abs, tag = 'smem constant byte address 0x4 - core index']
  #allocation1 [shape = 'u32[72,128]{1,0:T(1,128)}', space=vmem, size = 0x9000, scoped, tag = 'internal scratch']
  %s0 = inlined_call_operand.vmem [shape: f32[2,4,8,72], index: 0, kind: input, shape index: {}]
  %s1 = inlined_call_operand.vmem [shape: f32[2,4,8,90], index: 1, kind: input, shape index: {}]
  %s2 = inlined_call_operand.vmem [shape: f32[2,4], index: 2, kind: input, shape index: {}]
  %s3 = inlined_call_operand.vmem [shape: f32[2,4], index: 3, kind: input, shape index: {}]
  %s4 = inlined_call_operand.vmem [shape: f32[16,4], index: 4, kind: input, shape index: {}]
  %s5 = inlined_call_operand.vmem [shape: f32[16], index: 5, kind: input, shape index: {}]
  %s6 = inlined_call_operand.vmem [shape: f32[8,16], index: 6, kind: input, shape index: {}]
  %s7 = inlined_call_operand.vmem [shape: f32[8], index: 7, kind: input, shape index: {}]
  %s8 = inlined_call_operand.vmem [shape: f32[8,4], index: 8, kind: input, shape index: {}]
  %s9 = inlined_call_operand.vmem [shape: f32[2,8,8,72], index: 9, kind: output, shape index: {}]
  %s10 = sld [smem:[#allocation0]]
  $region97: #{down_block_forward.3} parent=0
    _
  %s12 = ssub.s32 1, %s10
  %s13 = scalar_select 0, %s12, %s10
  $region1: #{down_block_forward.3} parent=0
    #allocation2 [shape = 'u8[1024]{0}', space=smem, size = 0x400, scoped, tag = 'input window, operand 2, single buffered']
    #allocation3 [shape = 's32[2]{0}', space=sflag, size = 0x8, scoped, tag = 'scoped memory for down_block_forward.3']
    #allocation4 [shape = 'u8[1024]{0}', space=smem, size = 0x400, scoped, tag = 'input window, operand 3, single buffered']
    #allocation5 [shape = 's32[1]{0}', space=sflag, size = 0x4, scoped, tag = 'scoped memory for down_block_forward.3']
    #allocation6 [shape = 'u8[8192]{0}', space=smem, size = 0x2000, scoped, tag = 'input window, operand 4, single buffered']
    #allocation7 [shape = 'u8[512]{0}', space=smem, size = 0x200, scoped, tag = 'input window, operand 5, single buffered']
    #allocation8 [shape = 's32[1]{0}', space=sflag, size = 0x4, scoped, tag = 'scoped memory for down_block_forward.3']
    #allocation9 [shape = 'u8[4096]{0}', space=smem, size = 0x1000, scoped, tag = 'input window, operand 6, single buffered']
    #allocation10 [shape = 'u8[512]{0}', space=smem, size = 0x200, scoped, tag = 'input window, operand 7, single buffered']
    #allocation11 [shape = 's32[1]{0}', space=sflag, size = 0x4, scoped, tag = 'scoped memory for down_block_forward.3']
    #allocation12 [shape = 'u8[4096]{0}', space=smem, size = 0x1000, scoped, tag = 'input window, operand 8, single buffered']
    %14 = vsyncpa [#allocation3], 0
    %15 = vsyncpa [#allocation5], 0
    %16 = vsyncpa [#allocation8], 0
    %17 = vsyncpa [#allocation11], 0
    loop: start=0, step=1, limit=4
    $region2: #{down_block_forward.3} parent=1 // loop_pre_header
      _
    $region3: #{down_block_forward.3} parent=1 // loop_header
      %s19 = sphi 0, %s23
      %p20 = scmp.ge.s32.totalorder %s19, 4
      %s26 = sphi 0, %s38
      %s27 = sphi 0, %s34
      %s28 = sphi 0, %s26
      %s29 = sphi 0, %s27
      %s30 = sphi 0, %s28
      %s31 = sphi 0, %s29
      %s43 = sphi 0, %s45
      %s46 = sphi 0, %s43
      %s47 = sphi 0, %s46
      %s63 = sphi 0, %s47
      %s71 = sphi 0, %s73
      %s74 = sphi 0, %s71
      %s75 = sphi 0, %s74
      %s91 = sphi 0, %s75
      %s95 = sphi 0, %s95
      %s97 = sphi 0, %s95
      %s98 = sphi 0, %s97
      %s112 = sphi 0, %s98
      %s116 = sphi 0, %s116
      %s118 = sphi 0, %s116
      %s119 = sphi 0, %s118
      %s133 = sphi 0, %s119
      %s137 = sphi 0, %s137
      %s139 = sphi 0, %s137
      %s140 = sphi 0, %s139
      %s154 = sphi 0, %s140
      %s158 = sphi 0, %s158
      %s160 = sphi 0, %s158
      %s161 = sphi 0, %s160
      %s175 = sphi 0, %s161
      %s179 = sphi 0, %s179
      %s181 = sphi 0, %s179
      %s182 = sphi 0, %s181
      %s196 = sphi 0, %s182
      %s200 = sphi 0, %s200
      %s202 = sphi 0, %s200
      %s203 = sphi 0, %s202
      %s217 = sphi 0, %s203
      %s221 = sphi 0, %s221
      %s223 = sphi 0, %s221
      %s224 = sphi 0, %s223
      %s238 = sphi 0, %s224
      %s246 = sphi 0, %s248
      %s249 = sphi 0, %s246
      %s250 = sphi 0, %s249
      %s266 = sphi 0, %s250
    $region4: #{down_block_forward.3} parent=1 // loop_header_branch
      %22 = sbr.rel (%p20) target = $region8
    $region5: #{down_block_forward.3} parent=1 // loop_body
      %s24 = ssub.s32 %s19, 1
      %s25 = ssub.s32 %s19, 2
      %s32 = sadd.s32 1, %s27
      %p33 = scmp.ge.s32.totalorder %s32, 1
      %s34 = scalar_select %p33, 0, %s32
      %s35 = sadd.s32 1, %s26
      %s36 = scalar_select %p33, %s35, %s26
      %p37 = scmp.ge.s32.totalorder %s36, 2
      %s38 = scalar_select %p37, 0, %s36
      %s39 = ssub.s32 %s26, %s38
      %s40 = ssub.s32 %s27, %s34
      %s41 = sor.u32 %s39, %s40
      %p42 = scmp.eq.s32.totalorder %s41, 0
      %s44 = sadd.s32 %s43, 1
      %s45 = scalar_select %p42, %s43, %s44
      %p48 = pneg %p42
      %p49 = scmp.eq.s32.totalorder %s19, 1
      %p50 = por %p48, %p49
      %p51 = scmp.ne.s32.totalorder %s43, %s46
      %p52 = scmp.eq.s32.totalorder %s19, 0
      %p53 = por %p51, %p52
      %p54 = scmp.ne.s32.totalorder %s43, %s46
      %p55 = scmp.eq.s32.totalorder %s24, 1
      %p56 = por %p54, %p55
      %p57 = scmp.ne.s32.totalorder %s46, %s47
      %p58 = scmp.eq.s32.totalorder %s24, 0
      %p59 = por %p57, %p58
      %p60 = scmp.ne.s32.totalorder %s46, %s47
      %p61 = scmp.eq.s32.totalorder %s25, 1
      %p62 = por %p60, %p61
      %p64 = scmp.ne.s32.totalorder %s47, %s63
      %p65 = scmp.eq.s32.totalorder %s25, 0
      %p66 = por %p64, %p65
      %s67 = ssub.s32 %s26, %s38
      %s68 = ssub.s32 %s27, %s34
      %s69 = sor.u32 %s67, %s68
      %p70 = scmp.eq.s32.totalorder %s69, 0
      %s72 = sadd.s32 %s71, 1
      %s73 = scalar_select %p70, %s71, %s72
      %p76 = pneg %p70
      %p77 = scmp.eq.s32.totalorder %s19, 1
      %p78 = por %p76, %p77
      %p79 = scmp.ne.s32.totalorder %s71, %s74
      %p80 = scmp.eq.s32.totalorder %s19, 0
      %p81 = por %p79, %p80
      %p82 = scmp.ne.s32.totalorder %s71, %s74
      %p83 = scmp.eq.s32.totalorder %s24, 1
      %p84 = por %p82, %p83
      %p85 = scmp.ne.s32.totalorder %s74, %s75
      %p86 = scmp.eq.s32.totalorder %s24, 0
      %p87 = por %p85, %p86
      %p88 = scmp.ne.s32.totalorder %s74, %s75
      %p89 = scmp.eq.s32.totalorder %s25, 1
      %p90 = por %p88, %p89
      %p92 = scmp.ne.s32.totalorder %s75, %s91
      %p93 = scmp.eq.s32.totalorder %s25, 0
      %p94 = por %p92, %p93
      %s96 = sadd.s32 %s95, 1
      %p99 = scmp.eq.s32.totalorder %s19, 1
      %p100 = scmp.ne.s32.totalorder %s95, %s97
      %p101 = scmp.eq.s32.totalorder %s19, 0
      %p102 = por %p100, %p101
      %p103 = scmp.ne.s32.totalorder %s95, %s97
      %p104 = scmp.eq.s32.totalorder %s24, 1
      %p105 = por %p103, %p104
      %p106 = scmp.ne.s32.totalorder %s97, %s98
      %p107 = scmp.eq.s32.totalorder %s24, 0
      %p108 = por %p106, %p107
      %p109 = scmp.ne.s32.totalorder %s97, %s98
      %p110 = scmp.eq.s32.totalorder %s25, 1
      %p111 = por %p109, %p110
      %p113 = scmp.ne.s32.totalorder %s98, %s112
      %p114 = scmp.eq.s32.totalorder %s25, 0
      %p115 = por %p113, %p114
      %s117 = sadd.s32 %s116, 1
      %p120 = scmp.eq.s32.totalorder %s19, 1
      %p121 = scmp.ne.s32.totalorder %s116, %s118
      %p122 = scmp.eq.s32.totalorder %s19, 0
      %p123 = por %p121, %p122
      %p124 = scmp.ne.s32.totalorder %s116, %s118
      %p125 = scmp.eq.s32.totalorder %s24, 1
      %p126 = por %p124, %p125
      %p127 = scmp.ne.s32.totalorder %s118, %s119
      %p128 = scmp.eq.s32.totalorder %s24, 0
      %p129 = por %p127, %p128
      %p130 = scmp.ne.s32.totalorder %s118, %s119
      %p131 = scmp.eq.s32.totalorder %s25, 1
      %p132 = por %p130, %p131
      %p134 = scmp.ne.s32.totalorder %s119, %s133
      %p135 = scmp.eq.s32.totalorder %s25, 0
      %p136 = por %p134, %p135
      %s138 = sadd.s32 %s137, 1
      %p141 = scmp.eq.s32.totalorder %s19, 1
      %p142 = scmp.ne.s32.totalorder %s137, %s139
      %p143 = scmp.eq.s32.totalorder %s19, 0
      %p144 = por %p142, %p143
      %p145 = scmp.ne.s32.totalorder %s137, %s139
      %p146 = scmp.eq.s32.totalorder %s24, 1
      %p147 = por %p145, %p146
      %p148 = scmp.ne.s32.totalorder %s139, %s140
      %p149 = scmp.eq.s32.totalorder %s24, 0
      %p150 = por %p148, %p149
      %p151 = scmp.ne.s32.totalorder %s139, %s140
      %p152 = scmp.eq.s32.totalorder %s25, 1
      %p153 = por %p151, %p152
      %p155 = scmp.ne.s32.totalorder %s140, %s154
      %p156 = scmp.eq.s32.totalorder %s25, 0
      %p157 = por %p155, %p156
      %s159 = sadd.s32 %s158, 1
      %p162 = scmp.eq.s32.totalorder %s19, 1
      %p163 = scmp.ne.s32.totalorder %s158, %s160
      %p164 = scmp.eq.s32.totalorder %s19, 0
      %p165 = por %p163, %p164
      %p166 = scmp.ne.s32.totalorder %s158, %s160
      %p167 = scmp.eq.s32.totalorder %s24, 1
      %p168 = por %p166, %p167
      %p169 = scmp.ne.s32.totalorder %s160, %s161
      %p170 = scmp.eq.s32.totalorder %s24, 0
      %p171 = por %p169, %p170
      %p172 = scmp.ne.s32.totalorder %s160, %s161
      %p173 = scmp.eq.s32.totalorder %s25, 1
      %p174 = por %p172, %p173
      %p176 = scmp.ne.s32.totalorder %s161, %s175
      %p177 = scmp.eq.s32.totalorder %s25, 0
      %p178 = por %p176, %p177
      %s180 = sadd.s32 %s179, 1
      %p183 = scmp.eq.s32.totalorder %s19, 1
      %p184 = scmp.ne.s32.totalorder %s179, %s181
      %p185 = scmp.eq.s32.totalorder %s19, 0
      %p186 = por %p184, %p185
      %p187 = scmp.ne.s32.totalorder %s179, %s181
      %p188 = scmp.eq.s32.totalorder %s24, 1
      %p189 = por %p187, %p188
      %p190 = scmp.ne.s32.totalorder %s181, %s182
      %p191 = scmp.eq.s32.totalorder %s24, 0
      %p192 = por %p190, %p191
      %p193 = scmp.ne.s32.totalorder %s181, %s182
      %p194 = scmp.eq.s32.totalorder %s25, 1
      %p195 = por %p193, %p194
      %p197 = scmp.ne.s32.totalorder %s182, %s196
      %p198 = scmp.eq.s32.totalorder %s25, 0
      %p199 = por %p197, %p198
      %s201 = sadd.s32 %s200, 1
      %p204 = scmp.eq.s32.totalorder %s19, 1
      %p205 = scmp.ne.s32.totalorder %s200, %s202
      %p206 = scmp.eq.s32.totalorder %s19, 0
      %p207 = por %p205, %p206
      %p208 = scmp.ne.s32.totalorder %s200, %s202
      %p209 = scmp.eq.s32.totalorder %s24, 1
      %p210 = por %p208, %p209
      %p211 = scmp.ne.s32.totalorder %s202, %s203
      %p212 = scmp.eq.s32.totalorder %s24, 0
      %p213 = por %p211, %p212
      %p214 = scmp.ne.s32.totalorder %s202, %s203
      %p215 = scmp.eq.s32.totalorder %s25, 1
      %p216 = por %p214, %p215
      %p218 = scmp.ne.s32.totalorder %s203, %s217
      %p219 = scmp.eq.s32.totalorder %s25, 0
      %p220 = por %p218, %p219
      %s222 = sadd.s32 %s221, 1
      %p225 = scmp.eq.s32.totalorder %s19, 1
      %p226 = scmp.ne.s32.totalorder %s221, %s223
      %p227 = scmp.eq.s32.totalorder %s19, 0
      %p228 = por %p226, %p227
      %p229 = scmp.ne.s32.totalorder %s221, %s223
      %p230 = scmp.eq.s32.totalorder %s24, 1
      %p231 = por %p229, %p230
      %p232 = scmp.ne.s32.totalorder %s223, %s224
      %p233 = scmp.eq.s32.totalorder %s24, 0
      %p234 = por %p232, %p233
      %p235 = scmp.ne.s32.totalorder %s223, %s224
      %p236 = scmp.eq.s32.totalorder %s25, 1
      %p237 = por %p235, %p236
      %p239 = scmp.ne.s32.totalorder %s224, %s238
      %p240 = scmp.eq.s32.totalorder %s25, 0
      %p241 = por %p239, %p240
      %s242 = ssub.s32 %s26, %s38
      %s243 = ssub.s32 %s27, %s34
      %s244 = sor.u32 %s242, %s243
      %p245 = scmp.eq.s32.totalorder %s244, 0
      %s247 = sadd.s32 %s246, 1
      %s248 = scalar_select %p245, %s246, %s247
      %p251 = pneg %p245
      %p252 = scmp.eq.s32.totalorder %s19, 1
      %p253 = por %p251, %p252
      %p254 = scmp.ne.s32.totalorder %s246, %s249
      %p255 = scmp.eq.s32.totalorder %s19, 0
      %p256 = por %p254, %p255
      %p257 = scmp.ne.s32.totalorder %s246, %s249
      %p258 = scmp.eq.s32.totalorder %s24, 1
      %p259 = por %p257, %p258
      %p260 = scmp.ne.s32.totalorder %s249, %s250
      %p261 = scmp.eq.s32.totalorder %s24, 0
      %p262 = por %p260, %p261
      %p263 = scmp.ne.s32.totalorder %s249, %s250
      %p264 = scmp.eq.s32.totalorder %s25, 1
      %p265 = por %p263, %p264
      %p267 = scmp.ne.s32.totalorder %s250, %s266
      %p268 = scmp.eq.s32.totalorder %s25, 0
      %p269 = por %p267, %p268
      %p270 = scmp.le.s32.totalorder 1, %s19
      %p271 = scmp.lt.s32.totalorder %s19, 3
      %p272 = pnand %p270, %p271
      %p273 = pneg %p272
      // Predicated region
      $region9: #{down_block_forward.3} parent=5 // pred_check
        _
      $region10: #{down_block_forward.3} parent=5 // pred_check_branch
        %275 = sbr.rel (%p272) target = $region12
      $region11: #{down_block_forward.3} parent=5 // pred_region
        %s276 = ssub.s32 %s19, 1
        // Predicated region
        $region13: #{down_block_forward.3} parent=11 // pred_check
          %p277 = pneg %p108
        $region14: #{down_block_forward.3} parent=11 // pred_check_branch
          %279 = sbr.rel (%p277) target = $region16
        $region15: #{down_block_forward.3} parent=11 // pred_region
          %281 = vsyncadd [#allocation3], 0
          %s283 = sshll.u32 %s2, 4
          %s284 = int_to_ptr.vmem [resolvable:$true] %s283
          %286 = dma.vmem_to_smem %s284, 32, [#allocation2], [#allocation3]
        $region16: #{down_block_forward.3} parent=11 // pred_fallthru
          _
        // Predicated region
        $region17: #{down_block_forward.3} parent=11 // pred_check
          %p287 = pneg %p129
        $region18: #{down_block_forward.3} parent=11 // pred_check_branch
          %289 = sbr.rel (%p287) target = $region20
        $region19: #{down_block_forward.3} parent=11 // pred_region
          %291 = vsyncadd [#allocation5], 0
          %s293 = sshll.u32 %s3, 4
          %s294 = int_to_ptr.vmem [resolvable:$true] %s293
          %296 = dma.vmem_to_smem %s294, 32, [#allocation4], [#allocation5]
        $region20: #{down_block_forward.3} parent=11 // pred_fallthru
          _
        // Predicated region
        $region21: #{down_block_forward.3} parent=11 // pred_check
          %p297 = pneg %p150
        $region22: #{down_block_forward.3} parent=11 // pred_check_branch
          %299 = sbr.rel (%p297) target = $region24
        $region23: #{down_block_forward.3} parent=11 // pred_region
          %301 = vsyncadd [#allocation5], 0
          %s302 = sshll.u32 %s4, 4
          %s303 = int_to_ptr.vmem [resolvable:$true] %s302
          %308 = dma.vmem_to_smem %s303, 256, [#allocation6], [#allocation5], 128, 128, 8
        $region24: #{down_block_forward.3} parent=11 // pred_fallthru
          _
        // Predicated region
        $region25: #{down_block_forward.3} parent=11 // pred_check
          %p309 = pneg %p171
        $region26: #{down_block_forward.3} parent=11 // pred_check_branch
          %311 = sbr.rel (%p309) target = $region28
        $region27: #{down_block_forward.3} parent=11 // pred_region
          %313 = vsyncadd [#allocation8], 0
          %s315 = sshll.u32 %s5, 4
          %s316 = int_to_ptr.vmem [resolvable:$true] %s315
          %318 = dma.vmem_to_smem %s316, 16, [#allocation7], [#allocation8]
        $region28: #{down_block_forward.3} parent=11 // pred_fallthru
          _
        // Predicated region
        $region29: #{down_block_forward.3} parent=11 // pred_check
          %p319 = pneg %p192
        $region30: #{down_block_forward.3} parent=11 // pred_check_branch
          %321 = sbr.rel (%p319) target = $region32
        $region31: #{down_block_forward.3} parent=11 // pred_region
          %323 = vsyncadd [#allocation8], 0
          %s325 = sshll.u32 %s6, 4
          %s326 = int_to_ptr.vmem [resolvable:$true] %s325
          %328 = dma.vmem_to_smem %s326, 128, [#allocation9], [#allocation8]
        $region32: #{down_block_forward.3} parent=11 // pred_fallthru
          _
        // Predicated region
        $region33: #{down_block_forward.3} parent=11 // pred_check
          %p329 = pneg %p213
        $region34: #{down_block_forward.3} parent=11 // pred_check_branch
          %331 = sbr.rel (%p329) target = $region36
        $region35: #{down_block_forward.3} parent=11 // pred_region
          %333 = vsyncadd [#allocation11], 0
          %s335 = sshll.u32 %s7, 4
          %s336 = int_to_ptr.vmem [resolvable:$true] %s335
          %338 = dma.vmem_to_smem %s336, 16, [#allocation10], [#allocation11]
        $region36: #{down_block_forward.3} parent=11 // pred_fallthru
          _
        // Predicated region
        $region37: #{down_block_forward.3} parent=11 // pred_check
          %p339 = pneg %p234
        $region38: #{down_block_forward.3} parent=11 // pred_check_branch
          %341 = sbr.rel (%p339) target = $region40
        $region39: #{down_block_forward.3} parent=11 // pred_region
          %343 = vsyncadd [#allocation11], 0
          %s345 = sshll.u32 %s8, 4
          %s346 = int_to_ptr.vmem [resolvable:$true] %s345
          %348 = dma.vmem_to_smem %s346, 128, [#allocation12], [#allocation11]
        $region40: #{down_block_forward.3} parent=11 // pred_fallthru
          _
      $region12: #{down_block_forward.3} parent=5 // pred_fallthru
        _
      %p349 = scmp.lt.s32.totalorder %s19, 2
      // Predicated region
      $region41: #{down_block_forward.3} parent=5 // pred_check
        %p350 = pneg %p349
      $region42: #{down_block_forward.3} parent=5 // pred_check_branch
        %352 = sbr.rel (%p350) target = $region44
      $region43: #{down_block_forward.3} parent=5 // pred_region
        // Predicated region
        $region45: #{down_block_forward.3} parent=43 // pred_check
          %p353 = pneg %p53
        $region46: #{down_block_forward.3} parent=43 // pred_check_branch
          %355 = sbr.rel (%p353) target = $region48
        $region47: #{down_block_forward.3} parent=43 // pred_region
          %p356 = scmp.lt.s32.totalorder %s26, 1
          %s357 = scalar_select %p356, %s26, 1
          %p358 = scmp.lt.s32.totalorder %s27, 0
          %s359 = scalar_select %p358, %s27, 0
          %s360 = smul.addr %s357, 4
          %s361 = sadd.s32 %s359, %s360
          %s362 = smul.addr %s361, 8
          %s363 = scalar_lea.vmem %s0, %s362
        $region48: #{down_block_forward.3} parent=43 // pred_fallthru
          _
        // Predicated region
        $region49: #{down_block_forward.3} parent=43 // pred_check
          %p364 = pneg %p81
        $region50: #{down_block_forward.3} parent=43 // pred_check_branch
          %366 = sbr.rel (%p364) target = $region52
        $region51: #{down_block_forward.3} parent=43 // pred_region
          %p367 = scmp.lt.s32.totalorder %s26, 1
          %s368 = scalar_select %p367, %s26, 1
          %p369 = scmp.lt.s32.totalorder %s27, 0
          %s370 = scalar_select %p369, %s27, 0
          %s371 = smul.addr %s368, 4
          %s372 = sadd.s32 %s370, %s371
          %s373 = smul.addr %s372, 8
          %s374 = scalar_lea.vmem %s1, %s373
        $region52: #{down_block_forward.3} parent=43 // pred_fallthru
          _
      $region44: #{down_block_forward.3} parent=5 // pred_fallthru
        _
      %p375 = scmp.le.s32.totalorder 1, %s19
      %p376 = scmp.lt.s32.totalorder %s19, 3
      %p377 = pnand %p375, %p376
      %p378 = pneg %p377
      // Predicated region
      $region53: #{down_block_forward.3} parent=5 // pred_check
        _
      $region54: #{down_block_forward.3} parent=5 // pred_check_branch
        %380 = sbr.rel (%p377) target = $region56
      $region55: #{down_block_forward.3} parent=5 // pred_region
        %s381 = ssub.s32 %s19, 1
        // Predicated region
        $region57: #{down_block_forward.3} parent=55 // pred_check
          %p382 = pneg %p108
        $region58: #{down_block_forward.3} parent=55 // pred_check_branch
          %384 = sbr.rel (%p382) target = $region60
        $region59: #{down_block_forward.3} parent=55 // pred_region
          %386 = dma.done [#allocation3], 32
        $region60: #{down_block_forward.3} parent=55 // pred_fallthru
          _
        // Predicated region
        $region61: #{down_block_forward.3} parent=55 // pred_check
          %p387 = pneg %p129
        $region62: #{down_block_forward.3} parent=55 // pred_check_branch
          %389 = sbr.rel (%p387) target = $region64
        $region63: #{down_block_forward.3} parent=55 // pred_region
          %391 = dma.done [#allocation5], 32
        $region64: #{down_block_forward.3} parent=55 // pred_fallthru
          _
        // Predicated region
        $region65: #{down_block_forward.3} parent=55 // pred_check
          %p392 = pneg %p150
        $region66: #{down_block_forward.3} parent=55 // pred_check_branch
          %394 = sbr.rel (%p392) target = $region68
        $region67: #{down_block_forward.3} parent=55 // pred_region
          %396 = dma.done [#allocation5], 256
        $region68: #{down_block_forward.3} parent=55 // pred_fallthru
          _
        // Predicated region
        $region69: #{down_block_forward.3} parent=55 // pred_check
          %p397 = pneg %p171
        $region70: #{down_block_forward.3} parent=55 // pred_check_branch
          %399 = sbr.rel (%p397) target = $region72
        $region71: #{down_block_forward.3} parent=55 // pred_region
          %401 = dma.done [#allocation8], 16
        $region72: #{down_block_forward.3} parent=55 // pred_fallthru
          _
        // Predicated region
        $region73: #{down_block_forward.3} parent=55 // pred_check
          %p402 = pneg %p192
        $region74: #{down_block_forward.3} parent=55 // pred_check_branch
          %404 = sbr.rel (%p402) target = $region76
        $region75: #{down_block_forward.3} parent=55 // pred_region
          %406 = dma.done [#allocation8], 128
        $region76: #{down_block_forward.3} parent=55 // pred_fallthru
          _
        // Predicated region
        $region77: #{down_block_forward.3} parent=55 // pred_check
          %p407 = pneg %p213
        $region78: #{down_block_forward.3} parent=55 // pred_check_branch
          %409 = sbr.rel (%p407) target = $region80
        $region79: #{down_block_forward.3} parent=55 // pred_region
          %411 = dma.done [#allocation11], 16
        $region80: #{down_block_forward.3} parent=55 // pred_fallthru
          _
        // Predicated region
        $region81: #{down_block_forward.3} parent=55 // pred_check
          %p412 = pneg %p234
        $region82: #{down_block_forward.3} parent=55 // pred_check_branch
          %414 = sbr.rel (%p412) target = $region84
        $region83: #{down_block_forward.3} parent=55 // pred_region
          %416 = dma.done [#allocation11], 128
        $region84: #{down_block_forward.3} parent=55 // pred_fallthru
          _
        %417 = sfence
        %p418 = scmp.lt.s32.totalorder %s28, 1
        %s419 = scalar_select %p418, %s28, 1
        %p420 = scmp.lt.s32.totalorder %s29, 0
        %s421 = scalar_select %p420, %s29, 0
        %s422 = smul.addr %s419, 4
        %s423 = sadd.s32 %s421, %s422
        %s424 = smul.addr %s423, 8
        %s425 = scalar_lea.vmem %s0, %s424
        %p426 = pneg %p59
        %p427 = pneg %p56
        %p428 = scmp.lt.s32.totalorder %s28, 1
        %s429 = scalar_select %p428, %s28, 1
        %p430 = scmp.lt.s32.totalorder %s29, 0
        %s431 = scalar_select %p430, %s29, 0
        %s432 = smul.addr %s429, 4
        %s433 = sadd.s32 %s431, %s432
        %s434 = smul.addr %s433, 8
        %s435 = scalar_lea.vmem %s1, %s434
        %p436 = pneg %p87
        %p437 = pneg %p84
        %p438 = pneg %p108
        %p439 = pneg %p105
        %p440 = pneg %p129
        %p441 = pneg %p126
        %p442 = pneg %p150
        %p443 = pneg %p147
        %p444 = pneg %p171
        %p445 = pneg %p168
        %p446 = pneg %p192
        %p447 = pneg %p189
        %p448 = pneg %p213
        %p449 = pneg %p210
        %p450 = pneg %p234
        %p451 = pneg %p231
        %p452 = pneg %p262
        %p453 = pneg %p259
        %p454 = scmp.lt.s32.totalorder %s28, 1
        %s455 = scalar_select %p454, %s28, 1
        %p456 = scmp.lt.s32.totalorder %s29, 0
        %s457 = scalar_select %p456, %s29, 0
        %s458 = smul.addr %s455, 8
        %s459 = sadd.s32 %s457, %s458
        %s460 = smul.addr %s459, 8
        %s461 = scalar_lea.vmem %s9, %s460
        %p462 = scmp.lt.s32.totalorder %s28, 1
        %s463 = scalar_select %p462, %s28, 1
        %p464 = scmp.lt.s32.totalorder %s29, 0
        %s465 = scalar_select %p464, %s29, 0
        %s466 = smul.addr %s463, 4
        %s467 = sadd.s32 %s465, %s466
        %s468 = smul.addr %s467, 8
        %s469 = scalar_lea.vmem %s0, %s468
        %p470 = scmp.lt.s32.totalorder %s28, 1
        %s471 = scalar_select %p470, %s28, 1
        %p472 = scmp.lt.s32.totalorder %s29, 0
        %s473 = scalar_select %p472, %s29, 0
        %s474 = smul.addr %s471, 4
        %s475 = sadd.s32 %s473, %s474
        %s476 = smul.addr %s475, 8
        %s477 = scalar_lea.vmem %s1, %s476
        %p478 = scmp.lt.s32.totalorder %s28, 1
        %s479 = scalar_select %p478, %s28, 1
        %p480 = scmp.lt.s32.totalorder %s29, 0
        %s481 = scalar_select %p480, %s29, 0
        %s482 = smul.addr %s479, 8
        %s483 = sadd.s32 %s481, %s482
        %s484 = smul.addr %s483, 8
        %s485 = scalar_lea.vmem %s9, %s484
        %s486 = smul.u32 %s28, 128
        %s487 = sld [smem:[#allocation2 + %s486]]
        %s488 = sadd.s32 %s486, 1
        %s489 = sld [smem:[#allocation2 + %s488]]
        %s490 = sadd.s32 %s486, 2
        %s491 = sld [smem:[#allocation2 + %s490]]
        %s492 = sadd.s32 %s486, 3
        %s493 = sld [smem:[#allocation2 + %s492]]
        %s494 = sld [smem:[#allocation4 + %s486]]
        %s495 = sld [smem:[#allocation4 + %s488]]
        %s496 = sld [smem:[#allocation4 + %s490]]
        %s497 = sld [smem:[#allocation4 + %s492]]
        %s498 = sld [smem:[#allocation6]]
        %s499 = sld [smem:[#allocation6 + $0x1]]
        %s500 = sld [smem:[#allocation6 + $0x2]]
        %s501 = sld [smem:[#allocation6 + $0x3]]
        %s502 = sld [smem:[#allocation6 + $0x80]]
        %s503 = sld [smem:[#allocation6 + $0x81]]
        %s504 = sld [smem:[#allocation6 + $0x82]]
        %s505 = sld [smem:[#allocation6 + $0x83]]
        %s506 = sld [smem:[#allocation6 + $0x100]]
        %s507 = sld [smem:[#allocation6 + $0x101]]
        %s508 = sld [smem:[#allocation6 + $0x102]]
        %s509 = sld [smem:[#allocation6 + $0x103]]
        %s510 = sld [smem:[#allocation6 + $0x180]]
        %s511 = sld [smem:[#allocation6 + $0x181]]
        %s512 = sld [smem:[#allocation6 + $0x182]]
        %s513 = sld [smem:[#allocation6 + $0x183]]
        %s514 = sld [smem:[#allocation6 + $0x200]]
        %s515 = sld [smem:[#allocation6 + $0x201]]
        %s516 = sld [smem:[#allocation6 + $0x202]]
        %s517 = sld [smem:[#allocation6 + $0x203]]
        %s518 = sld [smem:[#allocation6 + $0x280]]
        %s519 = sld [smem:[#allocation6 + $0x281]]
        %s520 = sld [smem:[#allocation6 + $0x282]]
        %s521 = sld [smem:[#allocation6 + $0x283]]
        %s522 = sld [smem:[#allocation6 + $0x300]]
        %s523 = sld [smem:[#allocation6 + $0x301]]
        %s524 = sld [smem:[#allocation6 + $0x302]]
        %s525 = sld [smem:[#allocation6 + $0x303]]
        %s526 = sld [smem:[#allocation6 + $0x380]]
        %s527 = sld [smem:[#allocation6 + $0x381]]
        %s528 = sld [smem:[#allocation6 + $0x382]]
        %s529 = sld [smem:[#allocation6 + $0x383]]
        %s530 = sld [smem:[#allocation6 + $0x400]]
        %s531 = sld [smem:[#allocation6 + $0x401]]
        %s532 = sld [smem:[#allocation6 + $0x402]]
        %s533 = sld [smem:[#allocation6 + $0x403]]
        %s534 = sld [smem:[#allocation6 + $0x480]]
        %s535 = sld [smem:[#allocation6 + $0x481]]
        %s536 = sld [smem:[#allocation6 + $0x482]]
        %s537 = sld [smem:[#allocation6 + $0x483]]
        %s538 = sld [smem:[#allocation6 + $0x500]]
        %s539 = sld [smem:[#allocation6 + $0x501]]
        %s540 = sld [smem:[#allocation6 + $0x502]]
        %s541 = sld [smem:[#allocation6 + $0x503]]
        %s542 = sld [smem:[#allocation6 + $0x580]]
        %s543 = sld [smem:[#allocation6 + $0x581]]
        %s544 = sld [smem:[#allocation6 + $0x582]]
        %s545 = sld [smem:[#allocation6 + $0x583]]
        %s546 = sld [smem:[#allocation6 + $0x600]]
        %s547 = sld [smem:[#allocation6 + $0x601]]
        %s548 = sld [smem:[#allocation6 + $0x602]]
        %s549 = sld [smem:[#allocation6 + $0x603]]
        %s550 = sld [smem:[#allocation6 + $0x680]]
        %s551 = sld [smem:[#allocation6 + $0x681]]
        %s552 = sld [smem:[#allocation6 + $0x682]]
        %s553 = sld [smem:[#allocation6 + $0x683]]
        %s554 = sld [smem:[#allocation6 + $0x700]]
        %s555 = sld [smem:[#allocation6 + $0x701]]
        %s556 = sld [smem:[#allocation6 + $0x702]]
        %s557 = sld [smem:[#allocation6 + $0x703]]
        %s558 = sld [smem:[#allocation6 + $0x780]]
        %s559 = sld [smem:[#allocation6 + $0x781]]
        %s560 = sld [smem:[#allocation6 + $0x782]]
        %s561 = sld [smem:[#allocation6 + $0x783]]
        %s562 = sld [smem:[#allocation7]]
        %s563 = sld [smem:[#allocation7 + $0x1]]
        %s564 = sld [smem:[#allocation7 + $0x2]]
        %s565 = sld [smem:[#allocation7 + $0x3]]
        %s566 = sld [smem:[#allocation7 + $0x4]]
        %s567 = sld [smem:[#allocation7 + $0x5]]
        %s568 = sld [smem:[#allocation7 + $0x6]]
        %s569 = sld [smem:[#allocation7 + $0x7]]
        %s570 = sld [smem:[#allocation7 + $0x8]]
        %s571 = sld [smem:[#allocation7 + $0x9]]
        %s572 = sld [smem:[#allocation7 + $0xa]]
        %s573 = sld [smem:[#allocation7 + $0xb]]
        %s574 = sld [smem:[#allocation7 + $0xc]]
        %s575 = sld [smem:[#allocation7 + $0xd]]
        %s576 = sld [smem:[#allocation7 + $0xe]]
        %s577 = sld [smem:[#allocation7 + $0xf]]
        %s578 = sld [smem:[#allocation9]]
        %s579 = sld [smem:[#allocation9 + $0x1]]
        %s580 = sld [smem:[#allocation9 + $0x2]]
        %s581 = sld [smem:[#allocation9 + $0x3]]
        %s582 = sld [smem:[#allocation9 + $0x4]]
        %s583 = sld [smem:[#allocation9 + $0x5]]
        %s584 = sld [smem:[#allocation9 + $0x6]]
        %s585 = sld [smem:[#allocation9 + $0x7]]
        %s586 = sld [smem:[#allocation9 + $0x8]]
        %s587 = sld [smem:[#allocation9 + $0x9]]
        %s588 = sld [smem:[#allocation9 + $0xa]]
        %s589 = sld [smem:[#allocation9 + $0xb]]
        %s590 = sld [smem:[#allocation9 + $0xc]]
        %s591 = sld [smem:[#allocation9 + $0xd]]
        %s592 = sld [smem:[#allocation9 + $0xe]]
        %s593 = sld [smem:[#allocation9 + $0xf]]
        %s594 = sld [smem:[#allocation9 + $0x80]]
        %s595 = sld [smem:[#allocation9 + $0x81]]
        %s596 = sld [smem:[#allocation9 + $0x82]]
        %s597 = sld [smem:[#allocation9 + $0x83]]
        %s598 = sld [smem:[#allocation9 + $0x84]]
        %s599 = sld [smem:[#allocation9 + $0x85]]
        %s600 = sld [smem:[#allocation9 + $0x86]]
        %s601 = sld [smem:[#allocation9 + $0x87]]
        %s602 = sld [smem:[#allocation9 + $0x88]]
        %s603 = sld [smem:[#allocation9 + $0x89]]
        %s604 = sld [smem:[#allocation9 + $0x8a]]
        %s605 = sld [smem:[#allocation9 + $0x8b]]
        %s606 = sld [smem:[#allocation9 + $0x8c]]
        %s607 = sld [smem:[#allocation9 + $0x8d]]
        %s608 = sld [smem:[#allocation9 + $0x8e]]
        %s609 = sld [smem:[#allocation9 + $0x8f]]
        %s610 = sld [smem:[#allocation9 + $0x100]]
        %s611 = sld [smem:[#allocation9 + $0x101]]
        %s612 = sld [smem:[#allocation9 + $0x102]]
        %s613 = sld [smem:[#allocation9 + $0x103]]
        %s614 = sld [smem:[#allocation9 + $0x104]]
        %s615 = sld [smem:[#allocation9 + $0x105]]
        %s616 = sld [smem:[#allocation9 + $0x106]]
        %s617 = sld [smem:[#allocation9 + $0x107]]
        %s618 = sld [smem:[#allocation9 + $0x108]]
        %s619 = sld [smem:[#allocation9 + $0x109]]
        %s620 = sld [smem:[#allocation9 + $0x10a]]
        %s621 = sld [smem:[#allocation9 + $0x10b]]
        %s622 = sld [smem:[#allocation9 + $0x10c]]
        %s623 = sld [smem:[#allocation9 + $0x10d]]
        %s624 = sld [smem:[#allocation9 + $0x10e]]
        %s625 = sld [smem:[#allocation9 + $0x10f]]
        %s626 = sld [smem:[#allocation9 + $0x180]]
        %s627 = sld [smem:[#allocation9 + $0x181]]
        %s628 = sld [smem:[#allocation9 + $0x182]]
        %s629 = sld [smem:[#allocation9 + $0x183]]
        %s630 = sld [smem:[#allocation9 + $0x184]]
        %s631 = sld [smem:[#allocation9 + $0x185]]
        %s632 = sld [smem:[#allocation9 + $0x186]]
        %s633 = sld [smem:[#allocation9 + $0x187]]
        %s634 = sld [smem:[#allocation9 + $0x188]]
        %s635 = sld [smem:[#allocation9 + $0x189]]
        %s636 = sld [smem:[#allocation9 + $0x18a]]
        %s637 = sld [smem:[#allocation9 + $0x18b]]
        %s638 = sld [smem:[#allocation9 + $0x18c]]
        %s639 = sld [smem:[#allocation9 + $0x18d]]
        %s640 = sld [smem:[#allocation9 + $0x18e]]
        %s641 = sld [smem:[#allocation9 + $0x18f]]
        %s642 = sld [smem:[#allocation9 + $0x200]]
        %s643 = sld [smem:[#allocation9 + $0x201]]
        %s644 = sld [smem:[#allocation9 + $0x202]]
        %s645 = sld [smem:[#allocation9 + $0x203]]
        %s646 = sld [smem:[#allocation9 + $0x204]]
        %s647 = sld [smem:[#allocation9 + $0x205]]
        %s648 = sld [smem:[#allocation9 + $0x206]]
        %s649 = sld [smem:[#allocation9 + $0x207]]
        %s650 = sld [smem:[#allocation9 + $0x208]]
        %s651 = sld [smem:[#allocation9 + $0x209]]
        %s652 = sld [smem:[#allocation9 + $0x20a]]
        %s653 = sld [smem:[#allocation9 + $0x20b]]
        %s654 = sld [smem:[#allocation9 + $0x20c]]
        %s655 = sld [smem:[#allocation9 + $0x20d]]
        %s656 = sld [smem:[#allocation9 + $0x20e]]
        %s657 = sld [smem:[#allocation9 + $0x20f]]
        %s658 = sld [smem:[#allocation9 + $0x280]]
        %s659 = sld [smem:[#allocation9 + $0x281]]
        %s660 = sld [smem:[#allocation9 + $0x282]]
        %s661 = sld [smem:[#allocation9 + $0x283]]
        %s662 = sld [smem:[#allocation9 + $0x284]]
        %s663 = sld [smem:[#allocation9 + $0x285]]
        %s664 = sld [smem:[#allocation9 + $0x286]]
        %s665 = sld [smem:[#allocation9 + $0x287]]
        %s666 = sld [smem:[#allocation9 + $0x288]]
        %s667 = sld [smem:[#allocation9 + $0x289]]
        %s668 = sld [smem:[#allocation9 + $0x28a]]
        %s669 = sld [smem:[#allocation9 + $0x28b]]
        %s670 = sld [smem:[#allocation9 + $0x28c]]
        %s671 = sld [smem:[#allocation9 + $0x28d]]
        %s672 = sld [smem:[#allocation9 + $0x28e]]
        %s673 = sld [smem:[#allocation9 + $0x28f]]
        %s674 = sld [smem:[#allocation9 + $0x300]]
        %s675 = sld [smem:[#allocation9 + $0x301]]
        %s676 = sld [smem:[#allocation9 + $0x302]]
        %s677 = sld [smem:[#allocation9 + $0x303]]
        %s678 = sld [smem:[#allocation9 + $0x304]]
        %s679 = sld [smem:[#allocation9 + $0x305]]
        %s680 = sld [smem:[#allocation9 + $0x306]]
        %s681 = sld [smem:[#allocation9 + $0x307]]
        %s682 = sld [smem:[#allocation9 + $0x308]]
        %s683 = sld [smem:[#allocation9 + $0x309]]
        %s684 = sld [smem:[#allocation9 + $0x30a]]
        %s685 = sld [smem:[#allocation9 + $0x30b]]
        %s686 = sld [smem:[#allocation9 + $0x30c]]
        %s687 = sld [smem:[#allocation9 + $0x30d]]
        %s688 = sld [smem:[#allocation9 + $0x30e]]
        %s689 = sld [smem:[#allocation9 + $0x30f]]
        %s690 = sld [smem:[#allocation9 + $0x380]]
        %s691 = sld [smem:[#allocation9 + $0x381]]
        %s692 = sld [smem:[#allocation9 + $0x382]]
        %s693 = sld [smem:[#allocation9 + $0x383]]
        %s694 = sld [smem:[#allocation9 + $0x384]]
        %s695 = sld [smem:[#allocation9 + $0x385]]
        %s696 = sld [smem:[#allocation9 + $0x386]]
        %s697 = sld [smem:[#allocation9 + $0x387]]
        %s698 = sld [smem:[#allocation9 + $0x388]]
        %s699 = sld [smem:[#allocation9 + $0x389]]
        %s700 = sld [smem:[#allocation9 + $0x38a]]
        %s701 = sld [smem:[#allocation9 + $0x38b]]
        %s702 = sld [smem:[#allocation9 + $0x38c]]
        %s703 = sld [smem:[#allocation9 + $0x38d]]
        %s704 = sld [smem:[#allocation9 + $0x38e]]
        %s705 = sld [smem:[#allocation9 + $0x38f]]
        %s706 = sld [smem:[#allocation10]]
        %s707 = sld [smem:[#allocation10 + $0x1]]
        %s708 = sld [smem:[#allocation10 + $0x2]]
        %s709 = sld [smem:[#allocation10 + $0x3]]
        %s710 = sld [smem:[#allocation10 + $0x4]]
        %s711 = sld [smem:[#allocation10 + $0x5]]
        %s712 = sld [smem:[#allocation10 + $0x6]]
        %s713 = sld [smem:[#allocation10 + $0x7]]
        %s714 = sld [smem:[#allocation12]]
        %s715 = sld [smem:[#allocation12 + $0x1]]
        %s716 = sld [smem:[#allocation12 + $0x2]]
        %s717 = sld [smem:[#allocation12 + $0x3]]
        %s718 = sld [smem:[#allocation12 + $0x80]]
        %s719 = sld [smem:[#allocation12 + $0x81]]
        %s720 = sld [smem:[#allocation12 + $0x82]]
        %s721 = sld [smem:[#allocation12 + $0x83]]
        %s722 = sld [smem:[#allocation12 + $0x100]]
        %s723 = sld [smem:[#allocation12 + $0x101]]
        %s724 = sld [smem:[#allocation12 + $0x102]]
        %s725 = sld [smem:[#allocation12 + $0x103]]
        %s726 = sld [smem:[#allocation12 + $0x180]]
        %s727 = sld [smem:[#allocation12 + $0x181]]
        %s728 = sld [smem:[#allocation12 + $0x182]]
        %s729 = sld [smem:[#allocation12 + $0x183]]
        %s730 = sld [smem:[#allocation12 + $0x200]]
        %s731 = sld [smem:[#allocation12 + $0x201]]
        %s732 = sld [smem:[#allocation12 + $0x202]]
        %s733 = sld [smem:[#allocation12 + $0x203]]
        %s734 = sld [smem:[#allocation12 + $0x280]]
        %s735 = sld [smem:[#allocation12 + $0x281]]
        %s736 = sld [smem:[#allocation12 + $0x282]]
        %s737 = sld [smem:[#allocation12 + $0x283]]
        %s738 = sld [smem:[#allocation12 + $0x300]]
        %s739 = sld [smem:[#allocation12 + $0x301]]
        %s740 = sld [smem:[#allocation12 + $0x302]]
        %s741 = sld [smem:[#allocation12 + $0x303]]
        %s742 = sld [smem:[#allocation12 + $0x380]]
        %s743 = sld [smem:[#allocation12 + $0x381]]
        %s744 = sld [smem:[#allocation12 + $0x382]]
        %s745 = sld [smem:[#allocation12 + $0x383]]
        %v746 = vld [vmem:[%s469] sm:$0xff]
        %v747 = vstv %s487
        %v748 = vmul.f32 %v746, %v747
        %v749 = vstv %s494
        %v750 = vadd.f32 %v748, %v749
        %s751 = scalar_lea.vmem %s469, 8
        %v752 = vld [vmem:[%s751] sm:$0xff]
        %v753 = vstv %s489
        %v754 = vmul.f32 %v752, %v753
        %v755 = vstv %s495
        %v756 = vadd.f32 %v754, %v755
        %s757 = scalar_lea.vmem %s469, 16
        %v758 = vld [vmem:[%s757] sm:$0xff]
        %v759 = vstv %s491
        %v760 = vmul.f32 %v758, %v759
        %v761 = vstv %s496
        %v762 = vadd.f32 %v760, %v761
        %s763 = scalar_lea.vmem %s469, 24
        %v764 = vld [vmem:[%s763] sm:$0xff]
        %v765 = vstv %s493
        %v766 = vmul.f32 %v764, %v765
        %v767 = vstv %s497
        %v768 = vadd.f32 %v766, %v767
        %v769 = vstv %s498
        %v770 = vmul.f32 %v750, %v769
        %v771 = vstv %s499
        %v772 = vmul.f32 %v756, %v771
        %v773 = vadd.f32 %v770, %v772
        %v774 = vstv %s500
        %v775 = vmul.f32 %v762, %v774
        %v776 = vadd.f32 %v773, %v775
        %v777 = vstv %s501
        %v778 = vmul.f32 %v768, %v777
        %v779 = vadd.f32 %v776, %v778
        %v780 = vstv %s562
        %v781 = vadd.f32 %v779, %v780
        %v782 = vmul.f32 %v781, 0.5
        %v783 = vmul.f32 %v781, 0.044715
        %v784 = vmul.f32 %v783, %v781
        %v785 = vmul.f32 %v784, %v781
        %v786 = vadd.f32 %v781, %v785
        %v787 = vmul.f32 %v786, 0.7978846
        %v788 = vtanh.pop %v787
        %v789 = vadd.f32 %v788, 1.0
        %v790 = vmul.f32 %v782, %v789
        %v791 = vstv %s578
        %v792 = vmul.f32 %v790, %v791
        %v793 = vadd.f32 %v792, 0.0
        %v794 = vstv %s594
        %v795 = vmul.f32 %v790, %v794
        %v796 = vadd.f32 %v795, 0.0
        %v797 = vstv %s610
        %v798 = vmul.f32 %v790, %v797
        %v799 = vadd.f32 %v798, 0.0
        %v800 = vstv %s626
        %v801 = vmul.f32 %v790, %v800
        %v802 = vadd.f32 %v801, 0.0
        %v803 = vstv %s642
        %v804 = vmul.f32 %v790, %v803
        %v805 = vadd.f32 %v804, 0.0
        %v806 = vstv %s658
        %v807 = vmul.f32 %v790, %v806
        %v808 = vadd.f32 %v807, 0.0
        %v809 = vstv %s674
        %v810 = vmul.f32 %v790, %v809
        %v811 = vadd.f32 %v810, 0.0
        %v812 = vstv %s690
        %v813 = vmul.f32 %v790, %v812
        %v814 = vadd.f32 %v813, 0.0
        %v815 = vstv %s502
        %v816 = vmul.f32 %v750, %v815
        %v817 = vstv %s503
        %v818 = vmul.f32 %v756, %v817
        %v819 = vadd.f32 %v816, %v818
        %v820 = vstv %s504
        %v821 = vmul.f32 %v762, %v820
        %v822 = vadd.f32 %v819, %v821
        %v823 = vstv %s505
        %v824 = vmul.f32 %v768, %v823
        %v825 = vadd.f32 %v822, %v824
        %v826 = vstv %s563
        %v827 = vadd.f32 %v825, %v826
        %v828 = vmul.f32 %v827, 0.5
        %v829 = vmul.f32 %v827, 0.044715
        %v830 = vmul.f32 %v829, %v827
        %v831 = vmul.f32 %v830, %v827
        %v832 = vadd.f32 %v827, %v831
        %v833 = vmul.f32 %v832, 0.7978846
        %v834 = vtanh.pop %v833
        %v835 = vadd.f32 %v834, 1.0
        %v836 = vmul.f32 %v828, %v835
        %v837 = vstv %s579
        %v838 = vmul.f32 %v836, %v837
        %v839 = vadd.f32 %v793, %v838
        %v840 = vstv %s595
        %v841 = vmul.f32 %v836, %v840
        %v842 = vadd.f32 %v796, %v841
        %v843 = vstv %s611
        %v844 = vmul.f32 %v836, %v843
        %v845 = vadd.f32 %v799, %v844
        %v846 = vstv %s627
        %v847 = vmul.f32 %v836, %v846
        %v848 = vadd.f32 %v802, %v847
        %v849 = vstv %s643
        %v850 = vmul.f32 %v836, %v849
        %v851 = vadd.f32 %v805, %v850
        %v852 = vstv %s659
        %v853 = vmul.f32 %v836, %v852
        %v854 = vadd.f32 %v808, %v853
        %v855 = vstv %s675
        %v856 = vmul.f32 %v836, %v855
        %v857 = vadd.f32 %v811, %v856
        %v858 = vstv %s691
        %v859 = vmul.f32 %v836, %v858
        %v860 = vadd.f32 %v814, %v859
        %v861 = vstv %s506
        %v862 = vmul.f32 %v750, %v861
        %v863 = vstv %s507
        %v864 = vmul.f32 %v756, %v863
        %v865 = vadd.f32 %v862, %v864
        %v866 = vstv %s508
        %v867 = vmul.f32 %v762, %v866
        %v868 = vadd.f32 %v865, %v867
        %v869 = vstv %s509
        %v870 = vmul.f32 %v768, %v869
        %v871 = vadd.f32 %v868, %v870
        %v872 = vstv %s564
        %v873 = vadd.f32 %v871, %v872
        %v874 = vmul.f32 %v873, 0.5
        %v875 = vmul.f32 %v873, 0.044715
        %v876 = vmul.f32 %v875, %v873
        %v877 = vmul.f32 %v876, %v873
        %v878 = vadd.f32 %v873, %v877
        %v879 = vmul.f32 %v878, 0.7978846
        %v880 = vtanh.pop %v879
        %v881 = vadd.f32 %v880, 1.0
        %v882 = vmul.f32 %v874, %v881
        %v883 = vstv %s580
        %v884 = vmul.f32 %v882, %v883
        %v885 = vadd.f32 %v839, %v884
        %v886 = vstv %s596
        %v887 = vmul.f32 %v882, %v886
        %v888 = vadd.f32 %v842, %v887
        %v889 = vstv %s612
        %v890 = vmul.f32 %v882, %v889
        %v891 = vadd.f32 %v845, %v890
        %v892 = vstv %s628
        %v893 = vmul.f32 %v882, %v892
        %v894 = vadd.f32 %v848, %v893
        %v895 = vstv %s644
        %v896 = vmul.f32 %v882, %v895
        %v897 = vadd.f32 %v851, %v896
        %v898 = vstv %s660
        %v899 = vmul.f32 %v882, %v898
        %v900 = vadd.f32 %v854, %v899
        %v901 = vstv %s676
        %v902 = vmul.f32 %v882, %v901
        %v903 = vadd.f32 %v857, %v902
        %v904 = vstv %s692
        %v905 = vmul.f32 %v882, %v904
        %v906 = vadd.f32 %v860, %v905
        %v907 = vstv %s510
        %v908 = vmul.f32 %v750, %v907
        %v909 = vstv %s511
        %v910 = vmul.f32 %v756, %v909
        %v911 = vadd.f32 %v908, %v910
        %v912 = vstv %s512
        %v913 = vmul.f32 %v762, %v912
        %v914 = vadd.f32 %v911, %v913
        %v915 = vstv %s513
        %v916 = vmul.f32 %v768, %v915
        %v917 = vadd.f32 %v914, %v916
        %v918 = vstv %s565
        %v919 = vadd.f32 %v917, %v918
        %v920 = vmul.f32 %v919, 0.5
        %v921 = vmul.f32 %v919, 0.044715
        %v922 = vmul.f32 %v921, %v919
        %v923 = vmul.f32 %v922, %v919
        %v924 = vadd.f32 %v919, %v923
        %v925 = vmul.f32 %v924, 0.7978846
        %v926 = vtanh.pop %v925
        %v927 = vadd.f32 %v926, 1.0
        %v928 = vmul.f32 %v920, %v927
        %v929 = vstv %s581
        %v930 = vmul.f32 %v928, %v929
        %v931 = vadd.f32 %v885, %v930
        %v932 = vstv %s597
        %v933 = vmul.f32 %v928, %v932
        %v934 = vadd.f32 %v888, %v933
        %v935 = vstv %s613
        %v936 = vmul.f32 %v928, %v935
        %v937 = vadd.f32 %v891, %v936
        %v938 = vstv %s629
        %v939 = vmul.f32 %v928, %v938
        %v940 = vadd.f32 %v894, %v939
        %v941 = vstv %s645
        %v942 = vmul.f32 %v928, %v941
        %v943 = vadd.f32 %v897, %v942
        %v944 = vstv %s661
        %v945 = vmul.f32 %v928, %v944
        %v946 = vadd.f32 %v900, %v945
        %v947 = vstv %s677
        %v948 = vmul.f32 %v928, %v947
        %v949 = vadd.f32 %v903, %v948
        %v950 = vstv %s693
        %v951 = vmul.f32 %v928, %v950
        %v952 = vadd.f32 %v906, %v951
        %v953 = vstv %s514
        %v954 = vmul.f32 %v750, %v953
        %v955 = vstv %s515
        %v956 = vmul.f32 %v756, %v955
        %v957 = vadd.f32 %v954, %v956
        %v958 = vstv %s516
        %v959 = vmul.f32 %v762, %v958
        %v960 = vadd.f32 %v957, %v959
        %v961 = vstv %s517
        %v962 = vmul.f32 %v768, %v961
        %v963 = vadd.f32 %v960, %v962
        %v964 = vstv %s566
        %v965 = vadd.f32 %v963, %v964
        %v966 = vmul.f32 %v965, 0.5
        %v967 = vmul.f32 %v965, 0.044715
        %v968 = vmul.f32 %v967, %v965
        %v969 = vmul.f32 %v968, %v965
        %v970 = vadd.f32 %v965, %v969
        %v971 = vmul.f32 %v970, 0.7978846
        %v972 = vtanh.pop %v971
        %v973 = vadd.f32 %v972, 1.0
        %v974 = vmul.f32 %v966, %v973
        %v975 = vstv %s582
        %v976 = vmul.f32 %v974, %v975
        %v977 = vadd.f32 %v931, %v976
        %v978 = vstv %s598
        %v979 = vmul.f32 %v974, %v978
        %v980 = vadd.f32 %v934, %v979
        %v981 = vstv %s614
        %v982 = vmul.f32 %v974, %v981
        %v983 = vadd.f32 %v937, %v982
        %v984 = vstv %s630
        %v985 = vmul.f32 %v974, %v984
        %v986 = vadd.f32 %v940, %v985
        %v987 = vstv %s646
        %v988 = vmul.f32 %v974, %v987
        %v989 = vadd.f32 %v943, %v988
        %v990 = vstv %s662
        %v991 = vmul.f32 %v974, %v990
        %v992 = vadd.f32 %v946, %v991
        %v993 = vstv %s678
        %v994 = vmul.f32 %v974, %v993
        %v995 = vadd.f32 %v949, %v994
        %v996 = vstv %s694
        %v997 = vmul.f32 %v974, %v996
        %v998 = vadd.f32 %v952, %v997
        %v999 = vstv %s518
        %v1000 = vmul.f32 %v750, %v999
        %v1001 = vstv %s519
        %v1002 = vmul.f32 %v756, %v1001
        %v1003 = vadd.f32 %v1000, %v1002
        %v1004 = vstv %s520
        %v1005 = vmul.f32 %v762, %v1004
        %v1006 = vadd.f32 %v1003, %v1005
        %v1007 = vstv %s521
        %v1008 = vmul.f32 %v768, %v1007
        %v1009 = vadd.f32 %v1006, %v1008
        %v1010 = vstv %s567
        %v1011 = vadd.f32 %v1009, %v1010
        %v1012 = vmul.f32 %v1011, 0.5
        %v1013 = vmul.f32 %v1011, 0.044715
        %v1014 = vmul.f32 %v1013, %v1011
        %v1015 = vmul.f32 %v1014, %v1011
        %v1016 = vadd.f32 %v1011, %v1015
        %v1017 = vmul.f32 %v1016, 0.7978846
        %v1018 = vtanh.pop %v1017
        %v1019 = vadd.f32 %v1018, 1.0
        %v1020 = vmul.f32 %v1012, %v1019
        %v1021 = vstv %s583
        %v1022 = vmul.f32 %v1020, %v1021
        %v1023 = vadd.f32 %v977, %v1022
        %v1024 = vstv %s599
        %v1025 = vmul.f32 %v1020, %v1024
        %v1026 = vadd.f32 %v980, %v1025
        %v1027 = vstv %s615
        %v1028 = vmul.f32 %v1020, %v1027
        %v1029 = vadd.f32 %v983, %v1028
        %v1030 = vstv %s631
        %v1031 = vmul.f32 %v1020, %v1030
        %v1032 = vadd.f32 %v986, %v1031
        %v1033 = vstv %s647
        %v1034 = vmul.f32 %v1020, %v1033
        %v1035 = vadd.f32 %v989, %v1034
        %v1036 = vstv %s663
        %v1037 = vmul.f32 %v1020, %v1036
        %v1038 = vadd.f32 %v992, %v1037
        %v1039 = vstv %s679
        %v1040 = vmul.f32 %v1020, %v1039
        %v1041 = vadd.f32 %v995, %v1040
        %v1042 = vstv %s695
        %v1043 = vmul.f32 %v1020, %v1042
        %v1044 = vadd.f32 %v998, %v1043
        %v1045 = vstv %s522
        %v1046 = vmul.f32 %v750, %v1045
        %v1047 = vstv %s523
        %v1048 = vmul.f32 %v756, %v1047
        %v1049 = vadd.f32 %v1046, %v1048
        %v1050 = vstv %s524
        %v1051 = vmul.f32 %v762, %v1050
        %v1052 = vadd.f32 %v1049, %v1051
        %v1053 = vstv %s525
        %v1054 = vmul.f32 %v768, %v1053
        %v1055 = vadd.f32 %v1052, %v1054
        %v1056 = vstv %s568
        %v1057 = vadd.f32 %v1055, %v1056
        %v1058 = vmul.f32 %v1057, 0.5
        %v1059 = vmul.f32 %v1057, 0.044715
        %v1060 = vmul.f32 %v1059, %v1057
        %v1061 = vmul.f32 %v1060, %v1057
        %v1062 = vadd.f32 %v1057, %v1061
        %v1063 = vmul.f32 %v1062, 0.7978846
        %v1064 = vtanh.pop %v1063
        %v1065 = vadd.f32 %v1064, 1.0
        %v1066 = vmul.f32 %v1058, %v1065
        %v1067 = vstv %s584
        %v1068 = vmul.f32 %v1066, %v1067
        %v1069 = vadd.f32 %v1023, %v1068
        %v1070 = vstv %s600
        %v1071 = vmul.f32 %v1066, %v1070
        %v1072 = vadd.f32 %v1026, %v1071
        %v1073 = vstv %s616
        %v1074 = vmul.f32 %v1066, %v1073
        %v1075 = vadd.f32 %v1029, %v1074
        %v1076 = vstv %s632
        %v1077 = vmul.f32 %v1066, %v1076
        %v1078 = vadd.f32 %v1032, %v1077
        %v1079 = vstv %s648
        %v1080 = vmul.f32 %v1066, %v1079
        %v1081 = vadd.f32 %v1035, %v1080
        %v1082 = vstv %s664
        %v1083 = vmul.f32 %v1066, %v1082
        %v1084 = vadd.f32 %v1038, %v1083
        %v1085 = vstv %s680
        %v1086 = vmul.f32 %v1066, %v1085
        %v1087 = vadd.f32 %v1041, %v1086
        %v1088 = vstv %s696
        %v1089 = vmul.f32 %v1066, %v1088
        %v1090 = vadd.f32 %v1044, %v1089
        %v1091 = vstv %s526
        %v1092 = vmul.f32 %v750, %v1091
        %v1093 = vstv %s527
        %v1094 = vmul.f32 %v756, %v1093
        %v1095 = vadd.f32 %v1092, %v1094
        %v1096 = vstv %s528
        %v1097 = vmul.f32 %v762, %v1096
        %v1098 = vadd.f32 %v1095, %v1097
        %v1099 = vstv %s529
        %v1100 = vmul.f32 %v768, %v1099
        %v1101 = vadd.f32 %v1098, %v1100
        %v1102 = vstv %s569
        %v1103 = vadd.f32 %v1101, %v1102
        %v1104 = vmul.f32 %v1103, 0.5
        %v1105 = vmul.f32 %v1103, 0.044715
        %v1106 = vmul.f32 %v1105, %v1103
        %v1107 = vmul.f32 %v1106, %v1103
        %v1108 = vadd.f32 %v1103, %v1107
        %v1109 = vmul.f32 %v1108, 0.7978846
        %v1110 = vtanh.pop %v1109
        %v1111 = vadd.f32 %v1110, 1.0
        %v1112 = vmul.f32 %v1104, %v1111
        %v1113 = vstv %s585
        %v1114 = vmul.f32 %v1112, %v1113
        %v1115 = vadd.f32 %v1069, %v1114
        %v1116 = vstv %s601
        %v1117 = vmul.f32 %v1112, %v1116
        %v1118 = vadd.f32 %v1072, %v1117
        %v1119 = vstv %s617
        %v1120 = vmul.f32 %v1112, %v1119
        %v1121 = vadd.f32 %v1075, %v1120
        %v1122 = vstv %s633
        %v1123 = vmul.f32 %v1112, %v1122
        %v1124 = vadd.f32 %v1078, %v1123
        %v1125 = vstv %s649
        %v1126 = vmul.f32 %v1112, %v1125
        %v1127 = vadd.f32 %v1081, %v1126
        %v1128 = vstv %s665
        %v1129 = vmul.f32 %v1112, %v1128
        %v1130 = vadd.f32 %v1084, %v1129
        %v1131 = vstv %s681
        %v1132 = vmul.f32 %v1112, %v1131
        %v1133 = vadd.f32 %v1087, %v1132
        %v1134 = vstv %s697
        %v1135 = vmul.f32 %v1112, %v1134
        %v1136 = vadd.f32 %v1090, %v1135
        %v1137 = vstv %s530
        %v1138 = vmul.f32 %v750, %v1137
        %v1139 = vstv %s531
        %v1140 = vmul.f32 %v756, %v1139
        %v1141 = vadd.f32 %v1138, %v1140
        %v1142 = vstv %s532
        %v1143 = vmul.f32 %v762, %v1142
        %v1144 = vadd.f32 %v1141, %v1143
        %v1145 = vstv %s533
        %v1146 = vmul.f32 %v768, %v1145
        %v1147 = vadd.f32 %v1144, %v1146
        %v1148 = vstv %s570
        %v1149 = vadd.f32 %v1147, %v1148
        %v1150 = vmul.f32 %v1149, 0.5
        %v1151 = vmul.f32 %v1149, 0.044715
        %v1152 = vmul.f32 %v1151, %v1149
        %v1153 = vmul.f32 %v1152, %v1149
        %v1154 = vadd.f32 %v1149, %v1153
        %v1155 = vmul.f32 %v1154, 0.7978846
        %v1156 = vtanh.pop %v1155
        %v1157 = vadd.f32 %v1156, 1.0
        %v1158 = vmul.f32 %v1150, %v1157
        %v1159 = vstv %s586
        %v1160 = vmul.f32 %v1158, %v1159
        %v1161 = vadd.f32 %v1115, %v1160
        %v1162 = vstv %s602
        %v1163 = vmul.f32 %v1158, %v1162
        %v1164 = vadd.f32 %v1118, %v1163
        %v1165 = vstv %s618
        %v1166 = vmul.f32 %v1158, %v1165
        %v1167 = vadd.f32 %v1121, %v1166
        %v1168 = vstv %s634
        %v1169 = vmul.f32 %v1158, %v1168
        %v1170 = vadd.f32 %v1124, %v1169
        %v1171 = vstv %s650
        %v1172 = vmul.f32 %v1158, %v1171
        %v1173 = vadd.f32 %v1127, %v1172
        %v1174 = vstv %s666
        %v1175 = vmul.f32 %v1158, %v1174
        %v1176 = vadd.f32 %v1130, %v1175
        %v1177 = vstv %s682
        %v1178 = vmul.f32 %v1158, %v1177
        %v1179 = vadd.f32 %v1133, %v1178
        %v1180 = vstv %s698
        %v1181 = vmul.f32 %v1158, %v1180
        %v1182 = vadd.f32 %v1136, %v1181
        %v1183 = vstv %s534
        %v1184 = vmul.f32 %v750, %v1183
        %v1185 = vstv %s535
        %v1186 = vmul.f32 %v756, %v1185
        %v1187 = vadd.f32 %v1184, %v1186
        %v1188 = vstv %s536
        %v1189 = vmul.f32 %v762, %v1188
        %v1190 = vadd.f32 %v1187, %v1189
        %v1191 = vstv %s537
        %v1192 = vmul.f32 %v768, %v1191
        %v1193 = vadd.f32 %v1190, %v1192
        %v1194 = vstv %s571
        %v1195 = vadd.f32 %v1193, %v1194
        %v1196 = vmul.f32 %v1195, 0.5
        %v1197 = vmul.f32 %v1195, 0.044715
        %v1198 = vmul.f32 %v1197, %v1195
        %v1199 = vmul.f32 %v1198, %v1195
        %v1200 = vadd.f32 %v1195, %v1199
        %v1201 = vmul.f32 %v1200, 0.7978846
        %v1202 = vtanh.pop %v1201
        %v1203 = vadd.f32 %v1202, 1.0
        %v1204 = vmul.f32 %v1196, %v1203
        %v1205 = vstv %s587
        %v1206 = vmul.f32 %v1204, %v1205
        %v1207 = vadd.f32 %v1161, %v1206
        %v1208 = vstv %s603
        %v1209 = vmul.f32 %v1204, %v1208
        %v1210 = vadd.f32 %v1164, %v1209
        %v1211 = vstv %s619
        %v1212 = vmul.f32 %v1204, %v1211
        %v1213 = vadd.f32 %v1167, %v1212
        %v1214 = vstv %s635
        %v1215 = vmul.f32 %v1204, %v1214
        %v1216 = vadd.f32 %v1170, %v1215
        %v1217 = vstv %s651
        %v1218 = vmul.f32 %v1204, %v1217
        %v1219 = vadd.f32 %v1173, %v1218
        %v1220 = vstv %s667
        %v1221 = vmul.f32 %v1204, %v1220
        %v1222 = vadd.f32 %v1176, %v1221
        %v1223 = vstv %s683
        %v1224 = vmul.f32 %v1204, %v1223
        %v1225 = vadd.f32 %v1179, %v1224
        %v1226 = vstv %s699
        %v1227 = vmul.f32 %v1204, %v1226
        %v1228 = vadd.f32 %v1182, %v1227
        %v1229 = vstv %s538
        %v1230 = vmul.f32 %v750, %v1229
        %v1231 = vstv %s539
        %v1232 = vmul.f32 %v756, %v1231
        %v1233 = vadd.f32 %v1230, %v1232
        %v1234 = vstv %s540
        %v1235 = vmul.f32 %v762, %v1234
        %v1236 = vadd.f32 %v1233, %v1235
        %v1237 = vstv %s541
        %v1238 = vmul.f32 %v768, %v1237
        %v1239 = vadd.f32 %v1236, %v1238
        %v1240 = vstv %s572
        %v1241 = vadd.f32 %v1239, %v1240
        %v1242 = vmul.f32 %v1241, 0.5
        %v1243 = vmul.f32 %v1241, 0.044715
        %v1244 = vmul.f32 %v1243, %v1241
        %v1245 = vmul.f32 %v1244, %v1241
        %v1246 = vadd.f32 %v1241, %v1245
        %v1247 = vmul.f32 %v1246, 0.7978846
        %v1248 = vtanh.pop %v1247
        %v1249 = vadd.f32 %v1248, 1.0
        %v1250 = vmul.f32 %v1242, %v1249
        %v1251 = vstv %s588
        %v1252 = vmul.f32 %v1250, %v1251
        %v1253 = vadd.f32 %v1207, %v1252
        %v1254 = vstv %s604
        %v1255 = vmul.f32 %v1250, %v1254
        %v1256 = vadd.f32 %v1210, %v1255
        %v1257 = vstv %s620
        %v1258 = vmul.f32 %v1250, %v1257
        %v1259 = vadd.f32 %v1213, %v1258
        %v1260 = vstv %s636
        %v1261 = vmul.f32 %v1250, %v1260
        %v1262 = vadd.f32 %v1216, %v1261
        %v1263 = vstv %s652
        %v1264 = vmul.f32 %v1250, %v1263
        %v1265 = vadd.f32 %v1219, %v1264
        %v1266 = vstv %s668
        %v1267 = vmul.f32 %v1250, %v1266
        %v1268 = vadd.f32 %v1222, %v1267
        %v1269 = vstv %s684
        %v1270 = vmul.f32 %v1250, %v1269
        %v1271 = vadd.f32 %v1225, %v1270
        %v1272 = vstv %s700
        %v1273 = vmul.f32 %v1250, %v1272
        %v1274 = vadd.f32 %v1228, %v1273
        %v1275 = vstv %s542
        %v1276 = vmul.f32 %v750, %v1275
        %v1277 = vstv %s543
        %v1278 = vmul.f32 %v756, %v1277
        %v1279 = vadd.f32 %v1276, %v1278
        %v1280 = vstv %s544
        %v1281 = vmul.f32 %v762, %v1280
        %v1282 = vadd.f32 %v1279, %v1281
        %v1283 = vstv %s545
        %v1284 = vmul.f32 %v768, %v1283
        %v1285 = vadd.f32 %v1282, %v1284
        %v1286 = vstv %s573
        %v1287 = vadd.f32 %v1285, %v1286
        %v1288 = vmul.f32 %v1287, 0.5
        %v1289 = vmul.f32 %v1287, 0.044715
        %v1290 = vmul.f32 %v1289, %v1287
        %v1291 = vmul.f32 %v1290, %v1287
        %v1292 = vadd.f32 %v1287, %v1291
        %v1293 = vmul.f32 %v1292, 0.7978846
        %v1294 = vtanh.pop %v1293
        %v1295 = vadd.f32 %v1294, 1.0
        %v1296 = vmul.f32 %v1288, %v1295
        %v1297 = vstv %s589
        %v1298 = vmul.f32 %v1296, %v1297
        %v1299 = vadd.f32 %v1253, %v1298
        %v1300 = vstv %s605
        %v1301 = vmul.f32 %v1296, %v1300
        %v1302 = vadd.f32 %v1256, %v1301
        %v1303 = vstv %s621
        %v1304 = vmul.f32 %v1296, %v1303
        %v1305 = vadd.f32 %v1259, %v1304
        %v1306 = vstv %s637
        %v1307 = vmul.f32 %v1296, %v1306
        %v1308 = vadd.f32 %v1262, %v1307
        %v1309 = vstv %s653
        %v1310 = vmul.f32 %v1296, %v1309
        %v1311 = vadd.f32 %v1265, %v1310
        %v1312 = vstv %s669
        %v1313 = vmul.f32 %v1296, %v1312
        %v1314 = vadd.f32 %v1268, %v1313
        %v1315 = vstv %s685
        %v1316 = vmul.f32 %v1296, %v1315
        %v1317 = vadd.f32 %v1271, %v1316
        %v1318 = vstv %s701
        %v1319 = vmul.f32 %v1296, %v1318
        %v1320 = vadd.f32 %v1274, %v1319
        %v1321 = vstv %s546
        %v1322 = vmul.f32 %v750, %v1321
        %v1323 = vstv %s547
        %v1324 = vmul.f32 %v756, %v1323
        %v1325 = vadd.f32 %v1322, %v1324
        %v1326 = vstv %s548
        %v1327 = vmul.f32 %v762, %v1326
        %v1328 = vadd.f32 %v1325, %v1327
        %v1329 = vstv %s549
        %v1330 = vmul.f32 %v768, %v1329
        %v1331 = vadd.f32 %v1328, %v1330
        %v1332 = vstv %s574
        %v1333 = vadd.f32 %v1331, %v1332
        %v1334 = vmul.f32 %v1333, 0.5
        %v1335 = vmul.f32 %v1333, 0.044715
        %v1336 = vmul.f32 %v1335, %v1333
        %v1337 = vmul.f32 %v1336, %v1333
        %v1338 = vadd.f32 %v1333, %v1337
        %v1339 = vmul.f32 %v1338, 0.7978846
        %v1340 = vtanh.pop %v1339
        %v1341 = vadd.f32 %v1340, 1.0
        %v1342 = vmul.f32 %v1334, %v1341
        %v1343 = vstv %s590
        %v1344 = vmul.f32 %v1342, %v1343
        %v1345 = vadd.f32 %v1299, %v1344
        %v1346 = vstv %s606
        %v1347 = vmul.f32 %v1342, %v1346
        %v1348 = vadd.f32 %v1302, %v1347
        %v1349 = vstv %s622
        %v1350 = vmul.f32 %v1342, %v1349
        %v1351 = vadd.f32 %v1305, %v1350
        %v1352 = vstv %s638
        %v1353 = vmul.f32 %v1342, %v1352
        %v1354 = vadd.f32 %v1308, %v1353
        %v1355 = vstv %s654
        %v1356 = vmul.f32 %v1342, %v1355
        %v1357 = vadd.f32 %v1311, %v1356
        %v1358 = vstv %s670
        %v1359 = vmul.f32 %v1342, %v1358
        %v1360 = vadd.f32 %v1314, %v1359
        %v1361 = vstv %s686
        %v1362 = vmul.f32 %v1342, %v1361
        %v1363 = vadd.f32 %v1317, %v1362
        %v1364 = vstv %s702
        %v1365 = vmul.f32 %v1342, %v1364
        %v1366 = vadd.f32 %v1320, %v1365
        %v1367 = vstv %s550
        %v1368 = vmul.f32 %v750, %v1367
        %v1369 = vstv %s551
        %v1370 = vmul.f32 %v756, %v1369
        %v1371 = vadd.f32 %v1368, %v1370
        %v1372 = vstv %s552
        %v1373 = vmul.f32 %v762, %v1372
        %v1374 = vadd.f32 %v1371, %v1373
        %v1375 = vstv %s553
        %v1376 = vmul.f32 %v768, %v1375
        %v1377 = vadd.f32 %v1374, %v1376
        %v1378 = vstv %s575
        %v1379 = vadd.f32 %v1377, %v1378
        %v1380 = vmul.f32 %v1379, 0.5
        %v1381 = vmul.f32 %v1379, 0.044715
        %v1382 = vmul.f32 %v1381, %v1379
        %v1383 = vmul.f32 %v1382, %v1379
        %v1384 = vadd.f32 %v1379, %v1383
        %v1385 = vmul.f32 %v1384, 0.7978846
        %v1386 = vtanh.pop %v1385
        %v1387 = vadd.f32 %v1386, 1.0
        %v1388 = vmul.f32 %v1380, %v1387
        %v1389 = vstv %s591
        %v1390 = vmul.f32 %v1388, %v1389
        %v1391 = vadd.f32 %v1345, %v1390
        %v1392 = vstv %s607
        %v1393 = vmul.f32 %v1388, %v1392
        %v1394 = vadd.f32 %v1348, %v1393
        %v1395 = vstv %s623
        %v1396 = vmul.f32 %v1388, %v1395
        %v1397 = vadd.f32 %v1351, %v1396
        %v1398 = vstv %s639
        %v1399 = vmul.f32 %v1388, %v1398
        %v1400 = vadd.f32 %v1354, %v1399
        %v1401 = vstv %s655
        %v1402 = vmul.f32 %v1388, %v1401
        %v1403 = vadd.f32 %v1357, %v1402
        %v1404 = vstv %s671
        %v1405 = vmul.f32 %v1388, %v1404
        %v1406 = vadd.f32 %v1360, %v1405
        %v1407 = vstv %s687
        %v1408 = vmul.f32 %v1388, %v1407
        %v1409 = vadd.f32 %v1363, %v1408
        %v1410 = vstv %s703
        %v1411 = vmul.f32 %v1388, %v1410
        %v1412 = vadd.f32 %v1366, %v1411
        %v1413 = vstv %s554
        %v1414 = vmul.f32 %v750, %v1413
        %v1415 = vstv %s555
        %v1416 = vmul.f32 %v756, %v1415
        %v1417 = vadd.f32 %v1414, %v1416
        %v1418 = vstv %s556
        %v1419 = vmul.f32 %v762, %v1418
        %v1420 = vadd.f32 %v1417, %v1419
        %v1421 = vstv %s557
        %v1422 = vmul.f32 %v768, %v1421
        %v1423 = vadd.f32 %v1420, %v1422
        %v1424 = vstv %s576
        %v1425 = vadd.f32 %v1423, %v1424
        %v1426 = vmul.f32 %v1425, 0.5
        %v1427 = vmul.f32 %v1425, 0.044715
        %v1428 = vmul.f32 %v1427, %v1425
        %v1429 = vmul.f32 %v1428, %v1425
        %v1430 = vadd.f32 %v1425, %v1429
        %v1431 = vmul.f32 %v1430, 0.7978846
        %v1432 = vtanh.pop %v1431
        %v1433 = vadd.f32 %v1432, 1.0
        %v1434 = vmul.f32 %v1426, %v1433
        %v1435 = vstv %s592
        %v1436 = vmul.f32 %v1434, %v1435
        %v1437 = vadd.f32 %v1391, %v1436
        %v1438 = vstv %s608
        %v1439 = vmul.f32 %v1434, %v1438
        %v1440 = vadd.f32 %v1394, %v1439
        %v1441 = vstv %s624
        %v1442 = vmul.f32 %v1434, %v1441
        %v1443 = vadd.f32 %v1397, %v1442
        %v1444 = vstv %s640
        %v1445 = vmul.f32 %v1434, %v1444
        %v1446 = vadd.f32 %v1400, %v1445
        %v1447 = vstv %s656
        %v1448 = vmul.f32 %v1434, %v1447
        %v1449 = vadd.f32 %v1403, %v1448
        %v1450 = vstv %s672
        %v1451 = vmul.f32 %v1434, %v1450
        %v1452 = vadd.f32 %v1406, %v1451
        %v1453 = vstv %s688
        %v1454 = vmul.f32 %v1434, %v1453
        %v1455 = vadd.f32 %v1409, %v1454
        %v1456 = vstv %s704
        %v1457 = vmul.f32 %v1434, %v1456
        %v1458 = vadd.f32 %v1412, %v1457
        %v1459 = vstv %s558
        %v1460 = vmul.f32 %v750, %v1459
        %v1461 = vstv %s559
        %v1462 = vmul.f32 %v756, %v1461
        %v1463 = vadd.f32 %v1460, %v1462
        %v1464 = vstv %s560
        %v1465 = vmul.f32 %v762, %v1464
        %v1466 = vadd.f32 %v1463, %v1465
        %v1467 = vstv %s561
        %v1468 = vmul.f32 %v768, %v1467
        %v1469 = vadd.f32 %v1466, %v1468
        %v1470 = vstv %s577
        %v1471 = vadd.f32 %v1469, %v1470
        %v1472 = vmul.f32 %v1471, 0.5
        %v1473 = vmul.f32 %v1471, 0.044715
        %v1474 = vmul.f32 %v1473, %v1471
        %v1475 = vmul.f32 %v1474, %v1471
        %v1476 = vadd.f32 %v1471, %v1475
        %v1477 = vmul.f32 %v1476, 0.7978846
        %v1478 = vtanh.pop %v1477
        %v1479 = vadd.f32 %v1478, 1.0
        %v1480 = vmul.f32 %v1472, %v1479
        %v1481 = vstv %s593
        %v1482 = vmul.f32 %v1480, %v1481
        %v1483 = vadd.f32 %v1437, %v1482
        %v1484 = vstv %s609
        %v1485 = vmul.f32 %v1480, %v1484
        %v1486 = vadd.f32 %v1440, %v1485
        %v1487 = vstv %s625
        %v1488 = vmul.f32 %v1480, %v1487
        %v1489 = vadd.f32 %v1443, %v1488
        %v1490 = vstv %s641
        %v1491 = vmul.f32 %v1480, %v1490
        %v1492 = vadd.f32 %v1446, %v1491
        %v1493 = vstv %s657
        %v1494 = vmul.f32 %v1480, %v1493
        %v1495 = vadd.f32 %v1449, %v1494
        %v1496 = vstv %s673
        %v1497 = vmul.f32 %v1480, %v1496
        %v1498 = vadd.f32 %v1452, %v1497
        %v1499 = vstv %s689
        %v1500 = vmul.f32 %v1480, %v1499
        %v1501 = vadd.f32 %v1455, %v1500
        %v1502 = vstv %s705
        %v1503 = vmul.f32 %v1480, %v1502
        %v1504 = vadd.f32 %v1458, %v1503
        %v1505 = vld [vmem:[%s477] sm:$0xff]
        %v1506 = vstv %s714
        %v1507 = vmul.f32 %v1505, %v1506
        %v1508 = vadd.f32 %v1483, %v1507
        %v1509 = vstv %s718
        %v1510 = vmul.f32 %v1505, %v1509
        %v1511 = vadd.f32 %v1486, %v1510
        %v1512 = vstv %s722
        %v1513 = vmul.f32 %v1505, %v1512
        %v1514 = vadd.f32 %v1489, %v1513
        %v1515 = vstv %s726
        %v1516 = vmul.f32 %v1505, %v1515
        %v1517 = vadd.f32 %v1492, %v1516
        %v1518 = vstv %s730
        %v1519 = vmul.f32 %v1505, %v1518
        %v1520 = vadd.f32 %v1495, %v1519
        %v1521 = vstv %s734
        %v1522 = vmul.f32 %v1505, %v1521
        %v1523 = vadd.f32 %v1498, %v1522
        %v1524 = vstv %s738
        %v1525 = vmul.f32 %v1505, %v1524
        %v1526 = vadd.f32 %v1501, %v1525
        %v1527 = vstv %s742
        %v1528 = vmul.f32 %v1505, %v1527
        %v1529 = vadd.f32 %v1504, %v1528
        %s1530 = scalar_lea.vmem %s477, 8
        %v1531 = vld [vmem:[%s1530] sm:$0xff]
        %v1532 = vstv %s715
        %v1533 = vmul.f32 %v1531, %v1532
        %v1534 = vadd.f32 %v1508, %v1533
        %v1535 = vstv %s719
        %v1536 = vmul.f32 %v1531, %v1535
        %v1537 = vadd.f32 %v1511, %v1536
        %v1538 = vstv %s723
        %v1539 = vmul.f32 %v1531, %v1538
        %v1540 = vadd.f32 %v1514, %v1539
        %v1541 = vstv %s727
        %v1542 = vmul.f32 %v1531, %v1541
        %v1543 = vadd.f32 %v1517, %v1542
        %v1544 = vstv %s731
        %v1545 = vmul.f32 %v1531, %v1544
        %v1546 = vadd.f32 %v1520, %v1545
        %v1547 = vstv %s735
        %v1548 = vmul.f32 %v1531, %v1547
        %v1549 = vadd.f32 %v1523, %v1548
        %v1550 = vstv %s739
        %v1551 = vmul.f32 %v1531, %v1550
        %v1552 = vadd.f32 %v1526, %v1551
        %v1553 = vstv %s743
        %v1554 = vmul.f32 %v1531, %v1553
        %v1555 = vadd.f32 %v1529, %v1554
        %s1556 = scalar_lea.vmem %s477, 16
        %v1557 = vld [vmem:[%s1556] sm:$0xff]
        %v1558 = vstv %s716
        %v1559 = vmul.f32 %v1557, %v1558
        %v1560 = vadd.f32 %v1534, %v1559
        %v1561 = vstv %s720
        %v1562 = vmul.f32 %v1557, %v1561
        %v1563 = vadd.f32 %v1537, %v1562
        %v1564 = vstv %s724
        %v1565 = vmul.f32 %v1557, %v1564
        %v1566 = vadd.f32 %v1540, %v1565
        %v1567 = vstv %s728
        %v1568 = vmul.f32 %v1557, %v1567
        %v1569 = vadd.f32 %v1543, %v1568
        %v1570 = vstv %s732
        %v1571 = vmul.f32 %v1557, %v1570
        %v1572 = vadd.f32 %v1546, %v1571
        %v1573 = vstv %s736
        %v1574 = vmul.f32 %v1557, %v1573
        %v1575 = vadd.f32 %v1549, %v1574
        %v1576 = vstv %s740
        %v1577 = vmul.f32 %v1557, %v1576
        %v1578 = vadd.f32 %v1552, %v1577
        %v1579 = vstv %s744
        %v1580 = vmul.f32 %v1557, %v1579
        %v1581 = vadd.f32 %v1555, %v1580
        %s1582 = scalar_lea.vmem %s477, 24
        %v1583 = vld [vmem:[%s1582] sm:$0xff]
        %v1584 = vstv %s717
        %v1585 = vmul.f32 %v1583, %v1584
        %v1586 = vadd.f32 %v1560, %v1585
        %v1587 = vstv %s721
        %v1588 = vmul.f32 %v1583, %v1587
        %v1589 = vadd.f32 %v1563, %v1588
        %v1590 = vstv %s725
        %v1591 = vmul.f32 %v1583, %v1590
        %v1592 = vadd.f32 %v1566, %v1591
        %v1593 = vstv %s729
        %v1594 = vmul.f32 %v1583, %v1593
        %v1595 = vadd.f32 %v1569, %v1594
        %v1596 = vstv %s733
        %v1597 = vmul.f32 %v1583, %v1596
        %v1598 = vadd.f32 %v1572, %v1597
        %v1599 = vstv %s737
        %v1600 = vmul.f32 %v1583, %v1599
        %v1601 = vadd.f32 %v1575, %v1600
        %v1602 = vstv %s741
        %v1603 = vmul.f32 %v1583, %v1602
        %v1604 = vadd.f32 %v1578, %v1603
        %v1605 = vstv %s745
        %v1606 = vmul.f32 %v1583, %v1605
        %v1607 = vadd.f32 %v1581, %v1606
        %v1608 = vstv %s706
        %v1609 = vadd.f32 %v1586, %v1608
        %vm1610 = vcmask 588800
        %1611 = vst.msk [vmem:[%s485] sm:$0xff] %vm1610, %v1609
        %v1612 = vstv %s707
        %v1613 = vadd.f32 %v1589, %v1612
        %s1614 = scalar_lea.vmem %s485, 8
        %1615 = vst.msk [vmem:[%s1614] sm:$0xff] %vm1610, %v1613
        %v1616 = vstv %s708
        %v1617 = vadd.f32 %v1592, %v1616
        %s1618 = scalar_lea.vmem %s485, 16
        %1619 = vst.msk [vmem:[%s1618] sm:$0xff] %vm1610, %v1617
        %v1620 = vstv %s709
        %v1621 = vadd.f32 %v1595, %v1620
        %s1622 = scalar_lea.vmem %s485, 24
        %1623 = vst.msk [vmem:[%s1622] sm:$0xff] %vm1610, %v1621
        %v1624 = vstv %s710
        %v1625 = vadd.f32 %v1598, %v1624
        %s1626 = scalar_lea.vmem %s485, 32
        %1627 = vst.msk [vmem:[%s1626] sm:$0xff] %vm1610, %v1625
        %v1628 = vstv %s711
        %v1629 = vadd.f32 %v1601, %v1628
        %s1630 = scalar_lea.vmem %s485, 40
        %1631 = vst.msk [vmem:[%s1630] sm:$0xff] %vm1610, %v1629
        %v1632 = vstv %s712
        %v1633 = vadd.f32 %v1604, %v1632
        %s1634 = scalar_lea.vmem %s485, 48
        %1635 = vst.msk [vmem:[%s1634] sm:$0xff] %vm1610, %v1633
        %v1636 = vstv %s713
        %v1637 = vadd.f32 %v1607, %v1636
        %s1638 = scalar_lea.vmem %s485, 56
        %1639 = vst.msk [vmem:[%s1638] sm:$0xff] %vm1610, %v1637
        %p1640 = scmp.lt.s32.totalorder %s28, 1
        %s1641 = scalar_select %p1640, %s28, 1
        %p1642 = scmp.lt.s32.totalorder %s29, 0
        %s1643 = scalar_select %p1642, %s29, 0
        %s1644 = smul.addr %s1641, 8
        %s1645 = sadd.s32 %s1643, %s1644
        %s1646 = smul.addr %s1645, 8
        %s1647 = scalar_lea.vmem %s9, %s1646
        // Predicated region
        $region85: #{down_block_forward.3} parent=55 // pred_check
          %p1648 = pneg %p259
        $region86: #{down_block_forward.3} parent=55 // pred_check_branch
          %1650 = sbr.rel (%p1648) target = $region88
        $region87: #{down_block_forward.3} parent=55 // pred_region
          _
        $region88: #{down_block_forward.3} parent=55 // pred_fallthru
          _
      $region56: #{down_block_forward.3} parent=5 // pred_fallthru
        _
      %p1651 = scmp.le.s32.totalorder 2, %s19
      // Predicated region
      $region89: #{down_block_forward.3} parent=5 // pred_check
        %p1652 = pneg %p1651
      $region90: #{down_block_forward.3} parent=5 // pred_check_branch
        %1654 = sbr.rel (%p1652) target = $region92
      $region91: #{down_block_forward.3} parent=5 // pred_region
        %s1655 = ssub.s32 %s19, 2
        // Predicated region
        $region93: #{down_block_forward.3} parent=91 // pred_check
          %p1656 = pneg %p265
        $region94: #{down_block_forward.3} parent=91 // pred_check_branch
          %1658 = sbr.rel (%p1656) target = $region96
        $region95: #{down_block_forward.3} parent=91 // pred_region
          %p1659 = scmp.lt.s32.totalorder %s30, 1
          %s1660 = scalar_select %p1659, %s30, 1
          %p1661 = scmp.lt.s32.totalorder %s31, 0
          %s1662 = scalar_select %p1661, %s31, 0
          %s1663 = smul.addr %s1660, 8
          %s1664 = sadd.s32 %s1662, %s1663
          %s1665 = smul.addr %s1664, 8
          %s1666 = scalar_lea.vmem %s9, %s1665
        $region96: #{down_block_forward.3} parent=91 // pred_fallthru
          _
      $region92: #{down_block_forward.3} parent=5 // pred_fallthru
        _
    $region6: #{down_block_forward.3} parent=1 // loop_footer
      %s23 = sadd.s32 1, %s19
    $region7: #{down_block_forward.3} parent=1 // loop_footer_branch
      %18 = sbr.rel target = $region3
    $region8: #{down_block_forward.3} parent=1 // loop_exit
      _
    %1667 = vsyncpa [#allocation3], 1
    %s1668 = scalar_lea.sflag [#allocation3], 1
    %1669 = vsyncpa %s1668, 1
    %1670 = vsyncpa [#allocation5], 1
    %1671 = vsyncpa [#allocation8], 1
    %1672 = vsyncpa [#allocation11], 1

</llo_original>
